<compile_context>
chip_gen: v6e
topology: v6e:2x2x1
jax: 0.10.0
libtpu: 0.0.40
codegen_flags: <defaults>
</compile_context>

<pallas_src>
import functools

import jax
import jax.numpy as jnp
import numpy as np
from jax import lax
from jax.experimental import pallas as pl
from jax.experimental.pallas import tpu as pltpu


def _se_resblock_kernel(x_ref, w1_ref, b1_ref, g1_ref, bb1_ref,
                        w2_ref, b2_ref, g2_ref, bb2_ref,
                        fw1_ref, fb1_ref, fw2_ref, fb2_ref,
                        o_ref, *, taps, W, eps):
    """One grid step = B batch samples.  Per-sample activations are (C, H*W)."""
    B = x_ref.shape[0]
    HW = x_ref.shape[2]

    # Hoisted circular-wrap machinery: iota % W and the wrap masks are built
    # once and reused by every dw != 0 tap of both convs.
    dws = sorted({dw for _, dw in taps if dw})
    wrap = {}
    if dws:
        col = lax.broadcasted_iota(jnp.int32, (1, HW), 1) % W
        for dw in dws:
            wrap[dw] = (col >= W - dw) if dw > 0 else (col < -dw)

    def shift(h, dh, dw):
        # y[c, h*W + w] = h[c, ((h+dh) % H)*W + (w+dw) % W]   (circular padding)
        if dh:
            # Row shift: flat roll by a multiple of W wraps h circularly.
            h = jnp.roll(h, -dh * W, axis=1)
        if dw:
            # Column shift: flat roll + hoisted lane-mask select at the wrap.
            main = jnp.roll(h, -dw, axis=1)
            fix = jnp.roll(h, (W - dw) if dw > 0 else -(W + dw), axis=1)
            h = jnp.where(wrap[dw], fix, main)
        return h

    # Params loaded once per grid step, reused for all B samples.
    w1 = w1_ref[...]          # (T, Cout, Cin) bf16, mask pre-multiplied
    w2 = w2_ref[...]
    b1 = b1_ref[...]          # (Cout, 1) f32
    b2 = b2_ref[...]
    g1 = g1_ref[...]          # (Cout, HW) f32
    bb1 = bb1_ref[...]
    g2 = g2_ref[...]
    bb2 = bb2_ref[...]
    fw1 = fw1_ref[...]        # (C//2, C) f32
    fb1 = fb1_ref[...]        # (C//2, 1) f32
    fw2 = fw2_ref[...]        # (C, C//2) f32
    fb2 = fb2_ref[...]        # (C, 1) f32

    def masked_conv(h32, w_taps, bias):
        # Per-tap MXU accumulation over the statically-nonzero taps only.
        # bf16 operands, f32 accumulator (preferred_element_type).
        acc = None
        for t, (dh, dw) in enumerate(taps):
            sh = shift(h32, dh, dw).astype(jnp.bfloat16)
            part = jnp.dot(w_taps[t], sh, preferred_element_type=jnp.float32)
            acc = part if acc is None else acc + part
        return acc + bias

    def layer_norm(h, gamma, beta):
        # nn.LayerNorm([C, H, W]): stats over all of (C, H, W) per sample.
        # Single pass: var = E[h^2] - mu^2.
        mu = jnp.mean(h, keepdims=True)
        ms = jnp.mean(h * h, keepdims=True)
        var = ms - mu * mu
        return (h - mu) * lax.rsqrt(var + eps) * gamma + beta

    def sigmoid(v):
        # Numerically stable; tanh runs on the EUP (free bundle slot).
        return 0.5 * (jnp.tanh(0.5 * v) + 1.0)

    xs, hs, ps = [], [], []
    for b in range(B):                           # static, unrolled sample loop
        x = x_ref[b]                             # (Cin, HW) f32
        h = masked_conv(x, w1, b1)
        h = jnp.maximum(layer_norm(h, g1, bb1), 0.0)
        h = masked_conv(h, w2, b2)
        h = layer_norm(h, g2, bb2)
        xs.append(x)
        hs.append(h)
        ps.append(jnp.mean(h, axis=1, keepdims=True))   # global avg pool (C,1)

    # Squeeze-and-Excitation, batched over the B in-flight samples (f32).
    P = ps[0] if B == 1 else jnp.concatenate(ps, axis=1)            # (C, B)
    Z = jnp.maximum(jnp.dot(fw1, P, preferred_element_type=jnp.float32) + fb1,
                    0.0)                                            # (C//2, B)
    S = sigmoid(jnp.dot(fw2, Z, preferred_element_type=jnp.float32) + fb2)

    for b in range(B):
        out = jnp.maximum(hs[b] * S[:, b:b + 1] + xs[b], 0.0)
        o_ref[b] = out.astype(o_ref.dtype)       # lane-dense store


def _pick_samples_per_step(n, target):
    """Largest b <= target with n % b == 0 and >= 2 grid steps when possible."""
    b = max(1, min(target, n))
    while b > 1 and (n % b != 0 or n // b < 2):
        b -= 1
    return b


def se_residual_block_pallas(x_nchw, params, mask1, mask2, *, eps=1e-5,
                             samples_per_step=4):
    """SEResidualBlock forward (preact=False, norm='layer', stride=1,
    filters_in == filters, circular padding, MaskedConv2d).  NCHW in/out.

    NOTE: mask1/mask2 must be concrete (non-traced) arrays: tap pruning and
    weight pre-multiplication happen at trace time.
    """
    N, Cin, H, W = x_nchw.shape
    Cout, Cin_w, K, _ = params["conv1_w"].shape
    assert Cin == Cin_w
    assert Cin == Cout, "identity shortcut requires filters_in == filters"
    # TODO(synk): stride != 1 / projection shortcut (1x1 conv + LayerNorm), preact
    # and batch-norm config branches are not implemented.
    pad = K // 2
    HW = H * W
    # Layout note: keep H*W a multiple of 128 (lane-dense vregs / stores) and C a
    # multiple of 16 (bf16 sublane packing); demo uses 16x16 -> HW=256, C=16.

    m1 = np.asarray(mask1)
    m2 = np.asarray(mask2)
    taps_kk = [(kh, kw) for kh in range(K) for kw in range(K)
               if m1[:, :, kh, kw].any() or m2[:, :, kh, kw].any()]
    tap_offsets = tuple((kh - pad, kw - pad) for kh, kw in taps_kk)
    n_taps = len(tap_offsets)

    # Pre-multiply the mask into the kept taps and stack them (T, Cout, Cin)
    # as bf16 MXU operands; neither the mask nor the zero taps nor f32 weight
    # copies ever reach the kernel.
    wm1 = params["conv1_w"] * mask1
    wm2 = params["conv2_w"] * mask2
    w1_taps = jnp.stack([wm1[:, :, kh, kw] for kh, kw in taps_kk],
                        axis=0).astype(jnp.bfloat16)
    w2_taps = jnp.stack([wm2[:, :, kh, kw] for kh, kw in taps_kk],
                        axis=0).astype(jnp.bfloat16)

    x3 = x_nchw.reshape(N, Cin, HW)
    b1 = params["conv1_b"].reshape(Cout, 1)
    b2 = params["conv2_b"].reshape(Cout, 1)
    g1 = params["ln1_g"].reshape(Cout, HW)
    bb1 = params["ln1_b"].reshape(Cout, HW)
    g2 = params["ln2_g"].reshape(Cout, HW)
    bb2 = params["ln2_b"].reshape(Cout, HW)
    fw1 = params["fc1_w"]                     # (C//2, C)
    fb1 = params["fc1_b"].reshape(-1, 1)
    fw2 = params["fc2_w"]                     # (C, C//2)
    fb2 = params["fc2_b"].reshape(-1, 1)

    B = _pick_samples_per_step(N, samples_per_step)
    grid = (N // B,)

    kernel = functools.partial(_se_resblock_kernel,
                               taps=tap_offsets, W=W, eps=eps)

    def _const(a):
        nd = a.ndim
        return pl.BlockSpec(a.shape, lambda n: (0,) * nd)
        # TODO(synk): for very large C*H*W on v7x (64 MiB VMEM), switch these
        # constant-index params to pipeline_mode=pl.Buffered(1) and tile the
        # H*W axis with a two-pass LayerNorm.

    const_args = (w1_taps, b1, g1, bb1, w2_taps, b2, g2, bb2,
                  fw1, fb1, fw2, fb2)

    flops = N * (2 * 2 * Cout * n_taps * Cin * HW + 4 * Cout * (Cout // 2))
    bytes_accessed = 2 * N * Cout * HW * x_nchw.dtype.itemsize + sum(
        int(a.size) * a.dtype.itemsize for a in const_args)
    cost = pl.CostEstimate(flops=int(flops),
                           transcendentals=int(N * (Cout + 2)),
                           bytes_accessed=int(bytes_accessed))

    out = pl.pallas_call(
        kernel,
        out_shape=jax.ShapeDtypeStruct((N, Cout, HW), x_nchw.dtype),
        grid=grid,
        in_specs=[pl.BlockSpec((B, Cin, HW), lambda n: (n, 0, 0))]
                 + [_const(a) for a in const_args],
        out_specs=pl.BlockSpec((B, Cout, HW), lambda n: (n, 0, 0)),
        compiler_params=pltpu.CompilerParams(
            dimension_semantics=("parallel",),
            # Explicit scoped-VMEM budget: ample for these block sizes and
            # within v7x's 64 MiB physical VMEM.
            vmem_limit_bytes=32 * 1024 * 1024),
        cost_estimate=cost,
    )(x3, *const_args)

    return out.reshape(N, Cout, H, W)


def make_mask(out_channels, in_channels, kernel_size):
    """Replicates the MaskedConv2d mask construction."""
    mask = np.ones((out_channels, in_channels, kernel_size, kernel_size),
                   np.float32)
    if kernel_size == 3:
        row = [0, 0, 2, 2]
        col = [0, 2, 0, 2]
    elif kernel_size == 5:
        row = [0, 0, 0, 0, 1, 1, 3, 3, 4, 4, 4, 4]
        col = [0, 1, 3, 4, 0, 4, 0, 4, 0, 1, 3, 4]
    else:
        row, col = [], []
    mask[:, :, row, col] = 0.0
    return jnp.asarray(mask)


def se_residual_block_reference(x, params, mask1, mask2, *, eps=1e-5):
    """Plain-JAX reference (independent code path: pad-wrap + lax.conv, f32)."""
    K = params["conv1_w"].shape[-1]
    pad = K // 2

    def circ_conv(h, w, b):
        hp = jnp.pad(h, ((0, 0), (0, 0), (pad, pad), (pad, pad)), mode="wrap")
        y = lax.conv_general_dilated(
            hp, w, window_strides=(1, 1), padding="VALID",
            dimension_numbers=("NCHW", "OIHW", "NCHW"),
            precision=lax.Precision.HIGHEST)
        return y + b[None, :, None, None]

    def layer_norm(h, g, b):
        mu = jnp.mean(h, axis=(1, 2, 3), keepdims=True)
        var = jnp.mean(jnp.square(h - mu), axis=(1, 2, 3), keepdims=True)
        return (h - mu) * lax.rsqrt(var + eps) * g[None] + b[None]

    h = circ_conv(x, params["conv1_w"] * mask1, params["conv1_b"])
    h = jnp.maximum(layer_norm(h, params["ln1_g"], params["ln1_b"]), 0.0)
    h = circ_conv(h, params["conv2_w"] * mask2, params["conv2_b"])
    h = layer_norm(h, params["ln2_g"], params["ln2_b"])
    p = jnp.mean(h, axis=(2, 3), keepdims=True)                   # (N,C,1,1)
    z = jnp.einsum("oc,nchw->nohw", params["fc1_w"], p,
                   precision=lax.Precision.HIGHEST)
    z = jnp.maximum(z + params["fc1_b"][None, :, None, None], 0.0)
    s = jnp.einsum("oc,nchw->nohw", params["fc2_w"], z,
                   precision=lax.Precision.HIGHEST)
    s = jax.nn.sigmoid(s + params["fc2_b"][None, :, None, None])
    return jnp.maximum(h * s + x, 0.0)


if __name__ == "__main__":
    # Small deterministic example.  N=8 samples with 4 samples per grid step
    # (grid=(2,), "parallel") demonstrates the batched-step kernel; C=16 keeps
    # the bf16 channel dim 16-aligned and H*W=256 keeps lanes dense.
    N, C, H, W, K = 8, 16, 16, 16, 3

    key = jax.random.PRNGKey(0)
    ks = jax.random.split(key, 13)

    def unif(k, shape, bound):
        return jax.random.uniform(k, shape, jnp.float32, -bound, bound)

    conv_bound = 1.0 / np.sqrt(C * K * K)
    params = dict(
        conv1_w=unif(ks[1], (C, C, K, K), conv_bound),
        conv1_b=unif(ks[2], (C,), conv_bound),
        ln1_g=1.0 + 0.1 * jax.random.normal(ks[3], (C, H, W), jnp.float32),
        ln1_b=0.1 * jax.random.normal(ks[4], (C, H, W), jnp.float32),
        conv2_w=unif(ks[5], (C, C, K, K), conv_bound),
        conv2_b=unif(ks[6], (C,), conv_bound),
        ln2_g=1.0 + 0.1 * jax.random.normal(ks[7], (C, H, W), jnp.float32),
        ln2_b=0.1 * jax.random.normal(ks[8], (C, H, W), jnp.float32),
        fc1_w=unif(ks[9], (C // 2, C), 1.0 / np.sqrt(C)),
        fc1_b=unif(ks[10], (C // 2,), 1.0 / np.sqrt(C)),
        fc2_w=unif(ks[11], (C, C // 2), 1.0 / np.sqrt(C // 2)),
        fc2_b=unif(ks[12], (C,), 1.0 / np.sqrt(C // 2)),
    )
    x = jax.random.normal(ks[0], (N, C, H, W), jnp.float32)
    mask = make_mask(C, C, K)

    out = se_residual_block_pallas(x, params, mask, mask)
    out = jax.block_until_ready(out)

    ref = se_residual_block_reference(x, params, mask, mask)
    # Tolerance accounts for bf16 MXU operands vs. the f32-HIGHEST reference;
    # LayerNorm statistics, SE and elementwise math are f32 in the kernel.
    np.testing.assert_allclose(np.asarray(out), np.asarray(ref),
                               rtol=3e-2, atol=3e-2)

    print("KERNEL_OK")
</pallas_src>

<mosaic_0001>
module attributes {stable_mosaic.version = 11 : i64} {
  func.func @_se_resblock_kernel(%arg0: i32, %arg1: memref<4x16x256xf32, #tpu.memory_space<vmem>>, %arg2: memref<5x16x16xbf16, #tpu.memory_space<vmem>>, %arg3: memref<16x1xf32, #tpu.memory_space<vmem>>, %arg4: memref<16x256xf32, #tpu.memory_space<vmem>>, %arg5: memref<16x256xf32, #tpu.memory_space<vmem>>, %arg6: memref<5x16x16xbf16, #tpu.memory_space<vmem>>, %arg7: memref<16x1xf32, #tpu.memory_space<vmem>>, %arg8: memref<16x256xf32, #tpu.memory_space<vmem>>, %arg9: memref<16x256xf32, #tpu.memory_space<vmem>>, %arg10: memref<8x16xf32, #tpu.memory_space<vmem>>, %arg11: memref<8x1xf32, #tpu.memory_space<vmem>>, %arg12: memref<16x8xf32, #tpu.memory_space<vmem>>, %arg13: memref<16x1xf32, #tpu.memory_space<vmem>>, %arg14: memref<4x16x256xf32, #tpu.memory_space<vmem>>) attributes {dimension_semantics = [#tpu.dimension_semantics<parallel>], iteration_bounds = array<i64: 2>, scalar_prefetch = 0 : i64, scratch_operands = 0 : i64, tpu.core_type = #tpu.core_type<tc>, window_params = [{transform_indices = @transform_0, window_bounds = array<i64: 4, 16, 256>}, {pipeline_mode = #tpu.pipeline_mode<synchronous>, transform_indices = @transform_1, window_bounds = array<i64: 5, 16, 16>}, {pipeline_mode = #tpu.pipeline_mode<synchronous>, transform_indices = @transform_2, window_bounds = array<i64: 16, 1>}, {pipeline_mode = #tpu.pipeline_mode<synchronous>, transform_indices = @transform_3, window_bounds = array<i64: 16, 256>}, {pipeline_mode = #tpu.pipeline_mode<synchronous>, transform_indices = @transform_4, window_bounds = array<i64: 16, 256>}, {pipeline_mode = #tpu.pipeline_mode<synchronous>, transform_indices = @transform_5, window_bounds = array<i64: 5, 16, 16>}, {pipeline_mode = #tpu.pipeline_mode<synchronous>, transform_indices = @transform_6, window_bounds = array<i64: 16, 1>}, {pipeline_mode = #tpu.pipeline_mode<synchronous>, transform_indices = @transform_7, window_bounds = array<i64: 16, 256>}, {pipeline_mode = #tpu.pipeline_mode<synchronous>, transform_indices = @transform_8, window_bounds = array<i64: 16, 256>}, {pipeline_mode = #tpu.pipeline_mode<synchronous>, transform_indices = @transform_9, window_bounds = array<i64: 8, 16>}, {pipeline_mode = #tpu.pipeline_mode<synchronous>, transform_indices = @transform_10, window_bounds = array<i64: 8, 1>}, {pipeline_mode = #tpu.pipeline_mode<synchronous>, transform_indices = @transform_11, window_bounds = array<i64: 16, 8>}, {pipeline_mode = #tpu.pipeline_mode<synchronous>, transform_indices = @transform_12, window_bounds = array<i64: 16, 1>}, {transform_indices = @transform_13, window_bounds = array<i64: 4, 16, 256>}]} {
    %0 = tpu.iota {dimensions = array<i32: 1>} : vector<1x256xi32>
    %c16_i32 = arith.constant 16 : i32
    %c0_i32 = arith.constant 0 : i32
    %1 = arith.cmpi eq, %c16_i32, %c0_i32 : i32
    %c1_i32 = arith.constant 1 : i32
    %2 = arith.select %1, %c1_i32, %c16_i32 : i32
    %3 = vector.broadcast %2 : i32 to vector<1x256xi32>
    %4 = arith.remsi %0, %3 : vector<1x256xi32>
    %c0_i32_0 = arith.constant 0 : i32
    %5 = vector.broadcast %c0_i32_0 : i32 to vector<1x256xi32>
    %6 = arith.cmpi ne, %4, %5 : vector<1x256xi32>
    %c0_i32_1 = arith.constant 0 : i32
    %7 = vector.broadcast %c0_i32_1 : i32 to vector<1x256xi32>
    %8 = arith.cmpi slt, %4, %7 : vector<1x256xi32>
    %c0_i32_2 = arith.constant 0 : i32
    %9 = arith.cmpi slt, %2, %c0_i32_2 : i32
    %10 = vector.broadcast %9 : i1 to vector<1x256xi1>
    %11 = vector.broadcast %10 : vector<1x256xi1> to vector<1x256xi1>
    %12 = arith.xori %8, %11 : vector<1x256xi1>
    %13 = arith.andi %12, %6 : vector<1x256xi1>
    %14 = vector.broadcast %2 : i32 to vector<1x256xi32>
    %15 = arith.addi %4, %14 : vector<1x256xi32>
    %16 = arith.select %13, %15, %4 : vector<1x256xi1>, vector<1x256xi32>
    %c1_i32_3 = arith.constant 1 : i32
    %17 = vector.broadcast %c1_i32_3 : i32 to vector<1x256xi32>
    %18 = arith.cmpi slt, %16, %17 : vector<1x256xi32>
    %c15_i32 = arith.constant 15 : i32
    %19 = vector.broadcast %c15_i32 : i32 to vector<1x256xi32>
    %20 = arith.cmpi sge, %16, %19 : vector<1x256xi32>
    %c0 = arith.constant 0 : index
    %c0_4 = arith.constant 0 : index
    %c0_5 = arith.constant 0 : index
    %21 = vector.load %arg2[%c0, %c0_4, %c0_5] : memref<5x16x16xbf16, #tpu.memory_space<vmem>>, vector<5x16x16xbf16>
    %c0_6 = arith.constant 0 : index
    %c0_7 = arith.constant 0 : index
    %c0_8 = arith.constant 0 : index
    %22 = vector.load %arg6[%c0_6, %c0_7, %c0_8] : memref<5x16x16xbf16, #tpu.memory_space<vmem>>, vector<5x16x16xbf16>
    %c0_9 = arith.constant 0 : index
    %c0_10 = arith.constant 0 : index
    %23 = vector.load %arg3[%c0_9, %c0_10] : memref<16x1xf32, #tpu.memory_space<vmem>>, vector<16x1xf32>
    %c0_11 = arith.constant 0 : index
    %c0_12 = arith.constant 0 : index
    %24 = vector.load %arg7[%c0_11, %c0_12] : memref<16x1xf32, #tpu.memory_space<vmem>>, vector<16x1xf32>
    %c0_13 = arith.constant 0 : index
    %c0_14 = arith.constant 0 : index
    %25 = vector.load %arg4[%c0_13, %c0_14] : memref<16x256xf32, #tpu.memory_space<vmem>>, vector<16x256xf32>
    %c0_15 = arith.constant 0 : index
    %c0_16 = arith.constant 0 : index
    %26 = vector.load %arg5[%c0_15, %c0_16] : memref<16x256xf32, #tpu.memory_space<vmem>>, vector<16x256xf32>
    %c0_17 = arith.constant 0 : index
    %c0_18 = arith.constant 0 : index
    %27 = vector.load %arg8[%c0_17, %c0_18] : memref<16x256xf32, #tpu.memory_space<vmem>>, vector<16x256xf32>
    %c0_19 = arith.constant 0 : index
    %c0_20 = arith.constant 0 : index
    %28 = vector.load %arg9[%c0_19, %c0_20] : memref<16x256xf32, #tpu.memory_space<vmem>>, vector<16x256xf32>
    %c0_21 = arith.constant 0 : index
    %c0_22 = arith.constant 0 : index
    %29 = vector.load %arg10[%c0_21, %c0_22] : memref<8x16xf32, #tpu.memory_space<vmem>>, vector<8x16xf32>
    %c0_23 = arith.constant 0 : index
    %c0_24 = arith.constant 0 : index
    %30 = vector.load %arg11[%c0_23, %c0_24] : memref<8x1xf32, #tpu.memory_space<vmem>>, vector<8x1xf32>
    %c0_25 = arith.constant 0 : index
    %c0_26 = arith.constant 0 : index
    %31 = vector.load %arg12[%c0_25, %c0_26] : memref<16x8xf32, #tpu.memory_space<vmem>>, vector<16x8xf32>
    %c0_27 = arith.constant 0 : index
    %c0_28 = arith.constant 0 : index
    %32 = vector.load %arg13[%c0_27, %c0_28] : memref<16x1xf32, #tpu.memory_space<vmem>>, vector<16x1xf32>
    %c0_29 = arith.constant 0 : index
    %c0_30 = arith.constant 0 : index
    %c0_31 = arith.constant 0 : index
    %33 = vector.load %arg1[%c0_29, %c0_30, %c0_31] : memref<4x16x256xf32, #tpu.memory_space<vmem>>, vector<1x16x256xf32>
    %34 = vector.shape_cast %33 : vector<1x16x256xf32> to vector<16x256xf32>
    %35 = vector.extract_strided_slice %34 {offsets = [0, 240], sizes = [16, 16], strides = [1, 1]} : vector<16x256xf32> to vector<16x16xf32>
    %36 = vector.extract_strided_slice %34 {offsets = [0, 0], sizes = [16, 240], strides = [1, 1]} : vector<16x256xf32> to vector<16x240xf32>
    %37 = tpu.concatenate %35, %36 in 1 : vector<16x16xf32>, vector<16x240xf32> -> vector<16x256xf32>
    %38 = arith.truncf %37 : vector<16x256xf32> to vector<16x256xbf16>
    %39 = vector.extract_strided_slice %21 {offsets = [0, 0, 0], sizes = [1, 16, 16], strides = [1, 1, 1]} : vector<5x16x16xbf16> to vector<1x16x16xbf16>
    %40 = vector.shape_cast %39 : vector<1x16x16xbf16> to vector<16x16xbf16>
    %cst = arith.constant dense<0.000000e+00> : vector<16x256xf32>
    %41 = tpu.matmul %40, %38, %cst {dimension_numbers = #tpu.dot_dimension_numbers<[1], [0], [0], [1], [0, 0, 1, 1], [], []>} : vector<16x16xbf16>, vector<16x256xbf16>, vector<16x256xf32> -> vector<16x256xf32>
    %42 = vector.extract_strided_slice %34 {offsets = [0, 255], sizes = [16, 1], strides = [1, 1]} : vector<16x256xf32> to vector<16x1xf32>
    %43 = vector.extract_strided_slice %34 {offsets = [0, 0], sizes = [16, 255], strides = [1, 1]} : vector<16x256xf32> to vector<16x255xf32>
    %44 = tpu.concatenate %42, %43 in 1 : vector<16x1xf32>, vector<16x255xf32> -> vector<16x256xf32>
    %45 = vector.extract_strided_slice %34 {offsets = [0, 15], sizes = [16, 241], strides = [1, 1]} : vector<16x256xf32> to vector<16x241xf32>
    %46 = vector.extract_strided_slice %34 {offsets = [0, 0], sizes = [16, 15], strides = [1, 1]} : vector<16x256xf32> to vector<16x15xf32>
    %47 = tpu.concatenate %45, %46 in 1 : vector<16x241xf32>, vector<16x15xf32> -> vector<16x256xf32>
    %48 = vector.shape_cast %18 : vector<1x256xi1> to vector<1x256xi1>
    %49 = vector.broadcast %48 : vector<1x256xi1> to vector<16x256xi1>
    %50 = arith.select %49, %47, %44 : vector<16x256xi1>, vector<16x256xf32>
    %51 = arith.truncf %50 : vector<16x256xf32> to vector<16x256xbf16>
    %52 = vector.extract_strided_slice %21 {offsets = [1, 0, 0], sizes = [1, 16, 16], strides = [1, 1, 1]} : vector<5x16x16xbf16> to vector<1x16x16xbf16>
    %53 = vector.shape_cast %52 : vector<1x16x16xbf16> to vector<16x16xbf16>
    %cst_32 = arith.constant dense<0.000000e+00> : vector<16x256xf32>
    %54 = tpu.matmul %53, %51, %cst_32 {dimension_numbers = #tpu.dot_dimension_numbers<[1], [0], [0], [1], [0, 0, 1, 1], [], []>} : vector<16x16xbf16>, vector<16x256xbf16>, vector<16x256xf32> -> vector<16x256xf32>
    %55 = arith.addf %41, %54 : vector<16x256xf32>
    %56 = arith.truncf %34 : vector<16x256xf32> to vector<16x256xbf16>
    %57 = vector.extract_strided_slice %21 {offsets = [2, 0, 0], sizes = [1, 16, 16], strides = [1, 1, 1]} : vector<5x16x16xbf16> to vector<1x16x16xbf16>
    %58 = vector.shape_cast %57 : vector<1x16x16xbf16> to vector<16x16xbf16>
    %cst_33 = arith.constant dense<0.000000e+00> : vector<16x256xf32>
    %59 = tpu.matmul %58, %56, %cst_33 {dimension_numbers = #tpu.dot_dimension_numbers<[1], [0], [0], [1], [0, 0, 1, 1], [], []>} : vector<16x16xbf16>, vector<16x256xbf16>, vector<16x256xf32> -> vector<16x256xf32>
    %60 = arith.addf %55, %59 : vector<16x256xf32>
    %61 = vector.extract_strided_slice %34 {offsets = [0, 1], sizes = [16, 255], strides = [1, 1]} : vector<16x256xf32> to vector<16x255xf32>
    %62 = vector.extract_strided_slice %34 {offsets = [0, 0], sizes = [16, 1], strides = [1, 1]} : vector<16x256xf32> to vector<16x1xf32>
    %63 = tpu.concatenate %61, %62 in 1 : vector<16x255xf32>, vector<16x1xf32> -> vector<16x256xf32>
    %64 = vector.extract_strided_slice %34 {offsets = [0, 241], sizes = [16, 15], strides = [1, 1]} : vector<16x256xf32> to vector<16x15xf32>
    %65 = vector.extract_strided_slice %34 {offsets = [0, 0], sizes = [16, 241], strides = [1, 1]} : vector<16x256xf32> to vector<16x241xf32>
    %66 = tpu.concatenate %64, %65 in 1 : vector<16x15xf32>, vector<16x241xf32> -> vector<16x256xf32>
    %67 = vector.shape_cast %20 : vector<1x256xi1> to vector<1x256xi1>
    %68 = vector.broadcast %67 : vector<1x256xi1> to vector<16x256xi1>
    %69 = arith.select %68, %66, %63 : vector<16x256xi1>, vector<16x256xf32>
    %70 = arith.truncf %69 : vector<16x256xf32> to vector<16x256xbf16>
    %71 = vector.extract_strided_slice %21 {offsets = [3, 0, 0], sizes = [1, 16, 16], strides = [1, 1, 1]} : vector<5x16x16xbf16> to vector<1x16x16xbf16>
    %72 = vector.shape_cast %71 : vector<1x16x16xbf16> to vector<16x16xbf16>
    %cst_34 = arith.constant dense<0.000000e+00> : vector<16x256xf32>
    %73 = tpu.matmul %72, %70, %cst_34 {dimension_numbers = #tpu.dot_dimension_numbers<[1], [0], [0], [1], [0, 0, 1, 1], [], []>} : vector<16x16xbf16>, vector<16x256xbf16>, vector<16x256xf32> -> vector<16x256xf32>
    %74 = arith.addf %60, %73 : vector<16x256xf32>
    %75 = vector.extract_strided_slice %34 {offsets = [0, 16], sizes = [16, 240], strides = [1, 1]} : vector<16x256xf32> to vector<16x240xf32>
    %76 = vector.extract_strided_slice %34 {offsets = [0, 0], sizes = [16, 16], strides = [1, 1]} : vector<16x256xf32> to vector<16x16xf32>
    %77 = tpu.concatenate %75, %76 in 1 : vector<16x240xf32>, vector<16x16xf32> -> vector<16x256xf32>
    %78 = arith.truncf %77 : vector<16x256xf32> to vector<16x256xbf16>
    %79 = vector.extract_strided_slice %21 {offsets = [4, 0, 0], sizes = [1, 16, 16], strides = [1, 1, 1]} : vector<5x16x16xbf16> to vector<1x16x16xbf16>
    %80 = vector.shape_cast %79 : vector<1x16x16xbf16> to vector<16x16xbf16>
    %cst_35 = arith.constant dense<0.000000e+00> : vector<16x256xf32>
    %81 = tpu.matmul %80, %78, %cst_35 {dimension_numbers = #tpu.dot_dimension_numbers<[1], [0], [0], [1], [0, 0, 1, 1], [], []>} : vector<16x16xbf16>, vector<16x256xbf16>, vector<16x256xf32> -> vector<16x256xf32>
    %82 = arith.addf %74, %81 : vector<16x256xf32>
    %83 = vector.broadcast %23 : vector<16x1xf32> to vector<16x256xf32>
    %84 = arith.addf %82, %83 : vector<16x256xf32>
    %85 = vector.shape_cast %84 : vector<16x256xf32> to vector<1x16x256xf32>
    %cst_36 = arith.constant dense<0.000000e+00> : vector<1xf32>
    %86 = vector.multi_reduction <add>, %85, %cst_36 [1, 2] : vector<1x16x256xf32> to vector<1xf32>
    %87 = vector.shape_cast %86 : vector<1xf32> to vector<1x1x1xf32>
    %88 = vector.extract %87[0, 0, 0] : f32 from vector<1x1x1xf32>
    %89 = vector.broadcast %88 : f32 to vector<1x1xf32>
    %cst_37 = arith.constant 4.096000e+03 : f32
    %90 = vector.broadcast %cst_37 : f32 to vector<1x1xf32>
    %91 = arith.divf %89, %90 : vector<1x1xf32>
    %92 = arith.mulf %84, %84 : vector<16x256xf32>
    %93 = vector.shape_cast %92 : vector<16x256xf32> to vector<1x16x256xf32>
    %cst_38 = arith.constant dense<0.000000e+00> : vector<1xf32>
    %94 = vector.multi_reduction <add>, %93, %cst_38 [1, 2] : vector<1x16x256xf32> to vector<1xf32>
    %95 = vector.shape_cast %94 : vector<1xf32> to vector<1x1x1xf32>
    %96 = vector.extract %95[0, 0, 0] : f32 from vector<1x1x1xf32>
    %97 = vector.broadcast %96 : f32 to vector<1x1xf32>
    %cst_39 = arith.constant 4.096000e+03 : f32
    %98 = vector.broadcast %cst_39 : f32 to vector<1x1xf32>
    %99 = arith.divf %97, %98 : vector<1x1xf32>
    %100 = arith.mulf %91, %91 : vector<1x1xf32>
    %101 = arith.subf %99, %100 : vector<1x1xf32>
    %102 = vector.broadcast %91 : vector<1x1xf32> to vector<16x256xf32>
    %103 = arith.subf %84, %102 : vector<16x256xf32>
    %cst_40 = arith.constant 9.99999974E-6 : f32
    %104 = vector.broadcast %cst_40 : f32 to vector<1x1xf32>
    %105 = arith.addf %101, %104 : vector<1x1xf32>
    %106 = math.rsqrt %105 : vector<1x1xf32>
    %107 = vector.broadcast %106 : vector<1x1xf32> to vector<16x256xf32>
    %108 = arith.mulf %103, %107 : vector<16x256xf32>
    %109 = arith.mulf %108, %25 : vector<16x256xf32>
    %110 = arith.addf %109, %26 : vector<16x256xf32>
    %cst_41 = arith.constant 0.000000e+00 : f32
    %111 = vector.broadcast %cst_41 : f32 to vector<16x256xf32>
    %112 = arith.maximumf %110, %111 : vector<16x256xf32>
    %113 = vector.extract_strided_slice %112 {offsets = [0, 240], sizes = [16, 16], strides = [1, 1]} : vector<16x256xf32> to vector<16x16xf32>
    %114 = vector.extract_strided_slice %112 {offsets = [0, 0], sizes = [16, 240], strides = [1, 1]} : vector<16x256xf32> to vector<16x240xf32>
    %115 = tpu.concatenate %113, %114 in 1 : vector<16x16xf32>, vector<16x240xf32> -> vector<16x256xf32>
    %116 = arith.truncf %115 : vector<16x256xf32> to vector<16x256xbf16>
    %117 = vector.extract_strided_slice %22 {offsets = [0, 0, 0], sizes = [1, 16, 16], strides = [1, 1, 1]} : vector<5x16x16xbf16> to vector<1x16x16xbf16>
    %118 = vector.shape_cast %117 : vector<1x16x16xbf16> to vector<16x16xbf16>
    %cst_42 = arith.constant dense<0.000000e+00> : vector<16x256xf32>
    %119 = tpu.matmul %118, %116, %cst_42 {dimension_numbers = #tpu.dot_dimension_numbers<[1], [0], [0], [1], [0, 0, 1, 1], [], []>} : vector<16x16xbf16>, vector<16x256xbf16>, vector<16x256xf32> -> vector<16x256xf32>
    %120 = vector.extract_strided_slice %112 {offsets = [0, 255], sizes = [16, 1], strides = [1, 1]} : vector<16x256xf32> to vector<16x1xf32>
    %121 = vector.extract_strided_slice %112 {offsets = [0, 0], sizes = [16, 255], strides = [1, 1]} : vector<16x256xf32> to vector<16x255xf32>
    %122 = tpu.concatenate %120, %121 in 1 : vector<16x1xf32>, vector<16x255xf32> -> vector<16x256xf32>
    %123 = vector.extract_strided_slice %112 {offsets = [0, 15], sizes = [16, 241], strides = [1, 1]} : vector<16x256xf32> to vector<16x241xf32>
    %124 = vector.extract_strided_slice %112 {offsets = [0, 0], sizes = [16, 15], strides = [1, 1]} : vector<16x256xf32> to vector<16x15xf32>
    %125 = tpu.concatenate %123, %124 in 1 : vector<16x241xf32>, vector<16x15xf32> -> vector<16x256xf32>
    %126 = vector.shape_cast %18 : vector<1x256xi1> to vector<1x256xi1>
    %127 = vector.broadcast %126 : vector<1x256xi1> to vector<16x256xi1>
    %128 = arith.select %127, %125, %122 : vector<16x256xi1>, vector<16x256xf32>
    %129 = arith.truncf %128 : vector<16x256xf32> to vector<16x256xbf16>
    %130 = vector.extract_strided_slice %22 {offsets = [1, 0, 0], sizes = [1, 16, 16], strides = [1, 1, 1]} : vector<5x16x16xbf16> to vector<1x16x16xbf16>
    %131 = vector.shape_cast %130 : vector<1x16x16xbf16> to vector<16x16xbf16>
    %cst_43 = arith.constant dense<0.000000e+00> : vector<16x256xf32>
    %132 = tpu.matmul %131, %129, %cst_43 {dimension_numbers = #tpu.dot_dimension_numbers<[1], [0], [0], [1], [0, 0, 1, 1], [], []>} : vector<16x16xbf16>, vector<16x256xbf16>, vector<16x256xf32> -> vector<16x256xf32>
    %133 = arith.addf %119, %132 : vector<16x256xf32>
    %134 = arith.truncf %112 : vector<16x256xf32> to vector<16x256xbf16>
    %135 = vector.extract_strided_slice %22 {offsets = [2, 0, 0], sizes = [1, 16, 16], strides = [1, 1, 1]} : vector<5x16x16xbf16> to vector<1x16x16xbf16>
    %136 = vector.shape_cast %135 : vector<1x16x16xbf16> to vector<16x16xbf16>
    %cst_44 = arith.constant dense<0.000000e+00> : vector<16x256xf32>
    %137 = tpu.matmul %136, %134, %cst_44 {dimension_numbers = #tpu.dot_dimension_numbers<[1], [0], [0], [1], [0, 0, 1, 1], [], []>} : vector<16x16xbf16>, vector<16x256xbf16>, vector<16x256xf32> -> vector<16x256xf32>
    %138 = arith.addf %133, %137 : vector<16x256xf32>
    %139 = vector.extract_strided_slice %112 {offsets = [0, 1], sizes = [16, 255], strides = [1, 1]} : vector<16x256xf32> to vector<16x255xf32>
    %140 = vector.extract_strided_slice %112 {offsets = [0, 0], sizes = [16, 1], strides = [1, 1]} : vector<16x256xf32> to vector<16x1xf32>
    %141 = tpu.concatenate %139, %140 in 1 : vector<16x255xf32>, vector<16x1xf32> -> vector<16x256xf32>
    %142 = vector.extract_strided_slice %112 {offsets = [0, 241], sizes = [16, 15], strides = [1, 1]} : vector<16x256xf32> to vector<16x15xf32>
    %143 = vector.extract_strided_slice %112 {offsets = [0, 0], sizes = [16, 241], strides = [1, 1]} : vector<16x256xf32> to vector<16x241xf32>
    %144 = tpu.concatenate %142, %143 in 1 : vector<16x15xf32>, vector<16x241xf32> -> vector<16x256xf32>
    %145 = vector.shape_cast %20 : vector<1x256xi1> to vector<1x256xi1>
    %146 = vector.broadcast %145 : vector<1x256xi1> to vector<16x256xi1>
    %147 = arith.select %146, %144, %141 : vector<16x256xi1>, vector<16x256xf32>
    %148 = arith.truncf %147 : vector<16x256xf32> to vector<16x256xbf16>
    %149 = vector.extract_strided_slice %22 {offsets = [3, 0, 0], sizes = [1, 16, 16], strides = [1, 1, 1]} : vector<5x16x16xbf16> to vector<1x16x16xbf16>
    %150 = vector.shape_cast %149 : vector<1x16x16xbf16> to vector<16x16xbf16>
    %cst_45 = arith.constant dense<0.000000e+00> : vector<16x256xf32>
    %151 = tpu.matmul %150, %148, %cst_45 {dimension_numbers = #tpu.dot_dimension_numbers<[1], [0], [0], [1], [0, 0, 1, 1], [], []>} : vector<16x16xbf16>, vector<16x256xbf16>, vector<16x256xf32> -> vector<16x256xf32>
    %152 = arith.addf %138, %151 : vector<16x256xf32>
    %153 = vector.extract_strided_slice %112 {offsets = [0, 16], sizes = [16, 240], strides = [1, 1]} : vector<16x256xf32> to vector<16x240xf32>
    %154 = vector.extract_strided_slice %112 {offsets = [0, 0], sizes = [16, 16], strides = [1, 1]} : vector<16x256xf32> to vector<16x16xf32>
    %155 = tpu.concatenate %153, %154 in 1 : vector<16x240xf32>, vector<16x16xf32> -> vector<16x256xf32>
    %156 = arith.truncf %155 : vector<16x256xf32> to vector<16x256xbf16>
    %157 = vector.extract_strided_slice %22 {offsets = [4, 0, 0], sizes = [1, 16, 16], strides = [1, 1, 1]} : vector<5x16x16xbf16> to vector<1x16x16xbf16>
    %158 = vector.shape_cast %157 : vector<1x16x16xbf16> to vector<16x16xbf16>
    %cst_46 = arith.constant dense<0.000000e+00> : vector<16x256xf32>
    %159 = tpu.matmul %158, %156, %cst_46 {dimension_numbers = #tpu.dot_dimension_numbers<[1], [0], [0], [1], [0, 0, 1, 1], [], []>} : vector<16x16xbf16>, vector<16x256xbf16>, vector<16x256xf32> -> vector<16x256xf32>
    %160 = arith.addf %152, %159 : vector<16x256xf32>
    %161 = vector.broadcast %24 : vector<16x1xf32> to vector<16x256xf32>
    %162 = arith.addf %160, %161 : vector<16x256xf32>
    %163 = vector.shape_cast %162 : vector<16x256xf32> to vector<1x16x256xf32>
    %cst_47 = arith.constant dense<0.000000e+00> : vector<1xf32>
    %164 = vector.multi_reduction <add>, %163, %cst_47 [1, 2] : vector<1x16x256xf32> to vector<1xf32>
    %165 = vector.shape_cast %164 : vector<1xf32> to vector<1x1x1xf32>
    %166 = vector.extract %165[0, 0, 0] : f32 from vector<1x1x1xf32>
    %167 = vector.broadcast %166 : f32 to vector<1x1xf32>
    %cst_48 = arith.constant 4.096000e+03 : f32
    %168 = vector.broadcast %cst_48 : f32 to vector<1x1xf32>
    %169 = arith.divf %167, %168 : vector<1x1xf32>
    %170 = arith.mulf %162, %162 : vector<16x256xf32>
    %171 = vector.shape_cast %170 : vector<16x256xf32> to vector<1x16x256xf32>
    %cst_49 = arith.constant dense<0.000000e+00> : vector<1xf32>
    %172 = vector.multi_reduction <add>, %171, %cst_49 [1, 2] : vector<1x16x256xf32> to vector<1xf32>
    %173 = vector.shape_cast %172 : vector<1xf32> to vector<1x1x1xf32>
    %174 = vector.extract %173[0, 0, 0] : f32 from vector<1x1x1xf32>
    %175 = vector.broadcast %174 : f32 to vector<1x1xf32>
    %cst_50 = arith.constant 4.096000e+03 : f32
    %176 = vector.broadcast %cst_50 : f32 to vector<1x1xf32>
    %177 = arith.divf %175, %176 : vector<1x1xf32>
    %178 = arith.mulf %169, %169 : vector<1x1xf32>
    %179 = arith.subf %177, %178 : vector<1x1xf32>
    %180 = vector.broadcast %169 : vector<1x1xf32> to vector<16x256xf32>
    %181 = arith.subf %162, %180 : vector<16x256xf32>
    %cst_51 = arith.constant 9.99999974E-6 : f32
    %182 = vector.broadcast %cst_51 : f32 to vector<1x1xf32>
    %183 = arith.addf %179, %182 : vector<1x1xf32>
    %184 = math.rsqrt %183 : vector<1x1xf32>
    %185 = vector.broadcast %184 : vector<1x1xf32> to vector<16x256xf32>
    %186 = arith.mulf %181, %185 : vector<16x256xf32>
    %187 = arith.mulf %186, %27 : vector<16x256xf32>
    %188 = arith.addf %187, %28 : vector<16x256xf32>
    %cst_52 = arith.constant dense<0.000000e+00> : vector<16xf32>
    %189 = vector.multi_reduction <add>, %188, %cst_52 [1] : vector<16x256xf32> to vector<16xf32>
    %190 = vector.shape_cast %189 : vector<16xf32> to vector<16x1xf32>
    %cst_53 = arith.constant 2.560000e+02 : f32
    %191 = vector.broadcast %cst_53 : f32 to vector<16x1xf32>
    %192 = arith.divf %190, %191 : vector<16x1xf32>
    %c1 = arith.constant 1 : index
    %c0_54 = arith.constant 0 : index
    %c0_55 = arith.constant 0 : index
    %193 = vector.load %arg1[%c1, %c0_54, %c0_55] : memref<4x16x256xf32, #tpu.memory_space<vmem>>, vector<1x16x256xf32>
    %194 = vector.shape_cast %193 : vector<1x16x256xf32> to vector<16x256xf32>
    %195 = vector.extract_strided_slice %194 {offsets = [0, 240], sizes = [16, 16], strides = [1, 1]} : vector<16x256xf32> to vector<16x16xf32>
    %196 = vector.extract_strided_slice %194 {offsets = [0, 0], sizes = [16, 240], strides = [1, 1]} : vector<16x256xf32> to vector<16x240xf32>
    %197 = tpu.concatenate %195, %196 in 1 : vector<16x16xf32>, vector<16x240xf32> -> vector<16x256xf32>
    %198 = arith.truncf %197 : vector<16x256xf32> to vector<16x256xbf16>
    %199 = vector.extract_strided_slice %21 {offsets = [0, 0, 0], sizes = [1, 16, 16], strides = [1, 1, 1]} : vector<5x16x16xbf16> to vector<1x16x16xbf16>
    %200 = vector.shape_cast %199 : vector<1x16x16xbf16> to vector<16x16xbf16>
    %cst_56 = arith.constant dense<0.000000e+00> : vector<16x256xf32>
    %201 = tpu.matmul %200, %198, %cst_56 {dimension_numbers = #tpu.dot_dimension_numbers<[1], [0], [0], [1], [0, 0, 1, 1], [], []>} : vector<16x16xbf16>, vector<16x256xbf16>, vector<16x256xf32> -> vector<16x256xf32>
    %202 = vector.extract_strided_slice %194 {offsets = [0, 255], sizes = [16, 1], strides = [1, 1]} : vector<16x256xf32> to vector<16x1xf32>
    %203 = vector.extract_strided_slice %194 {offsets = [0, 0], sizes = [16, 255], strides = [1, 1]} : vector<16x256xf32> to vector<16x255xf32>
    %204 = tpu.concatenate %202, %203 in 1 : vector<16x1xf32>, vector<16x255xf32> -> vector<16x256xf32>
    %205 = vector.extract_strided_slice %194 {offsets = [0, 15], sizes = [16, 241], strides = [1, 1]} : vector<16x256xf32> to vector<16x241xf32>
    %206 = vector.extract_strided_slice %194 {offsets = [0, 0], sizes = [16, 15], strides = [1, 1]} : vector<16x256xf32> to vector<16x15xf32>
    %207 = tpu.concatenate %205, %206 in 1 : vector<16x241xf32>, vector<16x15xf32> -> vector<16x256xf32>
    %208 = vector.shape_cast %18 : vector<1x256xi1> to vector<1x256xi1>
    %209 = vector.broadcast %208 : vector<1x256xi1> to vector<16x256xi1>
    %210 = arith.select %209, %207, %204 : vector<16x256xi1>, vector<16x256xf32>
    %211 = arith.truncf %210 : vector<16x256xf32> to vector<16x256xbf16>
    %212 = vector.extract_strided_slice %21 {offsets = [1, 0, 0], sizes = [1, 16, 16], strides = [1, 1, 1]} : vector<5x16x16xbf16> to vector<1x16x16xbf16>
    %213 = vector.shape_cast %212 : vector<1x16x16xbf16> to vector<16x16xbf16>
    %cst_57 = arith.constant dense<0.000000e+00> : vector<16x256xf32>
    %214 = tpu.matmul %213, %211, %cst_57 {dimension_numbers = #tpu.dot_dimension_numbers<[1], [0], [0], [1], [0, 0, 1, 1], [], []>} : vector<16x16xbf16>, vector<16x256xbf16>, vector<16x256xf32> -> vector<16x256xf32>
    %215 = arith.addf %201, %214 : vector<16x256xf32>
    %216 = arith.truncf %194 : vector<16x256xf32> to vector<16x256xbf16>
    %217 = vector.extract_strided_slice %21 {offsets = [2, 0, 0], sizes = [1, 16, 16], strides = [1, 1, 1]} : vector<5x16x16xbf16> to vector<1x16x16xbf16>
    %218 = vector.shape_cast %217 : vector<1x16x16xbf16> to vector<16x16xbf16>
    %cst_58 = arith.constant dense<0.000000e+00> : vector<16x256xf32>
    %219 = tpu.matmul %218, %216, %cst_58 {dimension_numbers = #tpu.dot_dimension_numbers<[1], [0], [0], [1], [0, 0, 1, 1], [], []>} : vector<16x16xbf16>, vector<16x256xbf16>, vector<16x256xf32> -> vector<16x256xf32>
    %220 = arith.addf %215, %219 : vector<16x256xf32>
    %221 = vector.extract_strided_slice %194 {offsets = [0, 1], sizes = [16, 255], strides = [1, 1]} : vector<16x256xf32> to vector<16x255xf32>
    %222 = vector.extract_strided_slice %194 {offsets = [0, 0], sizes = [16, 1], strides = [1, 1]} : vector<16x256xf32> to vector<16x1xf32>
    %223 = tpu.concatenate %221, %222 in 1 : vector<16x255xf32>, vector<16x1xf32> -> vector<16x256xf32>
    %224 = vector.extract_strided_slice %194 {offsets = [0, 241], sizes = [16, 15], strides = [1, 1]} : vector<16x256xf32> to vector<16x15xf32>
    %225 = vector.extract_strided_slice %194 {offsets = [0, 0], sizes = [16, 241], strides = [1, 1]} : vector<16x256xf32> to vector<16x241xf32>
    %226 = tpu.concatenate %224, %225 in 1 : vector<16x15xf32>, vector<16x241xf32> -> vector<16x256xf32>
    %227 = vector.shape_cast %20 : vector<1x256xi1> to vector<1x256xi1>
    %228 = vector.broadcast %227 : vector<1x256xi1> to vector<16x256xi1>
    %229 = arith.select %228, %226, %223 : vector<16x256xi1>, vector<16x256xf32>
    %230 = arith.truncf %229 : vector<16x256xf32> to vector<16x256xbf16>
    %231 = vector.extract_strided_slice %21 {offsets = [3, 0, 0], sizes = [1, 16, 16], strides = [1, 1, 1]} : vector<5x16x16xbf16> to vector<1x16x16xbf16>
    %232 = vector.shape_cast %231 : vector<1x16x16xbf16> to vector<16x16xbf16>
    %cst_59 = arith.constant dense<0.000000e+00> : vector<16x256xf32>
    %233 = tpu.matmul %232, %230, %cst_59 {dimension_numbers = #tpu.dot_dimension_numbers<[1], [0], [0], [1], [0, 0, 1, 1], [], []>} : vector<16x16xbf16>, vector<16x256xbf16>, vector<16x256xf32> -> vector<16x256xf32>
    %234 = arith.addf %220, %233 : vector<16x256xf32>
    %235 = vector.extract_strided_slice %194 {offsets = [0, 16], sizes = [16, 240], strides = [1, 1]} : vector<16x256xf32> to vector<16x240xf32>
    %236 = vector.extract_strided_slice %194 {offsets = [0, 0], sizes = [16, 16], strides = [1, 1]} : vector<16x256xf32> to vector<16x16xf32>
    %237 = tpu.concatenate %235, %236 in 1 : vector<16x240xf32>, vector<16x16xf32> -> vector<16x256xf32>
    %238 = arith.truncf %237 : vector<16x256xf32> to vector<16x256xbf16>
    %239 = vector.extract_strided_slice %21 {offsets = [4, 0, 0], sizes = [1, 16, 16], strides = [1, 1, 1]} : vector<5x16x16xbf16> to vector<1x16x16xbf16>
    %240 = vector.shape_cast %239 : vector<1x16x16xbf16> to vector<16x16xbf16>
    %cst_60 = arith.constant dense<0.000000e+00> : vector<16x256xf32>
    %241 = tpu.matmul %240, %238, %cst_60 {dimension_numbers = #tpu.dot_dimension_numbers<[1], [0], [0], [1], [0, 0, 1, 1], [], []>} : vector<16x16xbf16>, vector<16x256xbf16>, vector<16x256xf32> -> vector<16x256xf32>
    %242 = arith.addf %234, %241 : vector<16x256xf32>
    %243 = vector.broadcast %23 : vector<16x1xf32> to vector<16x256xf32>
    %244 = arith.addf %242, %243 : vector<16x256xf32>
    %245 = vector.shape_cast %244 : vector<16x256xf32> to vector<1x16x256xf32>
    %cst_61 = arith.constant dense<0.000000e+00> : vector<1xf32>
    %246 = vector.multi_reduction <add>, %245, %cst_61 [1, 2] : vector<1x16x256xf32> to vector<1xf32>
    %247 = vector.shape_cast %246 : vector<1xf32> to vector<1x1x1xf32>
    %248 = vector.extract %247[0, 0, 0] : f32 from vector<1x1x1xf32>
    %249 = vector.broadcast %248 : f32 to vector<1x1xf32>
    %cst_62 = arith.constant 4.096000e+03 : f32
    %250 = vector.broadcast %cst_62 : f32 to vector<1x1xf32>
    %251 = arith.divf %249, %250 : vector<1x1xf32>
    %252 = arith.mulf %244, %244 : vector<16x256xf32>
    %253 = vector.shape_cast %252 : vector<16x256xf32> to vector<1x16x256xf32>
    %cst_63 = arith.constant dense<0.000000e+00> : vector<1xf32>
    %254 = vector.multi_reduction <add>, %253, %cst_63 [1, 2] : vector<1x16x256xf32> to vector<1xf32>
    %255 = vector.shape_cast %254 : vector<1xf32> to vector<1x1x1xf32>
    %256 = vector.extract %255[0, 0, 0] : f32 from vector<1x1x1xf32>
    %257 = vector.broadcast %256 : f32 to vector<1x1xf32>
    %cst_64 = arith.constant 4.096000e+03 : f32
    %258 = vector.broadcast %cst_64 : f32 to vector<1x1xf32>
    %259 = arith.divf %257, %258 : vector<1x1xf32>
    %260 = arith.mulf %251, %251 : vector<1x1xf32>
    %261 = arith.subf %259, %260 : vector<1x1xf32>
    %262 = vector.broadcast %251 : vector<1x1xf32> to vector<16x256xf32>
    %263 = arith.subf %244, %262 : vector<16x256xf32>
    %cst_65 = arith.constant 9.99999974E-6 : f32
    %264 = vector.broadcast %cst_65 : f32 to vector<1x1xf32>
    %265 = arith.addf %261, %264 : vector<1x1xf32>
    %266 = math.rsqrt %265 : vector<1x1xf32>
    %267 = vector.broadcast %266 : vector<1x1xf32> to vector<16x256xf32>
    %268 = arith.mulf %263, %267 : vector<16x256xf32>
    %269 = arith.mulf %268, %25 : vector<16x256xf32>
    %270 = arith.addf %269, %26 : vector<16x256xf32>
    %cst_66 = arith.constant 0.000000e+00 : f32
    %271 = vector.broadcast %cst_66 : f32 to vector<16x256xf32>
    %272 = arith.maximumf %270, %271 : vector<16x256xf32>
    %273 = vector.extract_strided_slice %272 {offsets = [0, 240], sizes = [16, 16], strides = [1, 1]} : vector<16x256xf32> to vector<16x16xf32>
    %274 = vector.extract_strided_slice %272 {offsets = [0, 0], sizes = [16, 240], strides = [1, 1]} : vector<16x256xf32> to vector<16x240xf32>
    %275 = tpu.concatenate %273, %274 in 1 : vector<16x16xf32>, vector<16x240xf32> -> vector<16x256xf32>
    %276 = arith.truncf %275 : vector<16x256xf32> to vector<16x256xbf16>
    %277 = vector.extract_strided_slice %22 {offsets = [0, 0, 0], sizes = [1, 16, 16], strides = [1, 1, 1]} : vector<5x16x16xbf16> to vector<1x16x16xbf16>
    %278 = vector.shape_cast %277 : vector<1x16x16xbf16> to vector<16x16xbf16>
    %cst_67 = arith.constant dense<0.000000e+00> : vector<16x256xf32>
    %279 = tpu.matmul %278, %276, %cst_67 {dimension_numbers = #tpu.dot_dimension_numbers<[1], [0], [0], [1], [0, 0, 1, 1], [], []>} : vector<16x16xbf16>, vector<16x256xbf16>, vector<16x256xf32> -> vector<16x256xf32>
    %280 = vector.extract_strided_slice %272 {offsets = [0, 255], sizes = [16, 1], strides = [1, 1]} : vector<16x256xf32> to vector<16x1xf32>
    %281 = vector.extract_strided_slice %272 {offsets = [0, 0], sizes = [16, 255], strides = [1, 1]} : vector<16x256xf32> to vector<16x255xf32>
    %282 = tpu.concatenate %280, %281 in 1 : vector<16x1xf32>, vector<16x255xf32> -> vector<16x256xf32>
    %283 = vector.extract_strided_slice %272 {offsets = [0, 15], sizes = [16, 241], strides = [1, 1]} : vector<16x256xf32> to vector<16x241xf32>
    %284 = vector.extract_strided_slice %272 {offsets = [0, 0], sizes = [16, 15], strides = [1, 1]} : vector<16x256xf32> to vector<16x15xf32>
    %285 = tpu.concatenate %283, %284 in 1 : vector<16x241xf32>, vector<16x15xf32> -> vector<16x256xf32>
    %286 = vector.shape_cast %18 : vector<1x256xi1> to vector<1x256xi1>
    %287 = vector.broadcast %286 : vector<1x256xi1> to vector<16x256xi1>
    %288 = arith.select %287, %285, %282 : vector<16x256xi1>, vector<16x256xf32>
    %289 = arith.truncf %288 : vector<16x256xf32> to vector<16x256xbf16>
    %290 = vector.extract_strided_slice %22 {offsets = [1, 0, 0], sizes = [1, 16, 16], strides = [1, 1, 1]} : vector<5x16x16xbf16> to vector<1x16x16xbf16>
    %291 = vector.shape_cast %290 : vector<1x16x16xbf16> to vector<16x16xbf16>
    %cst_68 = arith.constant dense<0.000000e+00> : vector<16x256xf32>
    %292 = tpu.matmul %291, %289, %cst_68 {dimension_numbers = #tpu.dot_dimension_numbers<[1], [0], [0], [1], [0, 0, 1, 1], [], []>} : vector<16x16xbf16>, vector<16x256xbf16>, vector<16x256xf32> -> vector<16x256xf32>
    %293 = arith.addf %279, %292 : vector<16x256xf32>
    %294 = arith.truncf %272 : vector<16x256xf32> to vector<16x256xbf16>
    %295 = vector.extract_strided_slice %22 {offsets = [2, 0, 0], sizes = [1, 16, 16], strides = [1, 1, 1]} : vector<5x16x16xbf16> to vector<1x16x16xbf16>
    %296 = vector.shape_cast %295 : vector<1x16x16xbf16> to vector<16x16xbf16>
    %cst_69 = arith.constant dense<0.000000e+00> : vector<16x256xf32>
    %297 = tpu.matmul %296, %294, %cst_69 {dimension_numbers = #tpu.dot_dimension_numbers<[1], [0], [0], [1], [0, 0, 1, 1], [], []>} : vector<16x16xbf16>, vector<16x256xbf16>, vector<16x256xf32> -> vector<16x256xf32>
    %298 = arith.addf %293, %297 : vector<16x256xf32>
    %299 = vector.extract_strided_slice %272 {offsets = [0, 1], sizes = [16, 255], strides = [1, 1]} : vector<16x256xf32> to vector<16x255xf32>
    %300 = vector.extract_strided_slice %272 {offsets = [0, 0], sizes = [16, 1], strides = [1, 1]} : vector<16x256xf32> to vector<16x1xf32>
    %301 = tpu.concatenate %299, %300 in 1 : vector<16x255xf32>, vector<16x1xf32> -> vector<16x256xf32>
    %302 = vector.extract_strided_slice %272 {offsets = [0, 241], sizes = [16, 15], strides = [1, 1]} : vector<16x256xf32> to vector<16x15xf32>
    %303 = vector.extract_strided_slice %272 {offsets = [0, 0], sizes = [16, 241], strides = [1, 1]} : vector<16x256xf32> to vector<16x241xf32>
    %304 = tpu.concatenate %302, %303 in 1 : vector<16x15xf32>, vector<16x241xf32> -> vector<16x256xf32>
    %305 = vector.shape_cast %20 : vector<1x256xi1> to vector<1x256xi1>
    %306 = vector.broadcast %305 : vector<1x256xi1> to vector<16x256xi1>
    %307 = arith.select %306, %304, %301 : vector<16x256xi1>, vector<16x256xf32>
    %308 = arith.truncf %307 : vector<16x256xf32> to vector<16x256xbf16>
    %309 = vector.extract_strided_slice %22 {offsets = [3, 0, 0], sizes = [1, 16, 16], strides = [1, 1, 1]} : vector<5x16x16xbf16> to vector<1x16x16xbf16>
    %310 = vector.shape_cast %309 : vector<1x16x16xbf16> to vector<16x16xbf16>
    %cst_70 = arith.constant dense<0.000000e+00> : vector<16x256xf32>
    %311 = tpu.matmul %310, %308, %cst_70 {dimension_numbers = #tpu.dot_dimension_numbers<[1], [0], [0], [1], [0, 0, 1, 1], [], []>} : vector<16x16xbf16>, vector<16x256xbf16>, vector<16x256xf32> -> vector<16x256xf32>
    %312 = arith.addf %298, %311 : vector<16x256xf32>
    %313 = vector.extract_strided_slice %272 {offsets = [0, 16], sizes = [16, 240], strides = [1, 1]} : vector<16x256xf32> to vector<16x240xf32>
    %314 = vector.extract_strided_slice %272 {offsets = [0, 0], sizes = [16, 16], strides = [1, 1]} : vector<16x256xf32> to vector<16x16xf32>
    %315 = tpu.concatenate %313, %314 in 1 : vector<16x240xf32>, vector<16x16xf32> -> vector<16x256xf32>
    %316 = arith.truncf %315 : vector<16x256xf32> to vector<16x256xbf16>
    %317 = vector.extract_strided_slice %22 {offsets = [4, 0, 0], sizes = [1, 16, 16], strides = [1, 1, 1]} : vector<5x16x16xbf16> to vector<1x16x16xbf16>
    %318 = vector.shape_cast %317 : vector<1x16x16xbf16> to vector<16x16xbf16>
    %cst_71 = arith.constant dense<0.000000e+00> : vector<16x256xf32>
    %319 = tpu.matmul %318, %316, %cst_71 {dimension_numbers = #tpu.dot_dimension_numbers<[1], [0], [0], [1], [0, 0, 1, 1], [], []>} : vector<16x16xbf16>, vector<16x256xbf16>, vector<16x256xf32> -> vector<16x256xf32>
    %320 = arith.addf %312, %319 : vector<16x256xf32>
    %321 = vector.broadcast %24 : vector<16x1xf32> to vector<16x256xf32>
    %322 = arith.addf %320, %321 : vector<16x256xf32>
    %323 = vector.shape_cast %322 : vector<16x256xf32> to vector<1x16x256xf32>
    %cst_72 = arith.constant dense<0.000000e+00> : vector<1xf32>
    %324 = vector.multi_reduction <add>, %323, %cst_72 [1, 2] : vector<1x16x256xf32> to vector<1xf32>
    %325 = vector.shape_cast %324 : vector<1xf32> to vector<1x1x1xf32>
    %326 = vector.extract %325[0, 0, 0] : f32 from vector<1x1x1xf32>
    %327 = vector.broadcast %326 : f32 to vector<1x1xf32>
    %cst_73 = arith.constant 4.096000e+03 : f32
    %328 = vector.broadcast %cst_73 : f32 to vector<1x1xf32>
    %329 = arith.divf %327, %328 : vector<1x1xf32>
    %330 = arith.mulf %322, %322 : vector<16x256xf32>
    %331 = vector.shape_cast %330 : vector<16x256xf32> to vector<1x16x256xf32>
    %cst_74 = arith.constant dense<0.000000e+00> : vector<1xf32>
    %332 = vector.multi_reduction <add>, %331, %cst_74 [1, 2] : vector<1x16x256xf32> to vector<1xf32>
    %333 = vector.shape_cast %332 : vector<1xf32> to vector<1x1x1xf32>
    %334 = vector.extract %333[0, 0, 0] : f32 from vector<1x1x1xf32>
    %335 = vector.broadcast %334 : f32 to vector<1x1xf32>
    %cst_75 = arith.constant 4.096000e+03 : f32
    %336 = vector.broadcast %cst_75 : f32 to vector<1x1xf32>
    %337 = arith.divf %335, %336 : vector<1x1xf32>
    %338 = arith.mulf %329, %329 : vector<1x1xf32>
    %339 = arith.subf %337, %338 : vector<1x1xf32>
    %340 = vector.broadcast %329 : vector<1x1xf32> to vector<16x256xf32>
    %341 = arith.subf %322, %340 : vector<16x256xf32>
    %cst_76 = arith.constant 9.99999974E-6 : f32
    %342 = vector.broadcast %cst_76 : f32 to vector<1x1xf32>
    %343 = arith.addf %339, %342 : vector<1x1xf32>
    %344 = math.rsqrt %343 : vector<1x1xf32>
    %345 = vector.broadcast %344 : vector<1x1xf32> to vector<16x256xf32>
    %346 = arith.mulf %341, %345 : vector<16x256xf32>
    %347 = arith.mulf %346, %27 : vector<16x256xf32>
    %348 = arith.addf %347, %28 : vector<16x256xf32>
    %cst_77 = arith.constant dense<0.000000e+00> : vector<16xf32>
    %349 = vector.multi_reduction <add>, %348, %cst_77 [1] : vector<16x256xf32> to vector<16xf32>
    %350 = vector.shape_cast %349 : vector<16xf32> to vector<16x1xf32>
    %cst_78 = arith.constant 2.560000e+02 : f32
    %351 = vector.broadcast %cst_78 : f32 to vector<16x1xf32>
    %352 = arith.divf %350, %351 : vector<16x1xf32>
    %c2 = arith.constant 2 : index
    %c0_79 = arith.constant 0 : index
    %c0_80 = arith.constant 0 : index
    %353 = vector.load %arg1[%c2, %c0_79, %c0_80] : memref<4x16x256xf32, #tpu.memory_space<vmem>>, vector<1x16x256xf32>
    %354 = vector.shape_cast %353 : vector<1x16x256xf32> to vector<16x256xf32>
    %355 = vector.extract_strided_slice %354 {offsets = [0, 240], sizes = [16, 16], strides = [1, 1]} : vector<16x256xf32> to vector<16x16xf32>
    %356 = vector.extract_strided_slice %354 {offsets = [0, 0], sizes = [16, 240], strides = [1, 1]} : vector<16x256xf32> to vector<16x240xf32>
    %357 = tpu.concatenate %355, %356 in 1 : vector<16x16xf32>, vector<16x240xf32> -> vector<16x256xf32>
    %358 = arith.truncf %357 : vector<16x256xf32> to vector<16x256xbf16>
    %359 = vector.extract_strided_slice %21 {offsets = [0, 0, 0], sizes = [1, 16, 16], strides = [1, 1, 1]} : vector<5x16x16xbf16> to vector<1x16x16xbf16>
    %360 = vector.shape_cast %359 : vector<1x16x16xbf16> to vector<16x16xbf16>
    %cst_81 = arith.constant dense<0.000000e+00> : vector<16x256xf32>
    %361 = tpu.matmul %360, %358, %cst_81 {dimension_numbers = #tpu.dot_dimension_numbers<[1], [0], [0], [1], [0, 0, 1, 1], [], []>} : vector<16x16xbf16>, vector<16x256xbf16>, vector<16x256xf32> -> vector<16x256xf32>
    %362 = vector.extract_strided_slice %354 {offsets = [0, 255], sizes = [16, 1], strides = [1, 1]} : vector<16x256xf32> to vector<16x1xf32>
    %363 = vector.extract_strided_slice %354 {offsets = [0, 0], sizes = [16, 255], strides = [1, 1]} : vector<16x256xf32> to vector<16x255xf32>
    %364 = tpu.concatenate %362, %363 in 1 : vector<16x1xf32>, vector<16x255xf32> -> vector<16x256xf32>
    %365 = vector.extract_strided_slice %354 {offsets = [0, 15], sizes = [16, 241], strides = [1, 1]} : vector<16x256xf32> to vector<16x241xf32>
    %366 = vector.extract_strided_slice %354 {offsets = [0, 0], sizes = [16, 15], strides = [1, 1]} : vector<16x256xf32> to vector<16x15xf32>
    %367 = tpu.concatenate %365, %366 in 1 : vector<16x241xf32>, vector<16x15xf32> -> vector<16x256xf32>
    %368 = vector.shape_cast %18 : vector<1x256xi1> to vector<1x256xi1>
    %369 = vector.broadcast %368 : vector<1x256xi1> to vector<16x256xi1>
    %370 = arith.select %369, %367, %364 : vector<16x256xi1>, vector<16x256xf32>
    %371 = arith.truncf %370 : vector<16x256xf32> to vector<16x256xbf16>
    %372 = vector.extract_strided_slice %21 {offsets = [1, 0, 0], sizes = [1, 16, 16], strides = [1, 1, 1]} : vector<5x16x16xbf16> to vector<1x16x16xbf16>
    %373 = vector.shape_cast %372 : vector<1x16x16xbf16> to vector<16x16xbf16>
    %cst_82 = arith.constant dense<0.000000e+00> : vector<16x256xf32>
    %374 = tpu.matmul %373, %371, %cst_82 {dimension_numbers = #tpu.dot_dimension_numbers<[1], [0], [0], [1], [0, 0, 1, 1], [], []>} : vector<16x16xbf16>, vector<16x256xbf16>, vector<16x256xf32> -> vector<16x256xf32>
    %375 = arith.addf %361, %374 : vector<16x256xf32>
    %376 = arith.truncf %354 : vector<16x256xf32> to vector<16x256xbf16>
    %377 = vector.extract_strided_slice %21 {offsets = [2, 0, 0], sizes = [1, 16, 16], strides = [1, 1, 1]} : vector<5x16x16xbf16> to vector<1x16x16xbf16>
    %378 = vector.shape_cast %377 : vector<1x16x16xbf16> to vector<16x16xbf16>
    %cst_83 = arith.constant dense<0.000000e+00> : vector<16x256xf32>
    %379 = tpu.matmul %378, %376, %cst_83 {dimension_numbers = #tpu.dot_dimension_numbers<[1], [0], [0], [1], [0, 0, 1, 1], [], []>} : vector<16x16xbf16>, vector<16x256xbf16>, vector<16x256xf32> -> vector<16x256xf32>
    %380 = arith.addf %375, %379 : vector<16x256xf32>
    %381 = vector.extract_strided_slice %354 {offsets = [0, 1], sizes = [16, 255], strides = [1, 1]} : vector<16x256xf32> to vector<16x255xf32>
    %382 = vector.extract_strided_slice %354 {offsets = [0, 0], sizes = [16, 1], strides = [1, 1]} : vector<16x256xf32> to vector<16x1xf32>
    %383 = tpu.concatenate %381, %382 in 1 : vector<16x255xf32>, vector<16x1xf32> -> vector<16x256xf32>
    %384 = vector.extract_strided_slice %354 {offsets = [0, 241], sizes = [16, 15], strides = [1, 1]} : vector<16x256xf32> to vector<16x15xf32>
    %385 = vector.extract_strided_slice %354 {offsets = [0, 0], sizes = [16, 241], strides = [1, 1]} : vector<16x256xf32> to vector<16x241xf32>
    %386 = tpu.concatenate %384, %385 in 1 : vector<16x15xf32>, vector<16x241xf32> -> vector<16x256xf32>
    %387 = vector.shape_cast %20 : vector<1x256xi1> to vector<1x256xi1>
    %388 = vector.broadcast %387 : vector<1x256xi1> to vector<16x256xi1>
    %389 = arith.select %388, %386, %383 : vector<16x256xi1>, vector<16x256xf32>
    %390 = arith.truncf %389 : vector<16x256xf32> to vector<16x256xbf16>
    %391 = vector.extract_strided_slice %21 {offsets = [3, 0, 0], sizes = [1, 16, 16], strides = [1, 1, 1]} : vector<5x16x16xbf16> to vector<1x16x16xbf16>
    %392 = vector.shape_cast %391 : vector<1x16x16xbf16> to vector<16x16xbf16>
    %cst_84 = arith.constant dense<0.000000e+00> : vector<16x256xf32>
    %393 = tpu.matmul %392, %390, %cst_84 {dimension_numbers = #tpu.dot_dimension_numbers<[1], [0], [0], [1], [0, 0, 1, 1], [], []>} : vector<16x16xbf16>, vector<16x256xbf16>, vector<16x256xf32> -> vector<16x256xf32>
    %394 = arith.addf %380, %393 : vector<16x256xf32>
    %395 = vector.extract_strided_slice %354 {offsets = [0, 16], sizes = [16, 240], strides = [1, 1]} : vector<16x256xf32> to vector<16x240xf32>
    %396 = vector.extract_strided_slice %354 {offsets = [0, 0], sizes = [16, 16], strides = [1, 1]} : vector<16x256xf32> to vector<16x16xf32>
    %397 = tpu.concatenate %395, %396 in 1 : vector<16x240xf32>, vector<16x16xf32> -> vector<16x256xf32>
    %398 = arith.truncf %397 : vector<16x256xf32> to vector<16x256xbf16>
    %399 = vector.extract_strided_slice %21 {offsets = [4, 0, 0], sizes = [1, 16, 16], strides = [1, 1, 1]} : vector<5x16x16xbf16> to vector<1x16x16xbf16>
    %400 = vector.shape_cast %399 : vector<1x16x16xbf16> to vector<16x16xbf16>
    %cst_85 = arith.constant dense<0.000000e+00> : vector<16x256xf32>
    %401 = tpu.matmul %400, %398, %cst_85 {dimension_numbers = #tpu.dot_dimension_numbers<[1], [0], [0], [1], [0, 0, 1, 1], [], []>} : vector<16x16xbf16>, vector<16x256xbf16>, vector<16x256xf32> -> vector<16x256xf32>
    %402 = arith.addf %394, %401 : vector<16x256xf32>
    %403 = vector.broadcast %23 : vector<16x1xf32> to vector<16x256xf32>
    %404 = arith.addf %402, %403 : vector<16x256xf32>
    %405 = vector.shape_cast %404 : vector<16x256xf32> to vector<1x16x256xf32>
    %cst_86 = arith.constant dense<0.000000e+00> : vector<1xf32>
    %406 = vector.multi_reduction <add>, %405, %cst_86 [1, 2] : vector<1x16x256xf32> to vector<1xf32>
    %407 = vector.shape_cast %406 : vector<1xf32> to vector<1x1x1xf32>
    %408 = vector.extract %407[0, 0, 0] : f32 from vector<1x1x1xf32>
    %409 = vector.broadcast %408 : f32 to vector<1x1xf32>
    %cst_87 = arith.constant 4.096000e+03 : f32
    %410 = vector.broadcast %cst_87 : f32 to vector<1x1xf32>
    %411 = arith.divf %409, %410 : vector<1x1xf32>
    %412 = arith.mulf %404, %404 : vector<16x256xf32>
    %413 = vector.shape_cast %412 : vector<16x256xf32> to vector<1x16x256xf32>
    %cst_88 = arith.constant dense<0.000000e+00> : vector<1xf32>
    %414 = vector.multi_reduction <add>, %413, %cst_88 [1, 2] : vector<1x16x256xf32> to vector<1xf32>
    %415 = vector.shape_cast %414 : vector<1xf32> to vector<1x1x1xf32>
    %416 = vector.extract %415[0, 0, 0] : f32 from vector<1x1x1xf32>
    %417 = vector.broadcast %416 : f32 to vector<1x1xf32>
    %cst_89 = arith.constant 4.096000e+03 : f32
    %418 = vector.broadcast %cst_89 : f32 to vector<1x1xf32>
    %419 = arith.divf %417, %418 : vector<1x1xf32>
    %420 = arith.mulf %411, %411 : vector<1x1xf32>
    %421 = arith.subf %419, %420 : vector<1x1xf32>
    %422 = vector.broadcast %411 : vector<1x1xf32> to vector<16x256xf32>
    %423 = arith.subf %404, %422 : vector<16x256xf32>
    %cst_90 = arith.constant 9.99999974E-6 : f32
    %424 = vector.broadcast %cst_90 : f32 to vector<1x1xf32>
    %425 = arith.addf %421, %424 : vector<1x1xf32>
    %426 = math.rsqrt %425 : vector<1x1xf32>
    %427 = vector.broadcast %426 : vector<1x1xf32> to vector<16x256xf32>
    %428 = arith.mulf %423, %427 : vector<16x256xf32>
    %429 = arith.mulf %428, %25 : vector<16x256xf32>
    %430 = arith.addf %429, %26 : vector<16x256xf32>
    %cst_91 = arith.constant 0.000000e+00 : f32
    %431 = vector.broadcast %cst_91 : f32 to vector<16x256xf32>
    %432 = arith.maximumf %430, %431 : vector<16x256xf32>
    %433 = vector.extract_strided_slice %432 {offsets = [0, 240], sizes = [16, 16], strides = [1, 1]} : vector<16x256xf32> to vector<16x16xf32>
    %434 = vector.extract_strided_slice %432 {offsets = [0, 0], sizes = [16, 240], strides = [1, 1]} : vector<16x256xf32> to vector<16x240xf32>
    %435 = tpu.concatenate %433, %434 in 1 : vector<16x16xf32>, vector<16x240xf32> -> vector<16x256xf32>
    %436 = arith.truncf %435 : vector<16x256xf32> to vector<16x256xbf16>
    %437 = vector.extract_strided_slice %22 {offsets = [0, 0, 0], sizes = [1, 16, 16], strides = [1, 1, 1]} : vector<5x16x16xbf16> to vector<1x16x16xbf16>
    %438 = vector.shape_cast %437 : vector<1x16x16xbf16> to vector<16x16xbf16>
    %cst_92 = arith.constant dense<0.000000e+00> : vector<16x256xf32>
    %439 = tpu.matmul %438, %436, %cst_92 {dimension_numbers = #tpu.dot_dimension_numbers<[1], [0], [0], [1], [0, 0, 1, 1], [], []>} : vector<16x16xbf16>, vector<16x256xbf16>, vector<16x256xf32> -> vector<16x256xf32>
    %440 = vector.extract_strided_slice %432 {offsets = [0, 255], sizes = [16, 1], strides = [1, 1]} : vector<16x256xf32> to vector<16x1xf32>
    %441 = vector.extract_strided_slice %432 {offsets = [0, 0], sizes = [16, 255], strides = [1, 1]} : vector<16x256xf32> to vector<16x255xf32>
    %442 = tpu.concatenate %440, %441 in 1 : vector<16x1xf32>, vector<16x255xf32> -> vector<16x256xf32>
    %443 = vector.extract_strided_slice %432 {offsets = [0, 15], sizes = [16, 241], strides = [1, 1]} : vector<16x256xf32> to vector<16x241xf32>
    %444 = vector.extract_strided_slice %432 {offsets = [0, 0], sizes = [16, 15], strides = [1, 1]} : vector<16x256xf32> to vector<16x15xf32>
    %445 = tpu.concatenate %443, %444 in 1 : vector<16x241xf32>, vector<16x15xf32> -> vector<16x256xf32>
    %446 = vector.shape_cast %18 : vector<1x256xi1> to vector<1x256xi1>
    %447 = vector.broadcast %446 : vector<1x256xi1> to vector<16x256xi1>
    %448 = arith.select %447, %445, %442 : vector<16x256xi1>, vector<16x256xf32>
    %449 = arith.truncf %448 : vector<16x256xf32> to vector<16x256xbf16>
    %450 = vector.extract_strided_slice %22 {offsets = [1, 0, 0], sizes = [1, 16, 16], strides = [1, 1, 1]} : vector<5x16x16xbf16> to vector<1x16x16xbf16>
    %451 = vector.shape_cast %450 : vector<1x16x16xbf16> to vector<16x16xbf16>
    %cst_93 = arith.constant dense<0.000000e+00> : vector<16x256xf32>
    %452 = tpu.matmul %451, %449, %cst_93 {dimension_numbers = #tpu.dot_dimension_numbers<[1], [0], [0], [1], [0, 0, 1, 1], [], []>} : vector<16x16xbf16>, vector<16x256xbf16>, vector<16x256xf32> -> vector<16x256xf32>
    %453 = arith.addf %439, %452 : vector<16x256xf32>
    %454 = arith.truncf %432 : vector<16x256xf32> to vector<16x256xbf16>
    %455 = vector.extract_strided_slice %22 {offsets = [2, 0, 0], sizes = [1, 16, 16], strides = [1, 1, 1]} : vector<5x16x16xbf16> to vector<1x16x16xbf16>
    %456 = vector.shape_cast %455 : vector<1x16x16xbf16> to vector<16x16xbf16>
    %cst_94 = arith.constant dense<0.000000e+00> : vector<16x256xf32>
    %457 = tpu.matmul %456, %454, %cst_94 {dimension_numbers = #tpu.dot_dimension_numbers<[1], [0], [0], [1], [0, 0, 1, 1], [], []>} : vector<16x16xbf16>, vector<16x256xbf16>, vector<16x256xf32> -> vector<16x256xf32>
    %458 = arith.addf %453, %457 : vector<16x256xf32>
    %459 = vector.extract_strided_slice %432 {offsets = [0, 1], sizes = [16, 255], strides = [1, 1]} : vector<16x256xf32> to vector<16x255xf32>
    %460 = vector.extract_strided_slice %432 {offsets = [0, 0], sizes = [16, 1], strides = [1, 1]} : vector<16x256xf32> to vector<16x1xf32>
    %461 = tpu.concatenate %459, %460 in 1 : vector<16x255xf32>, vector<16x1xf32> -> vector<16x256xf32>
    %462 = vector.extract_strided_slice %432 {offsets = [0, 241], sizes = [16, 15], strides = [1, 1]} : vector<16x256xf32> to vector<16x15xf32>
    %463 = vector.extract_strided_slice %432 {offsets = [0, 0], sizes = [16, 241], strides = [1, 1]} : vector<16x256xf32> to vector<16x241xf32>
    %464 = tpu.concatenate %462, %463 in 1 : vector<16x15xf32>, vector<16x241xf32> -> vector<16x256xf32>
    %465 = vector.shape_cast %20 : vector<1x256xi1> to vector<1x256xi1>
    %466 = vector.broadcast %465 : vector<1x256xi1> to vector<16x256xi1>
    %467 = arith.select %466, %464, %461 : vector<16x256xi1>, vector<16x256xf32>
    %468 = arith.truncf %467 : vector<16x256xf32> to vector<16x256xbf16>
    %469 = vector.extract_strided_slice %22 {offsets = [3, 0, 0], sizes = [1, 16, 16], strides = [1, 1, 1]} : vector<5x16x16xbf16> to vector<1x16x16xbf16>
    %470 = vector.shape_cast %469 : vector<1x16x16xbf16> to vector<16x16xbf16>
    %cst_95 = arith.constant dense<0.000000e+00> : vector<16x256xf32>
    %471 = tpu.matmul %470, %468, %cst_95 {dimension_numbers = #tpu.dot_dimension_numbers<[1], [0], [0], [1], [0, 0, 1, 1], [], []>} : vector<16x16xbf16>, vector<16x256xbf16>, vector<16x256xf32> -> vector<16x256xf32>
    %472 = arith.addf %458, %471 : vector<16x256xf32>
    %473 = vector.extract_strided_slice %432 {offsets = [0, 16], sizes = [16, 240], strides = [1, 1]} : vector<16x256xf32> to vector<16x240xf32>
    %474 = vector.extract_strided_slice %432 {offsets = [0, 0], sizes = [16, 16], strides = [1, 1]} : vector<16x256xf32> to vector<16x16xf32>
    %475 = tpu.concatenate %473, %474 in 1 : vector<16x240xf32>, vector<16x16xf32> -> vector<16x256xf32>
    %476 = arith.truncf %475 : vector<16x256xf32> to vector<16x256xbf16>
    %477 = vector.extract_strided_slice %22 {offsets = [4, 0, 0], sizes = [1, 16, 16], strides = [1, 1, 1]} : vector<5x16x16xbf16> to vector<1x16x16xbf16>
    %478 = vector.shape_cast %477 : vector<1x16x16xbf16> to vector<16x16xbf16>
    %cst_96 = arith.constant dense<0.000000e+00> : vector<16x256xf32>
    %479 = tpu.matmul %478, %476, %cst_96 {dimension_numbers = #tpu.dot_dimension_numbers<[1], [0], [0], [1], [0, 0, 1, 1], [], []>} : vector<16x16xbf16>, vector<16x256xbf16>, vector<16x256xf32> -> vector<16x256xf32>
    %480 = arith.addf %472, %479 : vector<16x256xf32>
    %481 = vector.broadcast %24 : vector<16x1xf32> to vector<16x256xf32>
    %482 = arith.addf %480, %481 : vector<16x256xf32>
    %483 = vector.shape_cast %482 : vector<16x256xf32> to vector<1x16x256xf32>
    %cst_97 = arith.constant dense<0.000000e+00> : vector<1xf32>
    %484 = vector.multi_reduction <add>, %483, %cst_97 [1, 2] : vector<1x16x256xf32> to vector<1xf32>
    %485 = vector.shape_cast %484 : vector<1xf32> to vector<1x1x1xf32>
    %486 = vector.extract %485[0, 0, 0] : f32 from vector<1x1x1xf32>
    %487 = vector.broadcast %486 : f32 to vector<1x1xf32>
    %cst_98 = arith.constant 4.096000e+03 : f32
    %488 = vector.broadcast %cst_98 : f32 to vector<1x1xf32>
    %489 = arith.divf %487, %488 : vector<1x1xf32>
    %490 = arith.mulf %482, %482 : vector<16x256xf32>
    %491 = vector.shape_cast %490 : vector<16x256xf32> to vector<1x16x256xf32>
    %cst_99 = arith.constant dense<0.000000e+00> : vector<1xf32>
    %492 = vector.multi_reduction <add>, %491, %cst_99 [1, 2] : vector<1x16x256xf32> to vector<1xf32>
    %493 = vector.shape_cast %492 : vector<1xf32> to vector<1x1x1xf32>
    %494 = vector.extract %493[0, 0, 0] : f32 from vector<1x1x1xf32>
    %495 = vector.broadcast %494 : f32 to vector<1x1xf32>
    %cst_100 = arith.constant 4.096000e+03 : f32
    %496 = vector.broadcast %cst_100 : f32 to vector<1x1xf32>
    %497 = arith.divf %495, %496 : vector<1x1xf32>
    %498 = arith.mulf %489, %489 : vector<1x1xf32>
    %499 = arith.subf %497, %498 : vector<1x1xf32>
    %500 = vector.broadcast %489 : vector<1x1xf32> to vector<16x256xf32>
    %501 = arith.subf %482, %500 : vector<16x256xf32>
    %cst_101 = arith.constant 9.99999974E-6 : f32
    %502 = vector.broadcast %cst_101 : f32 to vector<1x1xf32>
    %503 = arith.addf %499, %502 : vector<1x1xf32>
    %504 = math.rsqrt %503 : vector<1x1xf32>
    %505 = vector.broadcast %504 : vector<1x1xf32> to vector<16x256xf32>
    %506 = arith.mulf %501, %505 : vector<16x256xf32>
    %507 = arith.mulf %506, %27 : vector<16x256xf32>
    %508 = arith.addf %507, %28 : vector<16x256xf32>
    %cst_102 = arith.constant dense<0.000000e+00> : vector<16xf32>
    %509 = vector.multi_reduction <add>, %508, %cst_102 [1] : vector<16x256xf32> to vector<16xf32>
    %510 = vector.shape_cast %509 : vector<16xf32> to vector<16x1xf32>
    %cst_103 = arith.constant 2.560000e+02 : f32
    %511 = vector.broadcast %cst_103 : f32 to vector<16x1xf32>
    %512 = arith.divf %510, %511 : vector<16x1xf32>
    %c3 = arith.constant 3 : index
    %c0_104 = arith.constant 0 : index
    %c0_105 = arith.constant 0 : index
    %513 = vector.load %arg1[%c3, %c0_104, %c0_105] : memref<4x16x256xf32, #tpu.memory_space<vmem>>, vector<1x16x256xf32>
    %514 = vector.shape_cast %513 : vector<1x16x256xf32> to vector<16x256xf32>
    %515 = vector.extract_strided_slice %514 {offsets = [0, 240], sizes = [16, 16], strides = [1, 1]} : vector<16x256xf32> to vector<16x16xf32>
    %516 = vector.extract_strided_slice %514 {offsets = [0, 0], sizes = [16, 240], strides = [1, 1]} : vector<16x256xf32> to vector<16x240xf32>
    %517 = tpu.concatenate %515, %516 in 1 : vector<16x16xf32>, vector<16x240xf32> -> vector<16x256xf32>
    %518 = arith.truncf %517 : vector<16x256xf32> to vector<16x256xbf16>
    %519 = vector.extract_strided_slice %21 {offsets = [0, 0, 0], sizes = [1, 16, 16], strides = [1, 1, 1]} : vector<5x16x16xbf16> to vector<1x16x16xbf16>
    %520 = vector.shape_cast %519 : vector<1x16x16xbf16> to vector<16x16xbf16>
    %cst_106 = arith.constant dense<0.000000e+00> : vector<16x256xf32>
    %521 = tpu.matmul %520, %518, %cst_106 {dimension_numbers = #tpu.dot_dimension_numbers<[1], [0], [0], [1], [0, 0, 1, 1], [], []>} : vector<16x16xbf16>, vector<16x256xbf16>, vector<16x256xf32> -> vector<16x256xf32>
    %522 = vector.extract_strided_slice %514 {offsets = [0, 255], sizes = [16, 1], strides = [1, 1]} : vector<16x256xf32> to vector<16x1xf32>
    %523 = vector.extract_strided_slice %514 {offsets = [0, 0], sizes = [16, 255], strides = [1, 1]} : vector<16x256xf32> to vector<16x255xf32>
    %524 = tpu.concatenate %522, %523 in 1 : vector<16x1xf32>, vector<16x255xf32> -> vector<16x256xf32>
    %525 = vector.extract_strided_slice %514 {offsets = [0, 15], sizes = [16, 241], strides = [1, 1]} : vector<16x256xf32> to vector<16x241xf32>
    %526 = vector.extract_strided_slice %514 {offsets = [0, 0], sizes = [16, 15], strides = [1, 1]} : vector<16x256xf32> to vector<16x15xf32>
    %527 = tpu.concatenate %525, %526 in 1 : vector<16x241xf32>, vector<16x15xf32> -> vector<16x256xf32>
    %528 = vector.shape_cast %18 : vector<1x256xi1> to vector<1x256xi1>
    %529 = vector.broadcast %528 : vector<1x256xi1> to vector<16x256xi1>
    %530 = arith.select %529, %527, %524 : vector<16x256xi1>, vector<16x256xf32>
    %531 = arith.truncf %530 : vector<16x256xf32> to vector<16x256xbf16>
    %532 = vector.extract_strided_slice %21 {offsets = [1, 0, 0], sizes = [1, 16, 16], strides = [1, 1, 1]} : vector<5x16x16xbf16> to vector<1x16x16xbf16>
    %533 = vector.shape_cast %532 : vector<1x16x16xbf16> to vector<16x16xbf16>
    %cst_107 = arith.constant dense<0.000000e+00> : vector<16x256xf32>
    %534 = tpu.matmul %533, %531, %cst_107 {dimension_numbers = #tpu.dot_dimension_numbers<[1], [0], [0], [1], [0, 0, 1, 1], [], []>} : vector<16x16xbf16>, vector<16x256xbf16>, vector<16x256xf32> -> vector<16x256xf32>
    %535 = arith.addf %521, %534 : vector<16x256xf32>
    %536 = arith.truncf %514 : vector<16x256xf32> to vector<16x256xbf16>
    %537 = vector.extract_strided_slice %21 {offsets = [2, 0, 0], sizes = [1, 16, 16], strides = [1, 1, 1]} : vector<5x16x16xbf16> to vector<1x16x16xbf16>
    %538 = vector.shape_cast %537 : vector<1x16x16xbf16> to vector<16x16xbf16>
    %cst_108 = arith.constant dense<0.000000e+00> : vector<16x256xf32>
    %539 = tpu.matmul %538, %536, %cst_108 {dimension_numbers = #tpu.dot_dimension_numbers<[1], [0], [0], [1], [0, 0, 1, 1], [], []>} : vector<16x16xbf16>, vector<16x256xbf16>, vector<16x256xf32> -> vector<16x256xf32>
    %540 = arith.addf %535, %539 : vector<16x256xf32>
    %541 = vector.extract_strided_slice %514 {offsets = [0, 1], sizes = [16, 255], strides = [1, 1]} : vector<16x256xf32> to vector<16x255xf32>
    %542 = vector.extract_strided_slice %514 {offsets = [0, 0], sizes = [16, 1], strides = [1, 1]} : vector<16x256xf32> to vector<16x1xf32>
    %543 = tpu.concatenate %541, %542 in 1 : vector<16x255xf32>, vector<16x1xf32> -> vector<16x256xf32>
    %544 = vector.extract_strided_slice %514 {offsets = [0, 241], sizes = [16, 15], strides = [1, 1]} : vector<16x256xf32> to vector<16x15xf32>
    %545 = vector.extract_strided_slice %514 {offsets = [0, 0], sizes = [16, 241], strides = [1, 1]} : vector<16x256xf32> to vector<16x241xf32>
    %546 = tpu.concatenate %544, %545 in 1 : vector<16x15xf32>, vector<16x241xf32> -> vector<16x256xf32>
    %547 = vector.shape_cast %20 : vector<1x256xi1> to vector<1x256xi1>
    %548 = vector.broadcast %547 : vector<1x256xi1> to vector<16x256xi1>
    %549 = arith.select %548, %546, %543 : vector<16x256xi1>, vector<16x256xf32>
    %550 = arith.truncf %549 : vector<16x256xf32> to vector<16x256xbf16>
    %551 = vector.extract_strided_slice %21 {offsets = [3, 0, 0], sizes = [1, 16, 16], strides = [1, 1, 1]} : vector<5x16x16xbf16> to vector<1x16x16xbf16>
    %552 = vector.shape_cast %551 : vector<1x16x16xbf16> to vector<16x16xbf16>
    %cst_109 = arith.constant dense<0.000000e+00> : vector<16x256xf32>
    %553 = tpu.matmul %552, %550, %cst_109 {dimension_numbers = #tpu.dot_dimension_numbers<[1], [0], [0], [1], [0, 0, 1, 1], [], []>} : vector<16x16xbf16>, vector<16x256xbf16>, vector<16x256xf32> -> vector<16x256xf32>
    %554 = arith.addf %540, %553 : vector<16x256xf32>
    %555 = vector.extract_strided_slice %514 {offsets = [0, 16], sizes = [16, 240], strides = [1, 1]} : vector<16x256xf32> to vector<16x240xf32>
    %556 = vector.extract_strided_slice %514 {offsets = [0, 0], sizes = [16, 16], strides = [1, 1]} : vector<16x256xf32> to vector<16x16xf32>
    %557 = tpu.concatenate %555, %556 in 1 : vector<16x240xf32>, vector<16x16xf32> -> vector<16x256xf32>
    %558 = arith.truncf %557 : vector<16x256xf32> to vector<16x256xbf16>
    %559 = vector.extract_strided_slice %21 {offsets = [4, 0, 0], sizes = [1, 16, 16], strides = [1, 1, 1]} : vector<5x16x16xbf16> to vector<1x16x16xbf16>
    %560 = vector.shape_cast %559 : vector<1x16x16xbf16> to vector<16x16xbf16>
    %cst_110 = arith.constant dense<0.000000e+00> : vector<16x256xf32>
    %561 = tpu.matmul %560, %558, %cst_110 {dimension_numbers = #tpu.dot_dimension_numbers<[1], [0], [0], [1], [0, 0, 1, 1], [], []>} : vector<16x16xbf16>, vector<16x256xbf16>, vector<16x256xf32> -> vector<16x256xf32>
    %562 = arith.addf %554, %561 : vector<16x256xf32>
    %563 = vector.broadcast %23 : vector<16x1xf32> to vector<16x256xf32>
    %564 = arith.addf %562, %563 : vector<16x256xf32>
    %565 = vector.shape_cast %564 : vector<16x256xf32> to vector<1x16x256xf32>
    %cst_111 = arith.constant dense<0.000000e+00> : vector<1xf32>
    %566 = vector.multi_reduction <add>, %565, %cst_111 [1, 2] : vector<1x16x256xf32> to vector<1xf32>
    %567 = vector.shape_cast %566 : vector<1xf32> to vector<1x1x1xf32>
    %568 = vector.extract %567[0, 0, 0] : f32 from vector<1x1x1xf32>
    %569 = vector.broadcast %568 : f32 to vector<1x1xf32>
    %cst_112 = arith.constant 4.096000e+03 : f32
    %570 = vector.broadcast %cst_112 : f32 to vector<1x1xf32>
    %571 = arith.divf %569, %570 : vector<1x1xf32>
    %572 = arith.mulf %564, %564 : vector<16x256xf32>
    %573 = vector.shape_cast %572 : vector<16x256xf32> to vector<1x16x256xf32>
    %cst_113 = arith.constant dense<0.000000e+00> : vector<1xf32>
    %574 = vector.multi_reduction <add>, %573, %cst_113 [1, 2] : vector<1x16x256xf32> to vector<1xf32>
    %575 = vector.shape_cast %574 : vector<1xf32> to vector<1x1x1xf32>
    %576 = vector.extract %575[0, 0, 0] : f32 from vector<1x1x1xf32>
    %577 = vector.broadcast %576 : f32 to vector<1x1xf32>
    %cst_114 = arith.constant 4.096000e+03 : f32
    %578 = vector.broadcast %cst_114 : f32 to vector<1x1xf32>
    %579 = arith.divf %577, %578 : vector<1x1xf32>
    %580 = arith.mulf %571, %571 : vector<1x1xf32>
    %581 = arith.subf %579, %580 : vector<1x1xf32>
    %582 = vector.broadcast %571 : vector<1x1xf32> to vector<16x256xf32>
    %583 = arith.subf %564, %582 : vector<16x256xf32>
    %cst_115 = arith.constant 9.99999974E-6 : f32
    %584 = vector.broadcast %cst_115 : f32 to vector<1x1xf32>
    %585 = arith.addf %581, %584 : vector<1x1xf32>
    %586 = math.rsqrt %585 : vector<1x1xf32>
    %587 = vector.broadcast %586 : vector<1x1xf32> to vector<16x256xf32>
    %588 = arith.mulf %583, %587 : vector<16x256xf32>
    %589 = arith.mulf %588, %25 : vector<16x256xf32>
    %590 = arith.addf %589, %26 : vector<16x256xf32>
    %cst_116 = arith.constant 0.000000e+00 : f32
    %591 = vector.broadcast %cst_116 : f32 to vector<16x256xf32>
    %592 = arith.maximumf %590, %591 : vector<16x256xf32>
    %593 = vector.extract_strided_slice %592 {offsets = [0, 240], sizes = [16, 16], strides = [1, 1]} : vector<16x256xf32> to vector<16x16xf32>
    %594 = vector.extract_strided_slice %592 {offsets = [0, 0], sizes = [16, 240], strides = [1, 1]} : vector<16x256xf32> to vector<16x240xf32>
    %595 = tpu.concatenate %593, %594 in 1 : vector<16x16xf32>, vector<16x240xf32> -> vector<16x256xf32>
    %596 = arith.truncf %595 : vector<16x256xf32> to vector<16x256xbf16>
    %597 = vector.extract_strided_slice %22 {offsets = [0, 0, 0], sizes = [1, 16, 16], strides = [1, 1, 1]} : vector<5x16x16xbf16> to vector<1x16x16xbf16>
    %598 = vector.shape_cast %597 : vector<1x16x16xbf16> to vector<16x16xbf16>
    %cst_117 = arith.constant dense<0.000000e+00> : vector<16x256xf32>
    %599 = tpu.matmul %598, %596, %cst_117 {dimension_numbers = #tpu.dot_dimension_numbers<[1], [0], [0], [1], [0, 0, 1, 1], [], []>} : vector<16x16xbf16>, vector<16x256xbf16>, vector<16x256xf32> -> vector<16x256xf32>
    %600 = vector.extract_strided_slice %592 {offsets = [0, 255], sizes = [16, 1], strides = [1, 1]} : vector<16x256xf32> to vector<16x1xf32>
    %601 = vector.extract_strided_slice %592 {offsets = [0, 0], sizes = [16, 255], strides = [1, 1]} : vector<16x256xf32> to vector<16x255xf32>
    %602 = tpu.concatenate %600, %601 in 1 : vector<16x1xf32>, vector<16x255xf32> -> vector<16x256xf32>
    %603 = vector.extract_strided_slice %592 {offsets = [0, 15], sizes = [16, 241], strides = [1, 1]} : vector<16x256xf32> to vector<16x241xf32>
    %604 = vector.extract_strided_slice %592 {offsets = [0, 0], sizes = [16, 15], strides = [1, 1]} : vector<16x256xf32> to vector<16x15xf32>
    %605 = tpu.concatenate %603, %604 in 1 : vector<16x241xf32>, vector<16x15xf32> -> vector<16x256xf32>
    %606 = vector.shape_cast %18 : vector<1x256xi1> to vector<1x256xi1>
    %607 = vector.broadcast %606 : vector<1x256xi1> to vector<16x256xi1>
    %608 = arith.select %607, %605, %602 : vector<16x256xi1>, vector<16x256xf32>
    %609 = arith.truncf %608 : vector<16x256xf32> to vector<16x256xbf16>
    %610 = vector.extract_strided_slice %22 {offsets = [1, 0, 0], sizes = [1, 16, 16], strides = [1, 1, 1]} : vector<5x16x16xbf16> to vector<1x16x16xbf16>
    %611 = vector.shape_cast %610 : vector<1x16x16xbf16> to vector<16x16xbf16>
    %cst_118 = arith.constant dense<0.000000e+00> : vector<16x256xf32>
    %612 = tpu.matmul %611, %609, %cst_118 {dimension_numbers = #tpu.dot_dimension_numbers<[1], [0], [0], [1], [0, 0, 1, 1], [], []>} : vector<16x16xbf16>, vector<16x256xbf16>, vector<16x256xf32> -> vector<16x256xf32>
    %613 = arith.addf %599, %612 : vector<16x256xf32>
    %614 = arith.truncf %592 : vector<16x256xf32> to vector<16x256xbf16>
    %615 = vector.extract_strided_slice %22 {offsets = [2, 0, 0], sizes = [1, 16, 16], strides = [1, 1, 1]} : vector<5x16x16xbf16> to vector<1x16x16xbf16>
    %616 = vector.shape_cast %615 : vector<1x16x16xbf16> to vector<16x16xbf16>
    %cst_119 = arith.constant dense<0.000000e+00> : vector<16x256xf32>
    %617 = tpu.matmul %616, %614, %cst_119 {dimension_numbers = #tpu.dot_dimension_numbers<[1], [0], [0], [1], [0, 0, 1, 1], [], []>} : vector<16x16xbf16>, vector<16x256xbf16>, vector<16x256xf32> -> vector<16x256xf32>
    %618 = arith.addf %613, %617 : vector<16x256xf32>
    %619 = vector.extract_strided_slice %592 {offsets = [0, 1], sizes = [16, 255], strides = [1, 1]} : vector<16x256xf32> to vector<16x255xf32>
    %620 = vector.extract_strided_slice %592 {offsets = [0, 0], sizes = [16, 1], strides = [1, 1]} : vector<16x256xf32> to vector<16x1xf32>
    %621 = tpu.concatenate %619, %620 in 1 : vector<16x255xf32>, vector<16x1xf32> -> vector<16x256xf32>
    %622 = vector.extract_strided_slice %592 {offsets = [0, 241], sizes = [16, 15], strides = [1, 1]} : vector<16x256xf32> to vector<16x15xf32>
    %623 = vector.extract_strided_slice %592 {offsets = [0, 0], sizes = [16, 241], strides = [1, 1]} : vector<16x256xf32> to vector<16x241xf32>
    %624 = tpu.concatenate %622, %623 in 1 : vector<16x15xf32>, vector<16x241xf32> -> vector<16x256xf32>
    %625 = vector.shape_cast %20 : vector<1x256xi1> to vector<1x256xi1>
    %626 = vector.broadcast %625 : vector<1x256xi1> to vector<16x256xi1>
    %627 = arith.select %626, %624, %621 : vector<16x256xi1>, vector<16x256xf32>
    %628 = arith.truncf %627 : vector<16x256xf32> to vector<16x256xbf16>
    %629 = vector.extract_strided_slice %22 {offsets = [3, 0, 0], sizes = [1, 16, 16], strides = [1, 1, 1]} : vector<5x16x16xbf16> to vector<1x16x16xbf16>
    %630 = vector.shape_cast %629 : vector<1x16x16xbf16> to vector<16x16xbf16>
    %cst_120 = arith.constant dense<0.000000e+00> : vector<16x256xf32>
    %631 = tpu.matmul %630, %628, %cst_120 {dimension_numbers = #tpu.dot_dimension_numbers<[1], [0], [0], [1], [0, 0, 1, 1], [], []>} : vector<16x16xbf16>, vector<16x256xbf16>, vector<16x256xf32> -> vector<16x256xf32>
    %632 = arith.addf %618, %631 : vector<16x256xf32>
    %633 = vector.extract_strided_slice %592 {offsets = [0, 16], sizes = [16, 240], strides = [1, 1]} : vector<16x256xf32> to vector<16x240xf32>
    %634 = vector.extract_strided_slice %592 {offsets = [0, 0], sizes = [16, 16], strides = [1, 1]} : vector<16x256xf32> to vector<16x16xf32>
    %635 = tpu.concatenate %633, %634 in 1 : vector<16x240xf32>, vector<16x16xf32> -> vector<16x256xf32>
    %636 = arith.truncf %635 : vector<16x256xf32> to vector<16x256xbf16>
    %637 = vector.extract_strided_slice %22 {offsets = [4, 0, 0], sizes = [1, 16, 16], strides = [1, 1, 1]} : vector<5x16x16xbf16> to vector<1x16x16xbf16>
    %638 = vector.shape_cast %637 : vector<1x16x16xbf16> to vector<16x16xbf16>
    %cst_121 = arith.constant dense<0.000000e+00> : vector<16x256xf32>
    %639 = tpu.matmul %638, %636, %cst_121 {dimension_numbers = #tpu.dot_dimension_numbers<[1], [0], [0], [1], [0, 0, 1, 1], [], []>} : vector<16x16xbf16>, vector<16x256xbf16>, vector<16x256xf32> -> vector<16x256xf32>
    %640 = arith.addf %632, %639 : vector<16x256xf32>
    %641 = vector.broadcast %24 : vector<16x1xf32> to vector<16x256xf32>
    %642 = arith.addf %640, %641 : vector<16x256xf32>
    %643 = vector.shape_cast %642 : vector<16x256xf32> to vector<1x16x256xf32>
    %cst_122 = arith.constant dense<0.000000e+00> : vector<1xf32>
    %644 = vector.multi_reduction <add>, %643, %cst_122 [1, 2] : vector<1x16x256xf32> to vector<1xf32>
    %645 = vector.shape_cast %644 : vector<1xf32> to vector<1x1x1xf32>
    %646 = vector.extract %645[0, 0, 0] : f32 from vector<1x1x1xf32>
    %647 = vector.broadcast %646 : f32 to vector<1x1xf32>
    %cst_123 = arith.constant 4.096000e+03 : f32
    %648 = vector.broadcast %cst_123 : f32 to vector<1x1xf32>
    %649 = arith.divf %647, %648 : vector<1x1xf32>
    %650 = arith.mulf %642, %642 : vector<16x256xf32>
    %651 = vector.shape_cast %650 : vector<16x256xf32> to vector<1x16x256xf32>
    %cst_124 = arith.constant dense<0.000000e+00> : vector<1xf32>
    %652 = vector.multi_reduction <add>, %651, %cst_124 [1, 2] : vector<1x16x256xf32> to vector<1xf32>
    %653 = vector.shape_cast %652 : vector<1xf32> to vector<1x1x1xf32>
    %654 = vector.extract %653[0, 0, 0] : f32 from vector<1x1x1xf32>
    %655 = vector.broadcast %654 : f32 to vector<1x1xf32>
    %cst_125 = arith.constant 4.096000e+03 : f32
    %656 = vector.broadcast %cst_125 : f32 to vector<1x1xf32>
    %657 = arith.divf %655, %656 : vector<1x1xf32>
    %658 = arith.mulf %649, %649 : vector<1x1xf32>
    %659 = arith.subf %657, %658 : vector<1x1xf32>
    %660 = vector.broadcast %649 : vector<1x1xf32> to vector<16x256xf32>
    %661 = arith.subf %642, %660 : vector<16x256xf32>
    %cst_126 = arith.constant 9.99999974E-6 : f32
    %662 = vector.broadcast %cst_126 : f32 to vector<1x1xf32>
    %663 = arith.addf %659, %662 : vector<1x1xf32>
    %664 = math.rsqrt %663 : vector<1x1xf32>
    %665 = vector.broadcast %664 : vector<1x1xf32> to vector<16x256xf32>
    %666 = arith.mulf %661, %665 : vector<16x256xf32>
    %667 = arith.mulf %666, %27 : vector<16x256xf32>
    %668 = arith.addf %667, %28 : vector<16x256xf32>
    %cst_127 = arith.constant dense<0.000000e+00> : vector<16xf32>
    %669 = vector.multi_reduction <add>, %668, %cst_127 [1] : vector<16x256xf32> to vector<16xf32>
    %670 = vector.shape_cast %669 : vector<16xf32> to vector<16x1xf32>
    %cst_128 = arith.constant 2.560000e+02 : f32
    %671 = vector.broadcast %cst_128 : f32 to vector<16x1xf32>
    %672 = arith.divf %670, %671 : vector<16x1xf32>
    %673 = tpu.concatenate %192, %352, %512, %672 in 1 : vector<16x1xf32>, vector<16x1xf32>, vector<16x1xf32>, vector<16x1xf32> -> vector<16x4xf32>
    %cst_129 = arith.constant dense<0.000000e+00> : vector<8x4xf32>
    %674 = tpu.matmul %29, %673, %cst_129 {dimension_numbers = #tpu.dot_dimension_numbers<[1], [0], [0], [1], [0, 0, 1, 1], [], []>} : vector<8x16xf32>, vector<16x4xf32>, vector<8x4xf32> -> vector<8x4xf32>
    %675 = vector.broadcast %30 : vector<8x1xf32> to vector<8x4xf32>
    %676 = arith.addf %674, %675 : vector<8x4xf32>
    %cst_130 = arith.constant 0.000000e+00 : f32
    %677 = vector.broadcast %cst_130 : f32 to vector<8x4xf32>
    %678 = arith.maximumf %676, %677 : vector<8x4xf32>
    %cst_131 = arith.constant dense<0.000000e+00> : vector<16x4xf32>
    %679 = tpu.matmul %31, %678, %cst_131 {dimension_numbers = #tpu.dot_dimension_numbers<[1], [0], [0], [1], [0, 0, 1, 1], [], []>} : vector<16x8xf32>, vector<8x4xf32>, vector<16x4xf32> -> vector<16x4xf32>
    %680 = vector.broadcast %32 : vector<16x1xf32> to vector<16x4xf32>
    %681 = arith.addf %679, %680 : vector<16x4xf32>
    %cst_132 = arith.constant 5.000000e-01 : f32
    %682 = vector.broadcast %cst_132 : f32 to vector<16x4xf32>
    %683 = arith.mulf %682, %681 : vector<16x4xf32>
    %684 = math.tanh %683 : vector<16x4xf32>
    %cst_133 = arith.constant 1.000000e+00 : f32
    %685 = vector.broadcast %cst_133 : f32 to vector<16x4xf32>
    %686 = arith.addf %684, %685 : vector<16x4xf32>
    %cst_134 = arith.constant 5.000000e-01 : f32
    %687 = vector.broadcast %cst_134 : f32 to vector<16x4xf32>
    %688 = arith.mulf %687, %686 : vector<16x4xf32>
    %689 = vector.extract_strided_slice %688 {offsets = [0, 0], sizes = [16, 1], strides = [1, 1]} : vector<16x4xf32> to vector<16x1xf32>
    %690 = vector.broadcast %689 : vector<16x1xf32> to vector<16x256xf32>
    %691 = arith.mulf %188, %690 : vector<16x256xf32>
    %692 = arith.addf %691, %34 : vector<16x256xf32>
    %cst_135 = arith.constant 0.000000e+00 : f32
    %693 = vector.broadcast %cst_135 : f32 to vector<16x256xf32>
    %694 = arith.maximumf %692, %693 : vector<16x256xf32>
    %c0_136 = arith.constant 0 : index
    %c0_137 = arith.constant 0 : index
    %c0_138 = arith.constant 0 : index
    %695 = vector.load %arg14[%c0_136, %c0_137, %c0_138] : memref<4x16x256xf32, #tpu.memory_space<vmem>>, vector<1x16x256xf32>
    %696 = vector.shape_cast %695 : vector<1x16x256xf32> to vector<16x256xf32>
    %697 = vector.shape_cast %694 : vector<16x256xf32> to vector<1x16x256xf32>
    tpu.vector_store %arg14[%c0_136, %c0_137, %c0_138], %697 {strides = array<i32>} : memref<4x16x256xf32, #tpu.memory_space<vmem>>, vector<1x16x256xf32>,
    %698 = vector.extract_strided_slice %688 {offsets = [0, 1], sizes = [16, 1], strides = [1, 1]} : vector<16x4xf32> to vector<16x1xf32>
    %699 = vector.broadcast %698 : vector<16x1xf32> to vector<16x256xf32>
    %700 = arith.mulf %348, %699 : vector<16x256xf32>
    %701 = arith.addf %700, %194 : vector<16x256xf32>
    %cst_139 = arith.constant 0.000000e+00 : f32
    %702 = vector.broadcast %cst_139 : f32 to vector<16x256xf32>
    %703 = arith.maximumf %701, %702 : vector<16x256xf32>
    %c1_140 = arith.constant 1 : index
    %c0_141 = arith.constant 0 : index
    %c0_142 = arith.constant 0 : index
    %704 = vector.load %arg14[%c1_140, %c0_141, %c0_142] : memref<4x16x256xf32, #tpu.memory_space<vmem>>, vector<1x16x256xf32>
    %705 = vector.shape_cast %704 : vector<1x16x256xf32> to vector<16x256xf32>
    %706 = vector.shape_cast %703 : vector<16x256xf32> to vector<1x16x256xf32>
    tpu.vector_store %arg14[%c1_140, %c0_141, %c0_142], %706 {strides = array<i32>} : memref<4x16x256xf32, #tpu.memory_space<vmem>>, vector<1x16x256xf32>,
    %707 = vector.extract_strided_slice %688 {offsets = [0, 2], sizes = [16, 1], strides = [1, 1]} : vector<16x4xf32> to vector<16x1xf32>
    %708 = vector.broadcast %707 : vector<16x1xf32> to vector<16x256xf32>
    %709 = arith.mulf %508, %708 : vector<16x256xf32>
    %710 = arith.addf %709, %354 : vector<16x256xf32>
    %cst_143 = arith.constant 0.000000e+00 : f32
    %711 = vector.broadcast %cst_143 : f32 to vector<16x256xf32>
    %712 = arith.maximumf %710, %711 : vector<16x256xf32>
    %c2_144 = arith.constant 2 : index
    %c0_145 = arith.constant 0 : index
    %c0_146 = arith.constant 0 : index
    %713 = vector.load %arg14[%c2_144, %c0_145, %c0_146] : memref<4x16x256xf32, #tpu.memory_space<vmem>>, vector<1x16x256xf32>
    %714 = vector.shape_cast %713 : vector<1x16x256xf32> to vector<16x256xf32>
    %715 = vector.shape_cast %712 : vector<16x256xf32> to vector<1x16x256xf32>
    tpu.vector_store %arg14[%c2_144, %c0_145, %c0_146], %715 {strides = array<i32>} : memref<4x16x256xf32, #tpu.memory_space<vmem>>, vector<1x16x256xf32>,
    %716 = vector.extract_strided_slice %688 {offsets = [0, 3], sizes = [16, 1], strides = [1, 1]} : vector<16x4xf32> to vector<16x1xf32>
    %717 = vector.broadcast %716 : vector<16x1xf32> to vector<16x256xf32>
    %718 = arith.mulf %668, %717 : vector<16x256xf32>
    %719 = arith.addf %718, %514 : vector<16x256xf32>
    %cst_147 = arith.constant 0.000000e+00 : f32
    %720 = vector.broadcast %cst_147 : f32 to vector<16x256xf32>
    %721 = arith.maximumf %719, %720 : vector<16x256xf32>
    %c3_148 = arith.constant 3 : index
    %c0_149 = arith.constant 0 : index
    %c0_150 = arith.constant 0 : index
    %722 = vector.load %arg14[%c3_148, %c0_149, %c0_150] : memref<4x16x256xf32, #tpu.memory_space<vmem>>, vector<1x16x256xf32>
    %723 = vector.shape_cast %722 : vector<1x16x256xf32> to vector<16x256xf32>
    %724 = vector.shape_cast %721 : vector<16x256xf32> to vector<1x16x256xf32>
    tpu.vector_store %arg14[%c3_148, %c0_149, %c0_150], %724 {strides = array<i32>} : memref<4x16x256xf32, #tpu.memory_space<vmem>>, vector<1x16x256xf32>,
    return
  }
  func.func @transform_0(%arg0: i32) -> (i32, i32, i32) {
    %c0_i32 = arith.constant 0 : i32
    %c0_i32_0 = arith.constant 0 : i32
    %c0_i32_1 = arith.constant 0 : i32
    return %arg0, %c0_i32, %c0_i32_0 : i32, i32, i32
  }
  func.func @transform_1(%arg0: i32) -> (i32, i32, i32) {
    %c0_i32 = arith.constant 0 : i32
    %c0_i32_0 = arith.constant 0 : i32
    %c0_i32_1 = arith.constant 0 : i32
    %c0_i32_2 = arith.constant 0 : i32
    return %c0_i32, %c0_i32_0, %c0_i32_1 : i32, i32, i32
  }
  func.func @transform_2(%arg0: i32) -> (i32, i32) {
    %c0_i32 = arith.constant 0 : i32
    %c0_i32_0 = arith.constant 0 : i32
    %c0_i32_1 = arith.constant 0 : i32
    return %c0_i32, %c0_i32_0 : i32, i32
  }
  func.func @transform_3(%arg0: i32) -> (i32, i32) {
    %c0_i32 = arith.constant 0 : i32
    %c0_i32_0 = arith.constant 0 : i32
    %c0_i32_1 = arith.constant 0 : i32
    return %c0_i32, %c0_i32_0 : i32, i32
  }
  func.func @transform_4(%arg0: i32) -> (i32, i32) {
    %c0_i32 = arith.constant 0 : i32
    %c0_i32_0 = arith.constant 0 : i32
    %c0_i32_1 = arith.constant 0 : i32
    return %c0_i32, %c0_i32_0 : i32, i32
  }
  func.func @transform_5(%arg0: i32) -> (i32, i32, i32) {
    %c0_i32 = arith.constant 0 : i32
    %c0_i32_0 = arith.constant 0 : i32
    %c0_i32_1 = arith.constant 0 : i32
    %c0_i32_2 = arith.constant 0 : i32
    return %c0_i32, %c0_i32_0, %c0_i32_1 : i32, i32, i32
  }
  func.func @transform_6(%arg0: i32) -> (i32, i32) {
    %c0_i32 = arith.constant 0 : i32
    %c0_i32_0 = arith.constant 0 : i32
    %c0_i32_1 = arith.constant 0 : i32
    return %c0_i32, %c0_i32_0 : i32, i32
  }
  func.func @transform_7(%arg0: i32) -> (i32, i32) {
    %c0_i32 = arith.constant 0 : i32
    %c0_i32_0 = arith.constant 0 : i32
    %c0_i32_1 = arith.constant 0 : i32
    return %c0_i32, %c0_i32_0 : i32, i32
  }
  func.func @transform_8(%arg0: i32) -> (i32, i32) {
    %c0_i32 = arith.constant 0 : i32
    %c0_i32_0 = arith.constant 0 : i32
    %c0_i32_1 = arith.constant 0 : i32
    return %c0_i32, %c0_i32_0 : i32, i32
  }
  func.func @transform_9(%arg0: i32) -> (i32, i32) {
    %c0_i32 = arith.constant 0 : i32
    %c0_i32_0 = arith.constant 0 : i32
    %c0_i32_1 = arith.constant 0 : i32
    return %c0_i32, %c0_i32_0 : i32, i32
  }
  func.func @transform_10(%arg0: i32) -> (i32, i32) {
    %c0_i32 = arith.constant 0 : i32
    %c0_i32_0 = arith.constant 0 : i32
    %c0_i32_1 = arith.constant 0 : i32
    return %c0_i32, %c0_i32_0 : i32, i32
  }
  func.func @transform_11(%arg0: i32) -> (i32, i32) {
    %c0_i32 = arith.constant 0 : i32
    %c0_i32_0 = arith.constant 0 : i32
    %c0_i32_1 = arith.constant 0 : i32
    return %c0_i32, %c0_i32_0 : i32, i32
  }
  func.func @transform_12(%arg0: i32) -> (i32, i32) {
    %c0_i32 = arith.constant 0 : i32
    %c0_i32_0 = arith.constant 0 : i32
    %c0_i32_1 = arith.constant 0 : i32
    return %c0_i32, %c0_i32_0 : i32, i32
  }
  func.func @transform_13(%arg0: i32) -> (i32, i32, i32) {
    %c0_i32 = arith.constant 0 : i32
    %c0_i32_0 = arith.constant 0 : i32
    %c0_i32_1 = arith.constant 0 : i32
    return %arg0, %c0_i32, %c0_i32_0 : i32, i32, i32
  }
}

</mosaic_0001>

<llo_original>
// kernel: tpu_custom_call.1
$region0: #{tpu_custom_call.1}
  #allocation0 [shape = 'u32[]', space=smem, size = 0x4, offset = 0x4, fixed_abs, tag = 'smem constant byte address 0x4 - core index']
  #allocation1 [shape = 'u32[144,128]{1,0:T(1,128)}', space=vmem, size = 0x12000, scoped, tag = 'internal scratch']
  %s0 = inlined_call_operand.hbm [shape: f32[8,16,256], index: 0, kind: input, shape index: {}]
  %s1 = inlined_call_operand.vmem [shape: bf16[5,16,16], index: 1, kind: input, shape index: {}]
  %s2 = inlined_call_operand.vmem [shape: f32[16,1], index: 2, kind: input, shape index: {}]
  %s3 = inlined_call_operand.hbm [shape: f32[16,256], index: 3, kind: input, shape index: {}]
  %s4 = inlined_call_operand.hbm [shape: f32[16,256], index: 4, kind: input, shape index: {}]
  %s5 = inlined_call_operand.vmem [shape: bf16[5,16,16], index: 5, kind: input, shape index: {}]
  %s6 = inlined_call_operand.vmem [shape: f32[16,1], index: 6, kind: input, shape index: {}]
  %s7 = inlined_call_operand.hbm [shape: f32[16,256], index: 7, kind: input, shape index: {}]
  %s8 = inlined_call_operand.hbm [shape: f32[16,256], index: 8, kind: input, shape index: {}]
  %s9 = inlined_call_operand.vmem [shape: f32[8,16], index: 9, kind: input, shape index: {}]
  %s10 = inlined_call_operand.vmem [shape: f32[8,1], index: 10, kind: input, shape index: {}]
  %s11 = inlined_call_operand.vmem [shape: f32[16,8], index: 11, kind: input, shape index: {}]
  %s12 = inlined_call_operand.vmem [shape: f32[16,1], index: 12, kind: input, shape index: {}]
  %s13 = inlined_call_operand.hbm [shape: f32[8,16,256], index: 13, kind: output, shape index: {}]
  %s14 = sld [smem:[#allocation0]]
  $region105: #{tpu_custom_call.1} parent=0
    _
  %s16 = ssub.s32 1, %s14
  %s17 = scalar_select 0, %s16, %s14
  $region1: #{tpu_custom_call.1} parent=0
    #allocation2 [shape = 'u8[131072]{0}', space=vmem, size = 0x20000, scoped, tag = 'input window, operand 0']
    #allocation3 [shape = 's32[2]{0}', space=sflag, size = 0x8, scoped, tag = 'scoped memory for tpu_custom_call.1']
    #allocation4 [shape = 's32[2]{0}', space=sflag, size = 0x8, scoped, tag = 'scoped memory for tpu_custom_call.1']
    #allocation5 [shape = 'u8[16384]{0}', space=vmem, size = 0x4000, scoped, tag = 'input window, operand 3, single buffered']
    #allocation6 [shape = 's32[1]{0}', space=sflag, size = 0x4, scoped, tag = 'scoped memory for tpu_custom_call.1']
    #allocation7 [shape = 'u8[16384]{0}', space=vmem, size = 0x4000, scoped, tag = 'input window, operand 4, single buffered']
    #allocation8 [shape = 'u8[16384]{0}', space=vmem, size = 0x4000, scoped, tag = 'input window, operand 7, single buffered']
    #allocation9 [shape = 's32[1]{0}', space=sflag, size = 0x4, scoped, tag = 'scoped memory for tpu_custom_call.1']
    #allocation10 [shape = 'u8[16384]{0}', space=vmem, size = 0x4000, scoped, tag = 'input window, operand 8, single buffered']
    #allocation11 [shape = 'u8[131072]{0}', space=vmem, size = 0x20000, scoped, tag = 'output window, operand 0']
    %18 = vsyncpa [#allocation3], 0
    %s19 = scalar_lea.sflag [#allocation3], 1
    %20 = vsyncpa %s19, 0
    %21 = vsyncpa [#allocation6], 0
    %22 = vsyncpa [#allocation9], 0
    %23 = vsyncpa [#allocation4], 0
    %s24 = scalar_lea.sflag [#allocation4], 1
    %25 = vsyncpa %s24, 0
    loop: start=0, step=1, limit=4
    $region2: #{tpu_custom_call.1} parent=1 // loop_pre_header
      _
    $region3: #{tpu_custom_call.1} parent=1 // loop_header
      %s27 = sphi 0, %s31
      %p28 = scmp.ge.s32.totalorder %s27, 4
      %s37 = sphi 0, %s39
      %s40 = sphi 0, %s37
      %s41 = sphi 0, %s40
      %s57 = sphi 0, %s41
      %s61 = sphi 0, %s61
      %s63 = sphi 0, %s61
      %s64 = sphi 0, %s63
      %s78 = sphi 0, %s64
      %s82 = sphi 0, %s82
      %s84 = sphi 0, %s82
      %s85 = sphi 0, %s84
      %s99 = sphi 0, %s85
      %s103 = sphi 0, %s103
      %s105 = sphi 0, %s103
      %s106 = sphi 0, %s105
      %s120 = sphi 0, %s106
      %s124 = sphi 0, %s124
      %s126 = sphi 0, %s124
      %s127 = sphi 0, %s126
      %s141 = sphi 0, %s127
      %s145 = sphi 0, %s145
      %s147 = sphi 0, %s145
      %s148 = sphi 0, %s147
      %s162 = sphi 0, %s148
      %s166 = sphi 0, %s166
      %s168 = sphi 0, %s166
      %s169 = sphi 0, %s168
      %s183 = sphi 0, %s169
      %s187 = sphi 0, %s187
      %s189 = sphi 0, %s187
      %s190 = sphi 0, %s189
      %s204 = sphi 0, %s190
      %s208 = sphi 0, %s208
      %s210 = sphi 0, %s208
      %s211 = sphi 0, %s210
      %s225 = sphi 0, %s211
      %s229 = sphi 0, %s229
      %s231 = sphi 0, %s229
      %s232 = sphi 0, %s231
      %s246 = sphi 0, %s232
      %s250 = sphi 0, %s250
      %s252 = sphi 0, %s250
      %s253 = sphi 0, %s252
      %s267 = sphi 0, %s253
      %s271 = sphi 0, %s271
      %s273 = sphi 0, %s271
      %s274 = sphi 0, %s273
      %s288 = sphi 0, %s274
      %s292 = sphi 0, %s292
      %s294 = sphi 0, %s292
      %s295 = sphi 0, %s294
      %s309 = sphi 0, %s295
      %s315 = sphi 0, %s317
      %s318 = sphi 0, %s315
      %s319 = sphi 0, %s318
      %s335 = sphi 0, %s319
    $region4: #{tpu_custom_call.1} parent=1 // loop_header_branch
      %30 = sbr.rel (%p28) target = $region8
    $region5: #{tpu_custom_call.1} parent=1 // loop_body
      %s32 = ssub.s32 %s27, 1
      %s33 = ssub.s32 %s27, 2
      %s34 = sadd.s32 %s27, 1
      %s35 = ssub.s32 %s27, %s34
      %p36 = scmp.eq.s32.totalorder %s35, 0
      %s38 = sadd.s32 %s37, 1
      %s39 = scalar_select %p36, %s37, %s38
      %p42 = pneg %p36
      %p43 = scmp.eq.s32.totalorder %s27, 1
      %p44 = por %p42, %p43
      %p45 = scmp.ne.s32.totalorder %s37, %s40
      %p46 = scmp.eq.s32.totalorder %s27, 0
      %p47 = por %p45, %p46
      %p48 = scmp.ne.s32.totalorder %s37, %s40
      %p49 = scmp.eq.s32.totalorder %s32, 1
      %p50 = por %p48, %p49
      %p51 = scmp.ne.s32.totalorder %s40, %s41
      %p52 = scmp.eq.s32.totalorder %s32, 0
      %p53 = por %p51, %p52
      %p54 = scmp.ne.s32.totalorder %s40, %s41
      %p55 = scmp.eq.s32.totalorder %s33, 1
      %p56 = por %p54, %p55
      %p58 = scmp.ne.s32.totalorder %s41, %s57
      %p59 = scmp.eq.s32.totalorder %s33, 0
      %p60 = por %p58, %p59
      %s62 = sadd.s32 %s61, 1
      %p65 = scmp.eq.s32.totalorder %s27, 1
      %p66 = scmp.ne.s32.totalorder %s61, %s63
      %p67 = scmp.eq.s32.totalorder %s27, 0
      %p68 = por %p66, %p67
      %p69 = scmp.ne.s32.totalorder %s61, %s63
      %p70 = scmp.eq.s32.totalorder %s32, 1
      %p71 = por %p69, %p70
      %p72 = scmp.ne.s32.totalorder %s63, %s64
      %p73 = scmp.eq.s32.totalorder %s32, 0
      %p74 = por %p72, %p73
      %p75 = scmp.ne.s32.totalorder %s63, %s64
      %p76 = scmp.eq.s32.totalorder %s33, 1
      %p77 = por %p75, %p76
      %p79 = scmp.ne.s32.totalorder %s64, %s78
      %p80 = scmp.eq.s32.totalorder %s33, 0
      %p81 = por %p79, %p80
      %s83 = sadd.s32 %s82, 1
      %p86 = scmp.eq.s32.totalorder %s27, 1
      %p87 = scmp.ne.s32.totalorder %s82, %s84
      %p88 = scmp.eq.s32.totalorder %s27, 0
      %p89 = por %p87, %p88
      %p90 = scmp.ne.s32.totalorder %s82, %s84
      %p91 = scmp.eq.s32.totalorder %s32, 1
      %p92 = por %p90, %p91
      %p93 = scmp.ne.s32.totalorder %s84, %s85
      %p94 = scmp.eq.s32.totalorder %s32, 0
      %p95 = por %p93, %p94
      %p96 = scmp.ne.s32.totalorder %s84, %s85
      %p97 = scmp.eq.s32.totalorder %s33, 1
      %p98 = por %p96, %p97
      %p100 = scmp.ne.s32.totalorder %s85, %s99
      %p101 = scmp.eq.s32.totalorder %s33, 0
      %p102 = por %p100, %p101
      %s104 = sadd.s32 %s103, 1
      %p107 = scmp.eq.s32.totalorder %s27, 1
      %p108 = scmp.ne.s32.totalorder %s103, %s105
      %p109 = scmp.eq.s32.totalorder %s27, 0
      %p110 = por %p108, %p109
      %p111 = scmp.ne.s32.totalorder %s103, %s105
      %p112 = scmp.eq.s32.totalorder %s32, 1
      %p113 = por %p111, %p112
      %p114 = scmp.ne.s32.totalorder %s105, %s106
      %p115 = scmp.eq.s32.totalorder %s32, 0
      %p116 = por %p114, %p115
      %p117 = scmp.ne.s32.totalorder %s105, %s106
      %p118 = scmp.eq.s32.totalorder %s33, 1
      %p119 = por %p117, %p118
      %p121 = scmp.ne.s32.totalorder %s106, %s120
      %p122 = scmp.eq.s32.totalorder %s33, 0
      %p123 = por %p121, %p122
      %s125 = sadd.s32 %s124, 1
      %p128 = scmp.eq.s32.totalorder %s27, 1
      %p129 = scmp.ne.s32.totalorder %s124, %s126
      %p130 = scmp.eq.s32.totalorder %s27, 0
      %p131 = por %p129, %p130
      %p132 = scmp.ne.s32.totalorder %s124, %s126
      %p133 = scmp.eq.s32.totalorder %s32, 1
      %p134 = por %p132, %p133
      %p135 = scmp.ne.s32.totalorder %s126, %s127
      %p136 = scmp.eq.s32.totalorder %s32, 0
      %p137 = por %p135, %p136
      %p138 = scmp.ne.s32.totalorder %s126, %s127
      %p139 = scmp.eq.s32.totalorder %s33, 1
      %p140 = por %p138, %p139
      %p142 = scmp.ne.s32.totalorder %s127, %s141
      %p143 = scmp.eq.s32.totalorder %s33, 0
      %p144 = por %p142, %p143
      %s146 = sadd.s32 %s145, 1
      %p149 = scmp.eq.s32.totalorder %s27, 1
      %p150 = scmp.ne.s32.totalorder %s145, %s147
      %p151 = scmp.eq.s32.totalorder %s27, 0
      %p152 = por %p150, %p151
      %p153 = scmp.ne.s32.totalorder %s145, %s147
      %p154 = scmp.eq.s32.totalorder %s32, 1
      %p155 = por %p153, %p154
      %p156 = scmp.ne.s32.totalorder %s147, %s148
      %p157 = scmp.eq.s32.totalorder %s32, 0
      %p158 = por %p156, %p157
      %p159 = scmp.ne.s32.totalorder %s147, %s148
      %p160 = scmp.eq.s32.totalorder %s33, 1
      %p161 = por %p159, %p160
      %p163 = scmp.ne.s32.totalorder %s148, %s162
      %p164 = scmp.eq.s32.totalorder %s33, 0
      %p165 = por %p163, %p164
      %s167 = sadd.s32 %s166, 1
      %p170 = scmp.eq.s32.totalorder %s27, 1
      %p171 = scmp.ne.s32.totalorder %s166, %s168
      %p172 = scmp.eq.s32.totalorder %s27, 0
      %p173 = por %p171, %p172
      %p174 = scmp.ne.s32.totalorder %s166, %s168
      %p175 = scmp.eq.s32.totalorder %s32, 1
      %p176 = por %p174, %p175
      %p177 = scmp.ne.s32.totalorder %s168, %s169
      %p178 = scmp.eq.s32.totalorder %s32, 0
      %p179 = por %p177, %p178
      %p180 = scmp.ne.s32.totalorder %s168, %s169
      %p181 = scmp.eq.s32.totalorder %s33, 1
      %p182 = por %p180, %p181
      %p184 = scmp.ne.s32.totalorder %s169, %s183
      %p185 = scmp.eq.s32.totalorder %s33, 0
      %p186 = por %p184, %p185
      %s188 = sadd.s32 %s187, 1
      %p191 = scmp.eq.s32.totalorder %s27, 1
      %p192 = scmp.ne.s32.totalorder %s187, %s189
      %p193 = scmp.eq.s32.totalorder %s27, 0
      %p194 = por %p192, %p193
      %p195 = scmp.ne.s32.totalorder %s187, %s189
      %p196 = scmp.eq.s32.totalorder %s32, 1
      %p197 = por %p195, %p196
      %p198 = scmp.ne.s32.totalorder %s189, %s190
      %p199 = scmp.eq.s32.totalorder %s32, 0
      %p200 = por %p198, %p199
      %p201 = scmp.ne.s32.totalorder %s189, %s190
      %p202 = scmp.eq.s32.totalorder %s33, 1
      %p203 = por %p201, %p202
      %p205 = scmp.ne.s32.totalorder %s190, %s204
      %p206 = scmp.eq.s32.totalorder %s33, 0
      %p207 = por %p205, %p206
      %s209 = sadd.s32 %s208, 1
      %p212 = scmp.eq.s32.totalorder %s27, 1
      %p213 = scmp.ne.s32.totalorder %s208, %s210
      %p214 = scmp.eq.s32.totalorder %s27, 0
      %p215 = por %p213, %p214
      %p216 = scmp.ne.s32.totalorder %s208, %s210
      %p217 = scmp.eq.s32.totalorder %s32, 1
      %p218 = por %p216, %p217
      %p219 = scmp.ne.s32.totalorder %s210, %s211
      %p220 = scmp.eq.s32.totalorder %s32, 0
      %p221 = por %p219, %p220
      %p222 = scmp.ne.s32.totalorder %s210, %s211
      %p223 = scmp.eq.s32.totalorder %s33, 1
      %p224 = por %p222, %p223
      %p226 = scmp.ne.s32.totalorder %s211, %s225
      %p227 = scmp.eq.s32.totalorder %s33, 0
      %p228 = por %p226, %p227
      %s230 = sadd.s32 %s229, 1
      %p233 = scmp.eq.s32.totalorder %s27, 1
      %p234 = scmp.ne.s32.totalorder %s229, %s231
      %p235 = scmp.eq.s32.totalorder %s27, 0
      %p236 = por %p234, %p235
      %p237 = scmp.ne.s32.totalorder %s229, %s231
      %p238 = scmp.eq.s32.totalorder %s32, 1
      %p239 = por %p237, %p238
      %p240 = scmp.ne.s32.totalorder %s231, %s232
      %p241 = scmp.eq.s32.totalorder %s32, 0
      %p242 = por %p240, %p241
      %p243 = scmp.ne.s32.totalorder %s231, %s232
      %p244 = scmp.eq.s32.totalorder %s33, 1
      %p245 = por %p243, %p244
      %p247 = scmp.ne.s32.totalorder %s232, %s246
      %p248 = scmp.eq.s32.totalorder %s33, 0
      %p249 = por %p247, %p248
      %s251 = sadd.s32 %s250, 1
      %p254 = scmp.eq.s32.totalorder %s27, 1
      %p255 = scmp.ne.s32.totalorder %s250, %s252
      %p256 = scmp.eq.s32.totalorder %s27, 0
      %p257 = por %p255, %p256
      %p258 = scmp.ne.s32.totalorder %s250, %s252
      %p259 = scmp.eq.s32.totalorder %s32, 1
      %p260 = por %p258, %p259
      %p261 = scmp.ne.s32.totalorder %s252, %s253
      %p262 = scmp.eq.s32.totalorder %s32, 0
      %p263 = por %p261, %p262
      %p264 = scmp.ne.s32.totalorder %s252, %s253
      %p265 = scmp.eq.s32.totalorder %s33, 1
      %p266 = por %p264, %p265
      %p268 = scmp.ne.s32.totalorder %s253, %s267
      %p269 = scmp.eq.s32.totalorder %s33, 0
      %p270 = por %p268, %p269
      %s272 = sadd.s32 %s271, 1
      %p275 = scmp.eq.s32.totalorder %s27, 1
      %p276 = scmp.ne.s32.totalorder %s271, %s273
      %p277 = scmp.eq.s32.totalorder %s27, 0
      %p278 = por %p276, %p277
      %p279 = scmp.ne.s32.totalorder %s271, %s273
      %p280 = scmp.eq.s32.totalorder %s32, 1
      %p281 = por %p279, %p280
      %p282 = scmp.ne.s32.totalorder %s273, %s274
      %p283 = scmp.eq.s32.totalorder %s32, 0
      %p284 = por %p282, %p283
      %p285 = scmp.ne.s32.totalorder %s273, %s274
      %p286 = scmp.eq.s32.totalorder %s33, 1
      %p287 = por %p285, %p286
      %p289 = scmp.ne.s32.totalorder %s274, %s288
      %p290 = scmp.eq.s32.totalorder %s33, 0
      %p291 = por %p289, %p290
      %s293 = sadd.s32 %s292, 1
      %p296 = scmp.eq.s32.totalorder %s27, 1
      %p297 = scmp.ne.s32.totalorder %s292, %s294
      %p298 = scmp.eq.s32.totalorder %s27, 0
      %p299 = por %p297, %p298
      %p300 = scmp.ne.s32.totalorder %s292, %s294
      %p301 = scmp.eq.s32.totalorder %s32, 1
      %p302 = por %p300, %p301
      %p303 = scmp.ne.s32.totalorder %s294, %s295
      %p304 = scmp.eq.s32.totalorder %s32, 0
      %p305 = por %p303, %p304
      %p306 = scmp.ne.s32.totalorder %s294, %s295
      %p307 = scmp.eq.s32.totalorder %s33, 1
      %p308 = por %p306, %p307
      %p310 = scmp.ne.s32.totalorder %s295, %s309
      %p311 = scmp.eq.s32.totalorder %s33, 0
      %p312 = por %p310, %p311
      %s313 = ssub.s32 %s27, %s34
      %p314 = scmp.eq.s32.totalorder %s313, 0
      %s316 = sadd.s32 %s315, 1
      %s317 = scalar_select %p314, %s315, %s316
      %p320 = pneg %p314
      %p321 = scmp.eq.s32.totalorder %s27, 1
      %p322 = por %p320, %p321
      %p323 = scmp.ne.s32.totalorder %s315, %s318
      %p324 = scmp.eq.s32.totalorder %s27, 0
      %p325 = por %p323, %p324
      %p326 = scmp.ne.s32.totalorder %s315, %s318
      %p327 = scmp.eq.s32.totalorder %s32, 1
      %p328 = por %p326, %p327
      %p329 = scmp.ne.s32.totalorder %s318, %s319
      %p330 = scmp.eq.s32.totalorder %s32, 0
      %p331 = por %p329, %p330
      %p332 = scmp.ne.s32.totalorder %s318, %s319
      %p333 = scmp.eq.s32.totalorder %s33, 1
      %p334 = por %p332, %p333
      %p336 = scmp.ne.s32.totalorder %s319, %s335
      %p337 = scmp.eq.s32.totalorder %s33, 0
      %p338 = por %p336, %p337
      %p339 = scmp.le.s32.totalorder 1, %s27
      %p340 = scmp.lt.s32.totalorder %s27, 3
      %p341 = pnand %p339, %p340
      %p342 = pneg %p341
      // Predicated region
      $region9: #{tpu_custom_call.1} parent=5 // pred_check
        _
      $region10: #{tpu_custom_call.1} parent=5 // pred_check_branch
        %344 = sbr.rel (%p341) target = $region12
      $region11: #{tpu_custom_call.1} parent=5 // pred_region
        %s345 = ssub.s32 %s27, 1
        // Predicated region
        $region13: #{tpu_custom_call.1} parent=11 // pred_check
          %p346 = pneg %p74
        $region14: #{tpu_custom_call.1} parent=11 // pred_check_branch
          %348 = sbr.rel (%p346) target = $region16
        $region15: #{tpu_custom_call.1} parent=11 // pred_region
          _
        $region16: #{tpu_custom_call.1} parent=11 // pred_fallthru
          _
        // Predicated region
        $region17: #{tpu_custom_call.1} parent=11 // pred_check
          %p349 = pneg %p95
        $region18: #{tpu_custom_call.1} parent=11 // pred_check_branch
          %351 = sbr.rel (%p349) target = $region20
        $region19: #{tpu_custom_call.1} parent=11 // pred_region
          _
        $region20: #{tpu_custom_call.1} parent=11 // pred_fallthru
          _
        // Predicated region
        $region21: #{tpu_custom_call.1} parent=11 // pred_check
          %p352 = pneg %p116
        $region22: #{tpu_custom_call.1} parent=11 // pred_check_branch
          %354 = sbr.rel (%p352) target = $region24
        $region23: #{tpu_custom_call.1} parent=11 // pred_region
          %s356 = ssub.s32 512, 512
          %357 = vsyncadd [#allocation6], %s356
          %s358 = sshll.u32 [#allocation5], 4
          %s359 = int_to_ptr.vmem [resolvable:$true] %s358
          %364 = dma.hbm_to_vmem [thread:$0]  %s3, 512, %s359, [#allocation6], 256, 256, 16
        $region24: #{tpu_custom_call.1} parent=11 // pred_fallthru
          _
        // Predicated region
        $region25: #{tpu_custom_call.1} parent=11 // pred_check
          %p365 = pneg %p137
        $region26: #{tpu_custom_call.1} parent=11 // pred_check_branch
          %367 = sbr.rel (%p365) target = $region28
        $region27: #{tpu_custom_call.1} parent=11 // pred_region
          %s369 = ssub.s32 512, 512
          %370 = vsyncadd [#allocation6], %s369
          %s371 = sshll.u32 [#allocation7], 4
          %s372 = int_to_ptr.vmem [resolvable:$true] %s371
          %377 = dma.hbm_to_vmem [thread:$0]  %s4, 512, %s372, [#allocation6], 256, 256, 16
        $region28: #{tpu_custom_call.1} parent=11 // pred_fallthru
          _
        // Predicated region
        $region29: #{tpu_custom_call.1} parent=11 // pred_check
          %p378 = pneg %p158
        $region30: #{tpu_custom_call.1} parent=11 // pred_check_branch
          %380 = sbr.rel (%p378) target = $region32
        $region31: #{tpu_custom_call.1} parent=11 // pred_region
          _
        $region32: #{tpu_custom_call.1} parent=11 // pred_fallthru
          _
        // Predicated region
        $region33: #{tpu_custom_call.1} parent=11 // pred_check
          %p381 = pneg %p179
        $region34: #{tpu_custom_call.1} parent=11 // pred_check_branch
          %383 = sbr.rel (%p381) target = $region36
        $region35: #{tpu_custom_call.1} parent=11 // pred_region
          _
        $region36: #{tpu_custom_call.1} parent=11 // pred_fallthru
          _
        // Predicated region
        $region37: #{tpu_custom_call.1} parent=11 // pred_check
          %p384 = pneg %p200
        $region38: #{tpu_custom_call.1} parent=11 // pred_check_branch
          %386 = sbr.rel (%p384) target = $region40
        $region39: #{tpu_custom_call.1} parent=11 // pred_region
          %s388 = ssub.s32 512, 512
          %389 = vsyncadd [#allocation9], %s388
          %s390 = sshll.u32 [#allocation8], 4
          %s391 = int_to_ptr.vmem [resolvable:$true] %s390
          %396 = dma.hbm_to_vmem [thread:$0]  %s7, 512, %s391, [#allocation9], 256, 256, 16
        $region40: #{tpu_custom_call.1} parent=11 // pred_fallthru
          _
        // Predicated region
        $region41: #{tpu_custom_call.1} parent=11 // pred_check
          %p397 = pneg %p221
        $region42: #{tpu_custom_call.1} parent=11 // pred_check_branch
          %399 = sbr.rel (%p397) target = $region44
        $region43: #{tpu_custom_call.1} parent=11 // pred_region
          %s401 = ssub.s32 512, 512
          %402 = vsyncadd [#allocation9], %s401
          %s403 = sshll.u32 [#allocation10], 4
          %s404 = int_to_ptr.vmem [resolvable:$true] %s403
          %409 = dma.hbm_to_vmem [thread:$0]  %s8, 512, %s404, [#allocation9], 256, 256, 16
        $region44: #{tpu_custom_call.1} parent=11 // pred_fallthru
          _
        // Predicated region
        $region45: #{tpu_custom_call.1} parent=11 // pred_check
          %p410 = pneg %p242
        $region46: #{tpu_custom_call.1} parent=11 // pred_check_branch
          %412 = sbr.rel (%p410) target = $region48
        $region47: #{tpu_custom_call.1} parent=11 // pred_region
          _
        $region48: #{tpu_custom_call.1} parent=11 // pred_fallthru
          _
        // Predicated region
        $region49: #{tpu_custom_call.1} parent=11 // pred_check
          %p413 = pneg %p263
        $region50: #{tpu_custom_call.1} parent=11 // pred_check_branch
          %415 = sbr.rel (%p413) target = $region52
        $region51: #{tpu_custom_call.1} parent=11 // pred_region
          _
        $region52: #{tpu_custom_call.1} parent=11 // pred_fallthru
          _
        // Predicated region
        $region53: #{tpu_custom_call.1} parent=11 // pred_check
          %p416 = pneg %p284
        $region54: #{tpu_custom_call.1} parent=11 // pred_check_branch
          %418 = sbr.rel (%p416) target = $region56
        $region55: #{tpu_custom_call.1} parent=11 // pred_region
          _
        $region56: #{tpu_custom_call.1} parent=11 // pred_fallthru
          _
        // Predicated region
        $region57: #{tpu_custom_call.1} parent=11 // pred_check
          %p419 = pneg %p305
        $region58: #{tpu_custom_call.1} parent=11 // pred_check_branch
          %421 = sbr.rel (%p419) target = $region60
        $region59: #{tpu_custom_call.1} parent=11 // pred_region
          _
        $region60: #{tpu_custom_call.1} parent=11 // pred_fallthru
          _
      $region12: #{tpu_custom_call.1} parent=5 // pred_fallthru
        _
      %p422 = scmp.lt.s32.totalorder %s27, 2
      // Predicated region
      $region61: #{tpu_custom_call.1} parent=5 // pred_check
        %p423 = pneg %p422
      $region62: #{tpu_custom_call.1} parent=5 // pred_check_branch
        %425 = sbr.rel (%p423) target = $region64
      $region63: #{tpu_custom_call.1} parent=5 // pred_region
        // Predicated region
        $region65: #{tpu_custom_call.1} parent=63 // pred_check
          %p426 = pneg %p47
        $region66: #{tpu_custom_call.1} parent=63 // pred_check_branch
          %428 = sbr.rel (%p426) target = $region68
        $region67: #{tpu_custom_call.1} parent=63 // pred_region
          %s429 = sand.u32 %s37, 1
          %s430 = scalar_lea.sflag [#allocation3], %s429
          %s431 = sand.u32 %s37, 1
          %s432 = smul.addr %s431, 128
          %s433 = scalar_lea.vmem [#allocation2], %s432
          %s434 = smul.u32 4, %s27
          %s436 = ssub.s32 2048, 2048
          %437 = vsyncadd %s430, %s436
          %s438 = smul.addr %s434, 4
          %s439 = smul.addr %s438, 128
          %s440 = scalar_lea.hbm %s0, %s439
          %s441 = sshll.u32 %s433, 4
          %s442 = int_to_ptr.vmem [resolvable:$true] %s441
          %447 = dma.hbm_to_vmem [thread:$0]  %s440, 2048, %s442, %s430, 256, 256, 16
        $region68: #{tpu_custom_call.1} parent=63 // pred_fallthru
          _
      $region64: #{tpu_custom_call.1} parent=5 // pred_fallthru
        _
      %p448 = scmp.le.s32.totalorder 1, %s27
      %p449 = scmp.lt.s32.totalorder %s27, 3
      %p450 = pnand %p448, %p449
      %p451 = pneg %p450
      // Predicated region
      $region69: #{tpu_custom_call.1} parent=5 // pred_check
        _
      $region70: #{tpu_custom_call.1} parent=5 // pred_check_branch
        %453 = sbr.rel (%p450) target = $region72
      $region71: #{tpu_custom_call.1} parent=5 // pred_region
        %s454 = ssub.s32 %s27, 1
        %s455 = sand.u32 %s40, 1
        %s456 = scalar_lea.sflag [#allocation3], %s455
        %s457 = sand.u32 %s40, 1
        %s458 = smul.addr %s457, 128
        %s459 = scalar_lea.vmem [#allocation2], %s458
        // Predicated region
        $region73: #{tpu_custom_call.1} parent=71 // pred_check
          %p460 = pneg %p53
        $region74: #{tpu_custom_call.1} parent=71 // pred_check_branch
          %462 = sbr.rel (%p460) target = $region76
        $region75: #{tpu_custom_call.1} parent=71 // pred_region
          %463 = dma.done %s456, 2048
        $region76: #{tpu_custom_call.1} parent=71 // pred_fallthru
          _
        // Predicated region
        $region77: #{tpu_custom_call.1} parent=71 // pred_check
          %p464 = pneg %p116
        $region78: #{tpu_custom_call.1} parent=71 // pred_check_branch
          %466 = sbr.rel (%p464) target = $region80
        $region79: #{tpu_custom_call.1} parent=71 // pred_region
          %467 = dma.done [#allocation6], 512
        $region80: #{tpu_custom_call.1} parent=71 // pred_fallthru
          _
        // Predicated region
        $region81: #{tpu_custom_call.1} parent=71 // pred_check
          %p468 = pneg %p137
        $region82: #{tpu_custom_call.1} parent=71 // pred_check_branch
          %470 = sbr.rel (%p468) target = $region84
        $region83: #{tpu_custom_call.1} parent=71 // pred_region
          %471 = dma.done [#allocation6], 512
        $region84: #{tpu_custom_call.1} parent=71 // pred_fallthru
          _
        // Predicated region
        $region85: #{tpu_custom_call.1} parent=71 // pred_check
          %p472 = pneg %p200
        $region86: #{tpu_custom_call.1} parent=71 // pred_check_branch
          %474 = sbr.rel (%p472) target = $region88
        $region87: #{tpu_custom_call.1} parent=71 // pred_region
          %475 = dma.done [#allocation9], 512
        $region88: #{tpu_custom_call.1} parent=71 // pred_fallthru
          _
        // Predicated region
        $region89: #{tpu_custom_call.1} parent=71 // pred_check
          %p476 = pneg %p221
        $region90: #{tpu_custom_call.1} parent=71 // pred_check_branch
          %478 = sbr.rel (%p476) target = $region92
        $region91: #{tpu_custom_call.1} parent=71 // pred_region
          %479 = dma.done [#allocation9], 512
        $region92: #{tpu_custom_call.1} parent=71 // pred_fallthru
          _
        %s480 = sand.u32 %s40, 1
        %s481 = scalar_lea.sflag [#allocation3], %s480
        %s482 = sand.u32 %s40, 1
        %s483 = smul.addr %s482, 128
        %s484 = scalar_lea.vmem [#allocation2], %s483
        %p485 = pneg %p53
        %p486 = pneg %p50
        %p487 = pneg %p74
        %p488 = pneg %p71
        %p489 = pneg %p95
        %p490 = pneg %p92
        %p491 = pneg %p116
        %p492 = pneg %p113
        %p493 = pneg %p137
        %p494 = pneg %p134
        %p495 = pneg %p158
        %p496 = pneg %p155
        %p497 = pneg %p179
        %p498 = pneg %p176
        %p499 = pneg %p200
        %p500 = pneg %p197
        %p501 = pneg %p221
        %p502 = pneg %p218
        %p503 = pneg %p242
        %p504 = pneg %p239
        %p505 = pneg %p263
        %p506 = pneg %p260
        %p507 = pneg %p284
        %p508 = pneg %p281
        %p509 = pneg %p305
        %p510 = pneg %p302
        %p511 = pneg %p331
        %p512 = pneg %p328
        %s513 = sand.u32 %s318, 1
        %s514 = scalar_lea.sflag [#allocation4], %s513
        %s515 = sand.u32 %s318, 1
        %s516 = smul.addr %s515, 128
        %s517 = scalar_lea.vmem [#allocation11], %s516
        %s518 = smul.u32 4, %s32
        %s519 = smul.u32 4, %s32
        %v521 = vlaneseq
        %v522 = vand.u32 %v521, 127
        %v523 = vadd.s32 %v522, 128
        %vm524 = vcmp.lt.s32.totalorder %v522, 0
        %v525 = vsub.s32 0, %v522
        %v526 = vsel %vm524, %v525, %v522
        %v527 = vshrl.u32 %v526, 4
        %v528 = vand.u32 %v526, 15
        %v529 = vsub.s32 0, %v528
        %v530 = vsel %vm524, %v529, %v528
        %vm531 = vcmp.lt.s32.totalorder %v523, 0
        %v532 = vsub.s32 0, %v523
        %v533 = vsel %vm531, %v532, %v523
        %v534 = vshrl.u32 %v533, 4
        %v535 = vand.u32 %v533, 15
        %v536 = vsub.s32 0, %v535
        %v537 = vsel %vm531, %v536, %v535
        %vm538 = vcmp.ne.s32.totalorder %v530, 0
        %vm539 = vcmp.ne.s32.totalorder %v537, 0
        %vm540 = vcmp.lt.s32.totalorder %v530, 0
        %vm541 = vcmp.lt.s32.totalorder %v537, 0
        %vm542 = vmand %vm540, %vm538
        %vm543 = vmand %vm541, %vm539
        %v544 = vadd.s32 %v530, 16
        %v545 = vadd.s32 %v537, 16
        %v546 = vsel %vm542, %v544, %v530
        %v547 = vsel %vm543, %v545, %v537
        %vm548 = vcmp.lt.s32.totalorder %v546, 1
        %vm549 = vcmp.lt.s32.totalorder %v547, 1
        %vm550 = vcmp.ge.s32.totalorder %v546, 15
        %vm551 = vcmp.ge.s32.totalorder %v547, 15
        %v552 = vld [vmem:[%s1] sm:$0xf]
        %v553 = vld [vmem:[%s1 + $0x4] sm:$0xf]
        %v554 = vld [vmem:[%s1 + $0x8] sm:$0xf]
        %v555 = vld [vmem:[%s1 + $0xc] sm:$0xf]
        %v556 = vld [vmem:[%s1 + $0x10] sm:$0xf]
        %v557 = vld [vmem:[%s1 + $0x14] sm:$0xf]
        %v558 = vld [vmem:[%s1 + $0x18] sm:$0xf]
        %v559 = vld [vmem:[%s1 + $0x1c] sm:$0xf]
        %v560 = vld [vmem:[%s1 + $0x20] sm:$0xf]
        %v561 = vld [vmem:[%s1 + $0x24] sm:$0xf]
        %v562 = vld [vmem:[%s5] sm:$0xf]
        %v563 = vld [vmem:[%s5 + $0x4] sm:$0xf]
        %v564 = vld [vmem:[%s5 + $0x8] sm:$0xf]
        %v565 = vld [vmem:[%s5 + $0xc] sm:$0xf]
        %v566 = vld [vmem:[%s5 + $0x10] sm:$0xf]
        %v567 = vld [vmem:[%s5 + $0x14] sm:$0xf]
        %v568 = vld [vmem:[%s5 + $0x18] sm:$0xf]
        %v569 = vld [vmem:[%s5 + $0x1c] sm:$0xf]
        %v570 = vld [vmem:[%s5 + $0x20] sm:$0xf]
        %v571 = vld [vmem:[%s5 + $0x24] sm:$0xf]
        %v572 = vld [vmem:[%s2] sm:$0xff]
        %v573 = vld [vmem:[%s2 + $0x8] sm:$0xff]
        %v574 = vld [vmem:[%s6] sm:$0xff]
        %v575 = vld [vmem:[%s6 + $0x8] sm:$0xff]
        %v576 = vld [vmem:[#allocation5] sm:$0xff]
        %v577 = vld [vmem:[#allocation5 + $0x8] sm:$0xff]
        %v578 = vld [vmem:[#allocation5 + $0x10] sm:$0xff]
        %v579 = vld [vmem:[#allocation5 + $0x18] sm:$0xff]
        %v580 = vld [vmem:[#allocation7] sm:$0xff]
        %v581 = vld [vmem:[#allocation7 + $0x8] sm:$0xff]
        %v582 = vld [vmem:[#allocation7 + $0x10] sm:$0xff]
        %v583 = vld [vmem:[#allocation7 + $0x18] sm:$0xff]
        %v584 = vld [vmem:[#allocation8] sm:$0xff]
        %v585 = vld [vmem:[#allocation8 + $0x8] sm:$0xff]
        %v586 = vld [vmem:[#allocation8 + $0x10] sm:$0xff]
        %v587 = vld [vmem:[#allocation8 + $0x18] sm:$0xff]
        %v588 = vld [vmem:[#allocation10] sm:$0xff]
        %v589 = vld [vmem:[#allocation10 + $0x8] sm:$0xff]
        %v590 = vld [vmem:[#allocation10 + $0x10] sm:$0xff]
        %v591 = vld [vmem:[#allocation10 + $0x18] sm:$0xff]
        %v592 = vld [vmem:[%s9] sm:$0xff]
        %v593 = vld [vmem:[%s10] sm:$0xff]
        %v594 = vld [vmem:[%s11] sm:$0xff]
        %v595 = vld [vmem:[%s11 + $0x8] sm:$0xff]
        %v596 = vld [vmem:[%s12] sm:$0xff]
        %v597 = vld [vmem:[%s12 + $0x8] sm:$0xff]
        %v598 = vld [vmem:[%s459] sm:$0xff]
        %v599 = vld [vmem:[%s459 + $0x8] sm:$0xff]
        %v600 = vld [vmem:[%s459 + $0x10] sm:$0xff]
        %v601 = vld [vmem:[%s459 + $0x18] sm:$0xff]
        %604 = vrot.lane.b32.xlu0 %v599, 16
        %v605 = vpop.permute.xlu0 %604
        %606 = vrot.lane.b32.xlu0 %v601, 16
        %v607 = vpop.permute.xlu0 %606
        %612 = vrot.lane.b32.xlu0 %v598, 16
        %v613 = vpop.permute.xlu0 %612
        %614 = vrot.lane.b32.xlu0 %v600, 16
        %v615 = vpop.permute.xlu0 %614
        %vm616 = vcmask 130048
        %v617 = vsel %vm616, %v613, %v605
        %v618 = vsel %vm616, %v615, %v607
        %v623 = vsel %vm616, %v605, %v613
        %v624 = vsel %vm616, %v607, %v615
        %v625 = vpack.c.bf16 %v624, %v623
        %v626 = vpack.c.bf16 %v618, %v617
        %627 = vrot.lane.b32.xlu0 %v599, 1
        %v628 = vpop.permute.xlu0 %627
        %629 = vrot.lane.b32.xlu0 %v601, 1
        %v630 = vpop.permute.xlu0 %629
        %633 = vrot.lane.b32.xlu0 %v598, 1
        %v634 = vpop.permute.xlu0 %633
        %635 = vrot.lane.b32.xlu0 %v600, 1
        %v636 = vpop.permute.xlu0 %635
        %vm637 = vcmask 7168
        %v638 = vsel %vm637, %v634, %v628
        %v639 = vsel %vm637, %v636, %v630
        %v644 = vsel %vm637, %v628, %v634
        %v645 = vsel %vm637, %v630, %v636
        %646 = vrot.lane.b32.xlu0 %v598, 113
        %v647 = vpop.permute.xlu0 %646
        %648 = vrot.lane.b32.xlu0 %v599, 113
        %v649 = vpop.permute.xlu0 %648
        %650 = vrot.lane.b32.xlu0 %v600, 113
        %v651 = vpop.permute.xlu0 %650
        %652 = vrot.lane.b32.xlu0 %v601, 113
        %v653 = vpop.permute.xlu0 %652
        %vm654 = vcmask 924672
        %v655 = vsel %vm654, %v647, %v649
        %v656 = vsel %vm654, %v651, %v653
        %v663 = vsel %vm654, %v649, %v647
        %v664 = vsel %vm654, %v653, %v651
        %v665 = vsel %vm548, 1, 0
        %v666 = vsel %vm549, 1, 0
        %vm667 = vcmp.eq.s32.totalorder %v665, 1
        %vm668 = vcmp.eq.s32.totalorder %v666, 1
        %v669 = vsel %vm667, %v655, %v644
        %v670 = vsel %vm668, %v663, %v638
        %v671 = vsel %vm667, %v656, %v645
        %v672 = vsel %vm668, %v664, %v639
        %v673 = vpack.c.bf16 %v671, %v669
        %v674 = vpack.c.bf16 %v672, %v670
        %v677 = vunpack.c.l.b16 %v554
        %v678 = vunpack.c.l.b16 %v555
        %v679 = vpack.c.b16 %v678, %v677
        %v681 = vsel %vm616, %v679, 0
        %683 = vmatprep.subr.bf16.mxu0 0
        %684 = vmatpush1.bf16.msra.mxu0 0
        %685 = vmatprep.subr.bf16.mxu0 0
        %686 = vmatpush1.bf16.msra.mxu0 0
        %687 = vmatprep.subr.bf16.mxu0 0
        %688 = vmatpush1.bf16.msra.mxu0 0
        %689 = vmatprep.subr.bf16.mxu0 0
        %690 = vmatpush1.bf16.msra.mxu0 0
        %691 = vmatprep.subr.bf16.mxu0 0
        %692 = vmatpush1.bf16.msra.mxu0 0
        %693 = vmatprep.subr.bf16.mxu0 0
        %694 = vmatpush1.bf16.msra.mxu0 0
        %695 = vmatprep.subr.bf16.mxu0 0
        %696 = vmatpush1.bf16.msra.mxu0 0
        %697 = vmatprep.subr.bf16.mxu0 %v674
        %698 = vmatpush1.bf16.msra.mxu0 %v673
        %699 = vmatprep.subr.bf16.mxu0 0
        %700 = vmatpush2.bf16.msra.mxu0 0
        %701 = vmatprep.subr.bf16.mxu0 0
        %702 = vmatpush2.bf16.msra.mxu0 0
        %703 = vmatprep.subr.bf16.mxu0 0
        %704 = vmatpush2.bf16.msra.mxu0 0
        %705 = vmatprep.subr.bf16.mxu0 0
        %706 = vmatpush2.bf16.msra.mxu0 0
        %707 = vmatprep.subr.bf16.mxu0 0
        %708 = vmatpush2.bf16.msra.mxu0 0
        %709 = vmatprep.subr.bf16.mxu0 0
        %710 = vmatpush2.bf16.msra.mxu0 0
        %711 = vmatprep.subr.bf16.mxu0 0
        %712 = vmatpush2.bf16.msra.mxu0 0
        %713 = vmatprep.subr.bf16.mxu0 0
        %714 = vmatpush2.bf16.msra.mxu0 0
        %715 = vmatprep.mubr.bf16.mxu0 0
        %716 = vmatmul.mubr.bf16.gmra.mxu0 %v681
        %v717 = vpop.f32.mrf.mxu0
        %v718 = vadd.f32 0.0, %v717
        %v719 = vpop.f32.mrf.mxu0
        %v720 = vadd.f32 0.0, %v719
        %v721 = vpop.f32.mrf.mxu0
        %v722 = vadd.f32 0.0, %v721
        %v723 = vpop.f32.mrf.mxu0
        %v724 = vadd.f32 0.0, %v723
        %725 = vdwg.mxu0
        %v728 = vunpack.c.l.b16 %v552
        %v729 = vunpack.c.l.b16 %v553
        %v730 = vpack.c.b16 %v729, %v728
        %v732 = vsel %vm616, %v730, 0
        %734 = vmatprep.subr.bf16.mxu0 0
        %735 = vmatpush1.bf16.msra.mxu0 0
        %736 = vmatprep.subr.bf16.mxu0 0
        %737 = vmatpush1.bf16.msra.mxu0 0
        %738 = vmatprep.subr.bf16.mxu0 0
        %739 = vmatpush1.bf16.msra.mxu0 0
        %740 = vmatprep.subr.bf16.mxu0 0
        %741 = vmatpush1.bf16.msra.mxu0 0
        %742 = vmatprep.subr.bf16.mxu0 0
        %743 = vmatpush1.bf16.msra.mxu0 0
        %744 = vmatprep.subr.bf16.mxu0 0
        %745 = vmatpush1.bf16.msra.mxu0 0
        %746 = vmatprep.subr.bf16.mxu0 0
        %747 = vmatpush1.bf16.msra.mxu0 0
        %748 = vmatprep.subr.bf16.mxu0 %v626
        %749 = vmatpush1.bf16.msra.mxu0 %v625
        %750 = vmatprep.subr.bf16.mxu0 0
        %751 = vmatpush2.bf16.msra.mxu0 0
        %752 = vmatprep.subr.bf16.mxu0 0
        %753 = vmatpush2.bf16.msra.mxu0 0
        %754 = vmatprep.subr.bf16.mxu0 0
        %755 = vmatpush2.bf16.msra.mxu0 0
        %756 = vmatprep.subr.bf16.mxu0 0
        %757 = vmatpush2.bf16.msra.mxu0 0
        %758 = vmatprep.subr.bf16.mxu0 0
        %759 = vmatpush2.bf16.msra.mxu0 0
        %760 = vmatprep.subr.bf16.mxu0 0
        %761 = vmatpush2.bf16.msra.mxu0 0
        %762 = vmatprep.subr.bf16.mxu0 0
        %763 = vmatpush2.bf16.msra.mxu0 0
        %764 = vmatprep.subr.bf16.mxu0 0
        %765 = vmatpush2.bf16.msra.mxu0 0
        %766 = vmatprep.mubr.bf16.mxu0 0
        %767 = vmatmul.mubr.bf16.gmra.mxu0 %v732
        %v768 = vpop.f32.mrf.mxu0
        %v769 = vadd.f32 %v718, %v768
        %v770 = vpop.f32.mrf.mxu0
        %v771 = vadd.f32 %v720, %v770
        %v772 = vpop.f32.mrf.mxu0
        %v773 = vadd.f32 %v722, %v772
        %v774 = vpop.f32.mrf.mxu0
        %v775 = vadd.f32 %v724, %v774
        %776 = vdwg.mxu0
        %v777 = vpack.c.bf16 %v600, %v598
        %v778 = vpack.c.bf16 %v601, %v599
        %v781 = vunpack.c.l.b16 %v556
        %v782 = vunpack.c.l.b16 %v557
        %v783 = vpack.c.b16 %v782, %v781
        %v785 = vsel %vm616, %v783, 0
        %787 = vmatprep.subr.bf16.mxu0 0
        %788 = vmatpush1.bf16.msra.mxu0 0
        %789 = vmatprep.subr.bf16.mxu0 0
        %790 = vmatpush1.bf16.msra.mxu0 0
        %791 = vmatprep.subr.bf16.mxu0 0
        %792 = vmatpush1.bf16.msra.mxu0 0
        %793 = vmatprep.subr.bf16.mxu0 0
        %794 = vmatpush1.bf16.msra.mxu0 0
        %795 = vmatprep.subr.bf16.mxu0 0
        %796 = vmatpush1.bf16.msra.mxu0 0
        %797 = vmatprep.subr.bf16.mxu0 0
        %798 = vmatpush1.bf16.msra.mxu0 0
        %799 = vmatprep.subr.bf16.mxu0 0
        %800 = vmatpush1.bf16.msra.mxu0 0
        %801 = vmatprep.subr.bf16.mxu0 %v778
        %802 = vmatpush1.bf16.msra.mxu0 %v777
        %803 = vmatprep.subr.bf16.mxu0 0
        %804 = vmatpush2.bf16.msra.mxu0 0
        %805 = vmatprep.subr.bf16.mxu0 0
        %806 = vmatpush2.bf16.msra.mxu0 0
        %807 = vmatprep.subr.bf16.mxu0 0
        %808 = vmatpush2.bf16.msra.mxu0 0
        %809 = vmatprep.subr.bf16.mxu0 0
        %810 = vmatpush2.bf16.msra.mxu0 0
        %811 = vmatprep.subr.bf16.mxu0 0
        %812 = vmatpush2.bf16.msra.mxu0 0
        %813 = vmatprep.subr.bf16.mxu0 0
        %814 = vmatpush2.bf16.msra.mxu0 0
        %815 = vmatprep.subr.bf16.mxu0 0
        %816 = vmatpush2.bf16.msra.mxu0 0
        %817 = vmatprep.subr.bf16.mxu0 0
        %818 = vmatpush2.bf16.msra.mxu0 0
        %819 = vmatprep.mubr.bf16.mxu0 0
        %820 = vmatmul.mubr.bf16.gmra.mxu0 %v785
        %v821 = vpop.f32.mrf.mxu0
        %v822 = vadd.f32 0.0, %v821
        %v823 = vpop.f32.mrf.mxu0
        %v824 = vadd.f32 0.0, %v823
        %v825 = vpop.f32.mrf.mxu0
        %v826 = vadd.f32 0.0, %v825
        %v827 = vpop.f32.mrf.mxu0
        %v828 = vadd.f32 0.0, %v827
        %829 = vdwg.mxu0
        %v830 = vadd.f32 %v769, %v822
        %v831 = vadd.f32 %v771, %v824
        %v832 = vadd.f32 %v773, %v826
        %v833 = vadd.f32 %v775, %v828
        %834 = vrot.lane.b32.xlu0 %v598, 127
        %v835 = vpop.permute.xlu0 %834
        %836 = vrot.lane.b32.xlu0 %v599, 127
        %v837 = vpop.permute.xlu0 %836
        %838 = vrot.lane.b32.xlu0 %v600, 127
        %v839 = vpop.permute.xlu0 %838
        %840 = vrot.lane.b32.xlu0 %v601, 127
        %v841 = vpop.permute.xlu0 %840
        %vm842 = vcmask 1039360
        %v843 = vsel %vm842, %v835, %v837
        %v844 = vsel %vm842, %v839, %v841
        %v851 = vsel %vm842, %v837, %v835
        %v852 = vsel %vm842, %v841, %v839
        %853 = vrot.lane.b32.xlu0 %v599, 15
        %v854 = vpop.permute.xlu0 %853
        %855 = vrot.lane.b32.xlu0 %v601, 15
        %v856 = vpop.permute.xlu0 %855
        %859 = vrot.lane.b32.xlu0 %v598, 15
        %v860 = vpop.permute.xlu0 %859
        %861 = vrot.lane.b32.xlu0 %v600, 15
        %v862 = vpop.permute.xlu0 %861
        %vm863 = vcmask 121856
        %v864 = vsel %vm863, %v860, %v854
        %v865 = vsel %vm863, %v862, %v856
        %v870 = vsel %vm863, %v854, %v860
        %v871 = vsel %vm863, %v856, %v862
        %v872 = vsel %vm550, 1, 0
        %v873 = vsel %vm551, 1, 0
        %vm874 = vcmp.eq.s32.totalorder %v872, 1
        %vm875 = vcmp.eq.s32.totalorder %v873, 1
        %v876 = vsel %vm874, %v870, %v843
        %v877 = vsel %vm875, %v864, %v851
        %v878 = vsel %vm874, %v871, %v844
        %v879 = vsel %vm875, %v865, %v852
        %v880 = vpack.c.bf16 %v878, %v876
        %v881 = vpack.c.bf16 %v879, %v877
        %v884 = vunpack.c.l.b16 %v558
        %v885 = vunpack.c.l.b16 %v559
        %v886 = vpack.c.b16 %v885, %v884
        %v888 = vsel %vm616, %v886, 0
        %890 = vmatprep.subr.bf16.mxu0 0
        %891 = vmatpush1.bf16.msra.mxu0 0
        %892 = vmatprep.subr.bf16.mxu0 0
        %893 = vmatpush1.bf16.msra.mxu0 0
        %894 = vmatprep.subr.bf16.mxu0 0
        %895 = vmatpush1.bf16.msra.mxu0 0
        %896 = vmatprep.subr.bf16.mxu0 0
        %897 = vmatpush1.bf16.msra.mxu0 0
        %898 = vmatprep.subr.bf16.mxu0 0
        %899 = vmatpush1.bf16.msra.mxu0 0
        %900 = vmatprep.subr.bf16.mxu0 0
        %901 = vmatpush1.bf16.msra.mxu0 0
        %902 = vmatprep.subr.bf16.mxu0 0
        %903 = vmatpush1.bf16.msra.mxu0 0
        %904 = vmatprep.subr.bf16.mxu0 %v881
        %905 = vmatpush1.bf16.msra.mxu0 %v880
        %906 = vmatprep.subr.bf16.mxu0 0
        %907 = vmatpush2.bf16.msra.mxu0 0
        %908 = vmatprep.subr.bf16.mxu0 0
        %909 = vmatpush2.bf16.msra.mxu0 0
        %910 = vmatprep.subr.bf16.mxu0 0
        %911 = vmatpush2.bf16.msra.mxu0 0
        %912 = vmatprep.subr.bf16.mxu0 0
        %913 = vmatpush2.bf16.msra.mxu0 0
        %914 = vmatprep.subr.bf16.mxu0 0
        %915 = vmatpush2.bf16.msra.mxu0 0
        %916 = vmatprep.subr.bf16.mxu0 0
        %917 = vmatpush2.bf16.msra.mxu0 0
        %918 = vmatprep.subr.bf16.mxu0 0
        %919 = vmatpush2.bf16.msra.mxu0 0
        %920 = vmatprep.subr.bf16.mxu0 0
        %921 = vmatpush2.bf16.msra.mxu0 0
        %922 = vmatprep.mubr.bf16.mxu0 0
        %923 = vmatmul.mubr.bf16.gmra.mxu0 %v888
        %v924 = vpop.f32.mrf.mxu0
        %v925 = vadd.f32 0.0, %v924
        %v926 = vpop.f32.mrf.mxu0
        %v927 = vadd.f32 0.0, %v926
        %v928 = vpop.f32.mrf.mxu0
        %v929 = vadd.f32 0.0, %v928
        %v930 = vpop.f32.mrf.mxu0
        %v931 = vadd.f32 0.0, %v930
        %932 = vdwg.mxu0
        %v933 = vadd.f32 %v830, %v925
        %v934 = vadd.f32 %v831, %v927
        %v935 = vadd.f32 %v832, %v929
        %v936 = vadd.f32 %v833, %v931
        %937 = vrot.lane.b32.xlu0 %v598, 112
        %v938 = vpop.permute.xlu0 %937
        %939 = vrot.lane.b32.xlu0 %v599, 112
        %v940 = vpop.permute.xlu0 %939
        %941 = vrot.lane.b32.xlu0 %v600, 112
        %v942 = vpop.permute.xlu0 %941
        %943 = vrot.lane.b32.xlu0 %v601, 112
        %v944 = vpop.permute.xlu0 %943
        %vm945 = vcmask 916480
        %v946 = vsel %vm945, %v938, %v940
        %v947 = vsel %vm945, %v942, %v944
        %v954 = vsel %vm945, %v940, %v938
        %v955 = vsel %vm945, %v944, %v942
        %v956 = vpack.c.bf16 %v947, %v946
        %v957 = vpack.c.bf16 %v955, %v954
        %v960 = vunpack.c.l.b16 %v560
        %v961 = vunpack.c.l.b16 %v561
        %v962 = vpack.c.b16 %v961, %v960
        %v964 = vsel %vm616, %v962, 0
        %966 = vmatprep.subr.bf16.mxu0 0
        %967 = vmatpush1.bf16.msra.mxu0 0
        %968 = vmatprep.subr.bf16.mxu0 0
        %969 = vmatpush1.bf16.msra.mxu0 0
        %970 = vmatprep.subr.bf16.mxu0 0
        %971 = vmatpush1.bf16.msra.mxu0 0
        %972 = vmatprep.subr.bf16.mxu0 0
        %973 = vmatpush1.bf16.msra.mxu0 0
        %974 = vmatprep.subr.bf16.mxu0 0
        %975 = vmatpush1.bf16.msra.mxu0 0
        %976 = vmatprep.subr.bf16.mxu0 0
        %977 = vmatpush1.bf16.msra.mxu0 0
        %978 = vmatprep.subr.bf16.mxu0 0
        %979 = vmatpush1.bf16.msra.mxu0 0
        %980 = vmatprep.subr.bf16.mxu0 %v957
        %981 = vmatpush1.bf16.msra.mxu0 %v956
        %982 = vmatprep.subr.bf16.mxu0 0
        %983 = vmatpush2.bf16.msra.mxu0 0
        %984 = vmatprep.subr.bf16.mxu0 0
        %985 = vmatpush2.bf16.msra.mxu0 0
        %986 = vmatprep.subr.bf16.mxu0 0
        %987 = vmatpush2.bf16.msra.mxu0 0
        %988 = vmatprep.subr.bf16.mxu0 0
        %989 = vmatpush2.bf16.msra.mxu0 0
        %990 = vmatprep.subr.bf16.mxu0 0
        %991 = vmatpush2.bf16.msra.mxu0 0
        %992 = vmatprep.subr.bf16.mxu0 0
        %993 = vmatpush2.bf16.msra.mxu0 0
        %994 = vmatprep.subr.bf16.mxu0 0
        %995 = vmatpush2.bf16.msra.mxu0 0
        %996 = vmatprep.subr.bf16.mxu0 0
        %997 = vmatpush2.bf16.msra.mxu0 0
        %998 = vmatprep.mubr.bf16.mxu0 0
        %999 = vmatmul.mubr.bf16.gmra.mxu0 %v964
        %v1000 = vpop.f32.mrf.mxu0
        %v1001 = vadd.f32 0.0, %v1000
        %v1002 = vpop.f32.mrf.mxu0
        %v1003 = vadd.f32 0.0, %v1002
        %v1004 = vpop.f32.mrf.mxu0
        %v1005 = vadd.f32 0.0, %v1004
        %v1006 = vpop.f32.mrf.mxu0
        %v1007 = vadd.f32 0.0, %v1006
        %1008 = vdwg.mxu0
        %v1009 = vadd.f32 %v933, %v1001
        %v1010 = vadd.f32 %v934, %v1003
        %v1011 = vadd.f32 %v935, %v1005
        %v1012 = vadd.f32 %v936, %v1007
        %1014 = vset.pattern.permute.xlu0 0
        %1015 = vperm.xlu0 %1014, %v572
        %v1016 = vpop.permute.xlu0 %1015
        %1019 = vset.pattern.permute.xlu0 0
        %1020 = vperm.xlu0 %1019, %v573
        %v1021 = vpop.permute.xlu0 %1020
        %v1023 = vadd.f32 %v1009, %v1016
        %v1024 = vadd.f32 %v1010, %v1016
        %v1025 = vadd.f32 %v1011, %v1021
        %v1026 = vadd.f32 %v1012, %v1021
        %v1027 = vadd.f32 %v1023, %v1024
        %v1028 = vadd.f32 %v1027, %v1025
        %v1029 = vadd.f32 %v1028, %v1026
        %1030 = vadd.xlane.f32.xlu0 %v1029
        %v1031 = vpop.xlane.xlu0 %1030
        %v1032 = vrot.slane %v1031, 4
        %v1033 = vadd.f32 %v1031, %v1032
        %v1034 = vrot.slane %v1033, 2
        %v1035 = vadd.f32 %v1033, %v1034
        %v1036 = vrot.slane %v1035, 1
        %v1037 = vadd.f32 %v1035, %v1036
        %s1038 = vtos %v1037
        %v1039 = vstv %s1038
        %v1040 = vrcp.pop 4096.0
        %v1041 = vmul.f32 %v1039, %v1040
        %v1042 = vmul.f32 %v1023, %v1023
        %v1043 = vmul.f32 %v1024, %v1024
        %v1044 = vmul.f32 %v1025, %v1025
        %v1045 = vmul.f32 %v1026, %v1026
        %v1046 = vadd.f32 %v1042, %v1043
        %v1047 = vadd.f32 %v1046, %v1044
        %v1048 = vadd.f32 %v1047, %v1045
        %1049 = vadd.xlane.f32.xlu0 %v1048
        %v1050 = vpop.xlane.xlu0 %1049
        %v1051 = vrot.slane %v1050, 4
        %v1052 = vadd.f32 %v1050, %v1051
        %v1053 = vrot.slane %v1052, 2
        %v1054 = vadd.f32 %v1052, %v1053
        %v1055 = vrot.slane %v1054, 1
        %v1056 = vadd.f32 %v1054, %v1055
        %s1057 = vtos %v1056
        %v1058 = vstv %s1057
        %v1059 = vmul.f32 %v1058, %v1040
        %v1060 = vmul.f32 %v1041, %v1041
        %v1061 = vsub.f32 %v1059, %v1060
        %v1062 = vsub.f32 %v1023, %v1041
        %v1063 = vsub.f32 %v1024, %v1041
        %v1064 = vsub.f32 %v1025, %v1041
        %v1065 = vsub.f32 %v1026, %v1041
        %v1066 = vadd.f32 %v1061, 1e-05
        %v1067 = vrsqrt.pop %v1066
        %v1068 = vmul.f32 %v1062, %v1067
        %v1069 = vmul.f32 %v1063, %v1067
        %v1070 = vmul.f32 %v1064, %v1067
        %v1071 = vmul.f32 %v1065, %v1067
        %v1072 = vmul.f32 %v1068, %v576
        %v1073 = vmul.f32 %v1069, %v577
        %v1074 = vmul.f32 %v1070, %v578
        %v1075 = vmul.f32 %v1071, %v579
        %v1076 = vadd.f32 %v1072, %v580
        %v1077 = vadd.f32 %v1073, %v581
        %v1078 = vadd.f32 %v1074, %v582
        %v1079 = vadd.f32 %v1075, %v583
        %v1080 = vmax.f32 %v1076, 0.0
        %v1081 = vmax.f32 %v1077, 0.0
        %v1082 = vmax.f32 %v1078, 0.0
        %v1083 = vmax.f32 %v1079, 0.0
        %1086 = vrot.lane.b32.xlu0 %v1081, 16
        %v1087 = vpop.permute.xlu0 %1086
        %1088 = vrot.lane.b32.xlu0 %v1083, 16
        %v1089 = vpop.permute.xlu0 %1088
        %1094 = vrot.lane.b32.xlu0 %v1080, 16
        %v1095 = vpop.permute.xlu0 %1094
        %1096 = vrot.lane.b32.xlu0 %v1082, 16
        %v1097 = vpop.permute.xlu0 %1096
        %v1098 = vsel %vm616, %v1095, %v1087
        %v1099 = vsel %vm616, %v1097, %v1089
        %v1104 = vsel %vm616, %v1087, %v1095
        %v1105 = vsel %vm616, %v1089, %v1097
        %v1106 = vpack.c.bf16 %v1105, %v1104
        %v1107 = vpack.c.bf16 %v1099, %v1098
        %1108 = vrot.lane.b32.xlu0 %v1081, 1
        %v1109 = vpop.permute.xlu0 %1108
        %1110 = vrot.lane.b32.xlu0 %v1083, 1
        %v1111 = vpop.permute.xlu0 %1110
        %1114 = vrot.lane.b32.xlu0 %v1080, 1
        %v1115 = vpop.permute.xlu0 %1114
        %1116 = vrot.lane.b32.xlu0 %v1082, 1
        %v1117 = vpop.permute.xlu0 %1116
        %v1118 = vsel %vm637, %v1115, %v1109
        %v1119 = vsel %vm637, %v1117, %v1111
        %v1124 = vsel %vm637, %v1109, %v1115
        %v1125 = vsel %vm637, %v1111, %v1117
        %1126 = vrot.lane.b32.xlu0 %v1080, 113
        %v1127 = vpop.permute.xlu0 %1126
        %1128 = vrot.lane.b32.xlu0 %v1081, 113
        %v1129 = vpop.permute.xlu0 %1128
        %1130 = vrot.lane.b32.xlu0 %v1082, 113
        %v1131 = vpop.permute.xlu0 %1130
        %1132 = vrot.lane.b32.xlu0 %v1083, 113
        %v1133 = vpop.permute.xlu0 %1132
        %v1134 = vsel %vm654, %v1127, %v1129
        %v1135 = vsel %vm654, %v1131, %v1133
        %v1142 = vsel %vm654, %v1129, %v1127
        %v1143 = vsel %vm654, %v1133, %v1131
        %v1144 = vsel %vm667, %v1134, %v1124
        %v1145 = vsel %vm668, %v1142, %v1118
        %v1146 = vsel %vm667, %v1135, %v1125
        %v1147 = vsel %vm668, %v1143, %v1119
        %v1148 = vpack.c.bf16 %v1146, %v1144
        %v1149 = vpack.c.bf16 %v1147, %v1145
        %v1152 = vunpack.c.l.b16 %v564
        %v1153 = vunpack.c.l.b16 %v565
        %v1154 = vpack.c.b16 %v1153, %v1152
        %v1156 = vsel %vm616, %v1154, 0
        %1158 = vmatprep.subr.bf16.mxu0 0
        %1159 = vmatpush1.bf16.msra.mxu0 0
        %1160 = vmatprep.subr.bf16.mxu0 0
        %1161 = vmatpush1.bf16.msra.mxu0 0
        %1162 = vmatprep.subr.bf16.mxu0 0
        %1163 = vmatpush1.bf16.msra.mxu0 0
        %1164 = vmatprep.subr.bf16.mxu0 0
        %1165 = vmatpush1.bf16.msra.mxu0 0
        %1166 = vmatprep.subr.bf16.mxu0 0
        %1167 = vmatpush1.bf16.msra.mxu0 0
        %1168 = vmatprep.subr.bf16.mxu0 0
        %1169 = vmatpush1.bf16.msra.mxu0 0
        %1170 = vmatprep.subr.bf16.mxu0 0
        %1171 = vmatpush1.bf16.msra.mxu0 0
        %1172 = vmatprep.subr.bf16.mxu0 %v1149
        %1173 = vmatpush1.bf16.msra.mxu0 %v1148
        %1174 = vmatprep.subr.bf16.mxu0 0
        %1175 = vmatpush2.bf16.msra.mxu0 0
        %1176 = vmatprep.subr.bf16.mxu0 0
        %1177 = vmatpush2.bf16.msra.mxu0 0
        %1178 = vmatprep.subr.bf16.mxu0 0
        %1179 = vmatpush2.bf16.msra.mxu0 0
        %1180 = vmatprep.subr.bf16.mxu0 0
        %1181 = vmatpush2.bf16.msra.mxu0 0
        %1182 = vmatprep.subr.bf16.mxu0 0
        %1183 = vmatpush2.bf16.msra.mxu0 0
        %1184 = vmatprep.subr.bf16.mxu0 0
        %1185 = vmatpush2.bf16.msra.mxu0 0
        %1186 = vmatprep.subr.bf16.mxu0 0
        %1187 = vmatpush2.bf16.msra.mxu0 0
        %1188 = vmatprep.subr.bf16.mxu0 0
        %1189 = vmatpush2.bf16.msra.mxu0 0
        %1190 = vmatprep.mubr.bf16.mxu0 0
        %1191 = vmatmul.mubr.bf16.gmra.mxu0 %v1156
        %v1192 = vpop.f32.mrf.mxu0
        %v1193 = vadd.f32 0.0, %v1192
        %v1194 = vpop.f32.mrf.mxu0
        %v1195 = vadd.f32 0.0, %v1194
        %v1196 = vpop.f32.mrf.mxu0
        %v1197 = vadd.f32 0.0, %v1196
        %v1198 = vpop.f32.mrf.mxu0
        %v1199 = vadd.f32 0.0, %v1198
        %1200 = vdwg.mxu0
        %v1203 = vunpack.c.l.b16 %v562
        %v1204 = vunpack.c.l.b16 %v563
        %v1205 = vpack.c.b16 %v1204, %v1203
        %v1207 = vsel %vm616, %v1205, 0
        %1209 = vmatprep.subr.bf16.mxu0 0
        %1210 = vmatpush1.bf16.msra.mxu0 0
        %1211 = vmatprep.subr.bf16.mxu0 0
        %1212 = vmatpush1.bf16.msra.mxu0 0
        %1213 = vmatprep.subr.bf16.mxu0 0
        %1214 = vmatpush1.bf16.msra.mxu0 0
        %1215 = vmatprep.subr.bf16.mxu0 0
        %1216 = vmatpush1.bf16.msra.mxu0 0
        %1217 = vmatprep.subr.bf16.mxu0 0
        %1218 = vmatpush1.bf16.msra.mxu0 0
        %1219 = vmatprep.subr.bf16.mxu0 0
        %1220 = vmatpush1.bf16.msra.mxu0 0
        %1221 = vmatprep.subr.bf16.mxu0 0
        %1222 = vmatpush1.bf16.msra.mxu0 0
        %1223 = vmatprep.subr.bf16.mxu0 %v1107
        %1224 = vmatpush1.bf16.msra.mxu0 %v1106
        %1225 = vmatprep.subr.bf16.mxu0 0
        %1226 = vmatpush2.bf16.msra.mxu0 0
        %1227 = vmatprep.subr.bf16.mxu0 0
        %1228 = vmatpush2.bf16.msra.mxu0 0
        %1229 = vmatprep.subr.bf16.mxu0 0
        %1230 = vmatpush2.bf16.msra.mxu0 0
        %1231 = vmatprep.subr.bf16.mxu0 0
        %1232 = vmatpush2.bf16.msra.mxu0 0
        %1233 = vmatprep.subr.bf16.mxu0 0
        %1234 = vmatpush2.bf16.msra.mxu0 0
        %1235 = vmatprep.subr.bf16.mxu0 0
        %1236 = vmatpush2.bf16.msra.mxu0 0
        %1237 = vmatprep.subr.bf16.mxu0 0
        %1238 = vmatpush2.bf16.msra.mxu0 0
        %1239 = vmatprep.subr.bf16.mxu0 0
        %1240 = vmatpush2.bf16.msra.mxu0 0
        %1241 = vmatprep.mubr.bf16.mxu0 0
        %1242 = vmatmul.mubr.bf16.gmra.mxu0 %v1207
        %v1243 = vpop.f32.mrf.mxu0
        %v1244 = vadd.f32 %v1193, %v1243
        %v1245 = vpop.f32.mrf.mxu0
        %v1246 = vadd.f32 %v1195, %v1245
        %v1247 = vpop.f32.mrf.mxu0
        %v1248 = vadd.f32 %v1197, %v1247
        %v1249 = vpop.f32.mrf.mxu0
        %v1250 = vadd.f32 %v1199, %v1249
        %1251 = vdwg.mxu0
        %v1252 = vpack.c.bf16 %v1082, %v1080
        %v1253 = vpack.c.bf16 %v1083, %v1081
        %v1256 = vunpack.c.l.b16 %v566
        %v1257 = vunpack.c.l.b16 %v567
        %v1258 = vpack.c.b16 %v1257, %v1256
        %v1260 = vsel %vm616, %v1258, 0
        %1262 = vmatprep.subr.bf16.mxu0 0
        %1263 = vmatpush1.bf16.msra.mxu0 0
        %1264 = vmatprep.subr.bf16.mxu0 0
        %1265 = vmatpush1.bf16.msra.mxu0 0
        %1266 = vmatprep.subr.bf16.mxu0 0
        %1267 = vmatpush1.bf16.msra.mxu0 0
        %1268 = vmatprep.subr.bf16.mxu0 0
        %1269 = vmatpush1.bf16.msra.mxu0 0
        %1270 = vmatprep.subr.bf16.mxu0 0
        %1271 = vmatpush1.bf16.msra.mxu0 0
        %1272 = vmatprep.subr.bf16.mxu0 0
        %1273 = vmatpush1.bf16.msra.mxu0 0
        %1274 = vmatprep.subr.bf16.mxu0 0
        %1275 = vmatpush1.bf16.msra.mxu0 0
        %1276 = vmatprep.subr.bf16.mxu0 %v1253
        %1277 = vmatpush1.bf16.msra.mxu0 %v1252
        %1278 = vmatprep.subr.bf16.mxu0 0
        %1279 = vmatpush2.bf16.msra.mxu0 0
        %1280 = vmatprep.subr.bf16.mxu0 0
        %1281 = vmatpush2.bf16.msra.mxu0 0
        %1282 = vmatprep.subr.bf16.mxu0 0
        %1283 = vmatpush2.bf16.msra.mxu0 0
        %1284 = vmatprep.subr.bf16.mxu0 0
        %1285 = vmatpush2.bf16.msra.mxu0 0
        %1286 = vmatprep.subr.bf16.mxu0 0
        %1287 = vmatpush2.bf16.msra.mxu0 0
        %1288 = vmatprep.subr.bf16.mxu0 0
        %1289 = vmatpush2.bf16.msra.mxu0 0
        %1290 = vmatprep.subr.bf16.mxu0 0
        %1291 = vmatpush2.bf16.msra.mxu0 0
        %1292 = vmatprep.subr.bf16.mxu0 0
        %1293 = vmatpush2.bf16.msra.mxu0 0
        %1294 = vmatprep.mubr.bf16.mxu0 0
        %1295 = vmatmul.mubr.bf16.gmra.mxu0 %v1260
        %v1296 = vpop.f32.mrf.mxu0
        %v1297 = vadd.f32 0.0, %v1296
        %v1298 = vpop.f32.mrf.mxu0
        %v1299 = vadd.f32 0.0, %v1298
        %v1300 = vpop.f32.mrf.mxu0
        %v1301 = vadd.f32 0.0, %v1300
        %v1302 = vpop.f32.mrf.mxu0
        %v1303 = vadd.f32 0.0, %v1302
        %1304 = vdwg.mxu0
        %v1305 = vadd.f32 %v1244, %v1297
        %v1306 = vadd.f32 %v1246, %v1299
        %v1307 = vadd.f32 %v1248, %v1301
        %v1308 = vadd.f32 %v1250, %v1303
        %1309 = vrot.lane.b32.xlu0 %v1080, 127
        %v1310 = vpop.permute.xlu0 %1309
        %1311 = vrot.lane.b32.xlu0 %v1081, 127
        %v1312 = vpop.permute.xlu0 %1311
        %1313 = vrot.lane.b32.xlu0 %v1082, 127
        %v1314 = vpop.permute.xlu0 %1313
        %1315 = vrot.lane.b32.xlu0 %v1083, 127
        %v1316 = vpop.permute.xlu0 %1315
        %v1317 = vsel %vm842, %v1310, %v1312
        %v1318 = vsel %vm842, %v1314, %v1316
        %v1325 = vsel %vm842, %v1312, %v1310
        %v1326 = vsel %vm842, %v1316, %v1314
        %1327 = vrot.lane.b32.xlu0 %v1081, 15
        %v1328 = vpop.permute.xlu0 %1327
        %1329 = vrot.lane.b32.xlu0 %v1083, 15
        %v1330 = vpop.permute.xlu0 %1329
        %1333 = vrot.lane.b32.xlu0 %v1080, 15
        %v1334 = vpop.permute.xlu0 %1333
        %1335 = vrot.lane.b32.xlu0 %v1082, 15
        %v1336 = vpop.permute.xlu0 %1335
        %v1337 = vsel %vm863, %v1334, %v1328
        %v1338 = vsel %vm863, %v1336, %v1330
        %v1343 = vsel %vm863, %v1328, %v1334
        %v1344 = vsel %vm863, %v1330, %v1336
        %v1345 = vsel %vm874, %v1343, %v1317
        %v1346 = vsel %vm875, %v1337, %v1325
        %v1347 = vsel %vm874, %v1344, %v1318
        %v1348 = vsel %vm875, %v1338, %v1326
        %v1349 = vpack.c.bf16 %v1347, %v1345
        %v1350 = vpack.c.bf16 %v1348, %v1346
        %v1353 = vunpack.c.l.b16 %v568
        %v1354 = vunpack.c.l.b16 %v569
        %v1355 = vpack.c.b16 %v1354, %v1353
        %v1357 = vsel %vm616, %v1355, 0
        %1359 = vmatprep.subr.bf16.mxu0 0
        %1360 = vmatpush1.bf16.msra.mxu0 0
        %1361 = vmatprep.subr.bf16.mxu0 0
        %1362 = vmatpush1.bf16.msra.mxu0 0
        %1363 = vmatprep.subr.bf16.mxu0 0
        %1364 = vmatpush1.bf16.msra.mxu0 0
        %1365 = vmatprep.subr.bf16.mxu0 0
        %1366 = vmatpush1.bf16.msra.mxu0 0
        %1367 = vmatprep.subr.bf16.mxu0 0
        %1368 = vmatpush1.bf16.msra.mxu0 0
        %1369 = vmatprep.subr.bf16.mxu0 0
        %1370 = vmatpush1.bf16.msra.mxu0 0
        %1371 = vmatprep.subr.bf16.mxu0 0
        %1372 = vmatpush1.bf16.msra.mxu0 0
        %1373 = vmatprep.subr.bf16.mxu0 %v1350
        %1374 = vmatpush1.bf16.msra.mxu0 %v1349
        %1375 = vmatprep.subr.bf16.mxu0 0
        %1376 = vmatpush2.bf16.msra.mxu0 0
        %1377 = vmatprep.subr.bf16.mxu0 0
        %1378 = vmatpush2.bf16.msra.mxu0 0
        %1379 = vmatprep.subr.bf16.mxu0 0
        %1380 = vmatpush2.bf16.msra.mxu0 0
        %1381 = vmatprep.subr.bf16.mxu0 0
        %1382 = vmatpush2.bf16.msra.mxu0 0
        %1383 = vmatprep.subr.bf16.mxu0 0
        %1384 = vmatpush2.bf16.msra.mxu0 0
        %1385 = vmatprep.subr.bf16.mxu0 0
        %1386 = vmatpush2.bf16.msra.mxu0 0
        %1387 = vmatprep.subr.bf16.mxu0 0
        %1388 = vmatpush2.bf16.msra.mxu0 0
        %1389 = vmatprep.subr.bf16.mxu0 0
        %1390 = vmatpush2.bf16.msra.mxu0 0
        %1391 = vmatprep.mubr.bf16.mxu0 0
        %1392 = vmatmul.mubr.bf16.gmra.mxu0 %v1357
        %v1393 = vpop.f32.mrf.mxu0
        %v1394 = vadd.f32 0.0, %v1393
        %v1395 = vpop.f32.mrf.mxu0
        %v1396 = vadd.f32 0.0, %v1395
        %v1397 = vpop.f32.mrf.mxu0
        %v1398 = vadd.f32 0.0, %v1397
        %v1399 = vpop.f32.mrf.mxu0
        %v1400 = vadd.f32 0.0, %v1399
        %1401 = vdwg.mxu0
        %v1402 = vadd.f32 %v1305, %v1394
        %v1403 = vadd.f32 %v1306, %v1396
        %v1404 = vadd.f32 %v1307, %v1398
        %v1405 = vadd.f32 %v1308, %v1400
        %1406 = vrot.lane.b32.xlu0 %v1080, 112
        %v1407 = vpop.permute.xlu0 %1406
        %1408 = vrot.lane.b32.xlu0 %v1081, 112
        %v1409 = vpop.permute.xlu0 %1408
        %1410 = vrot.lane.b32.xlu0 %v1082, 112
        %v1411 = vpop.permute.xlu0 %1410
        %1412 = vrot.lane.b32.xlu0 %v1083, 112
        %v1413 = vpop.permute.xlu0 %1412
        %v1414 = vsel %vm945, %v1407, %v1409
        %v1415 = vsel %vm945, %v1411, %v1413
        %v1422 = vsel %vm945, %v1409, %v1407
        %v1423 = vsel %vm945, %v1413, %v1411
        %v1424 = vpack.c.bf16 %v1415, %v1414
        %v1425 = vpack.c.bf16 %v1423, %v1422
        %v1428 = vunpack.c.l.b16 %v570
        %v1429 = vunpack.c.l.b16 %v571
        %v1430 = vpack.c.b16 %v1429, %v1428
        %v1432 = vsel %vm616, %v1430, 0
        %1434 = vmatprep.subr.bf16.mxu0 0
        %1435 = vmatpush1.bf16.msra.mxu0 0
        %1436 = vmatprep.subr.bf16.mxu0 0
        %1437 = vmatpush1.bf16.msra.mxu0 0
        %1438 = vmatprep.subr.bf16.mxu0 0
        %1439 = vmatpush1.bf16.msra.mxu0 0
        %1440 = vmatprep.subr.bf16.mxu0 0
        %1441 = vmatpush1.bf16.msra.mxu0 0
        %1442 = vmatprep.subr.bf16.mxu0 0
        %1443 = vmatpush1.bf16.msra.mxu0 0
        %1444 = vmatprep.subr.bf16.mxu0 0
        %1445 = vmatpush1.bf16.msra.mxu0 0
        %1446 = vmatprep.subr.bf16.mxu0 0
        %1447 = vmatpush1.bf16.msra.mxu0 0
        %1448 = vmatprep.subr.bf16.mxu0 %v1425
        %1449 = vmatpush1.bf16.msra.mxu0 %v1424
        %1450 = vmatprep.subr.bf16.mxu0 0
        %1451 = vmatpush2.bf16.msra.mxu0 0
        %1452 = vmatprep.subr.bf16.mxu0 0
        %1453 = vmatpush2.bf16.msra.mxu0 0
        %1454 = vmatprep.subr.bf16.mxu0 0
        %1455 = vmatpush2.bf16.msra.mxu0 0
        %1456 = vmatprep.subr.bf16.mxu0 0
        %1457 = vmatpush2.bf16.msra.mxu0 0
        %1458 = vmatprep.subr.bf16.mxu0 0
        %1459 = vmatpush2.bf16.msra.mxu0 0
        %1460 = vmatprep.subr.bf16.mxu0 0
        %1461 = vmatpush2.bf16.msra.mxu0 0
        %1462 = vmatprep.subr.bf16.mxu0 0
        %1463 = vmatpush2.bf16.msra.mxu0 0
        %1464 = vmatprep.subr.bf16.mxu0 0
        %1465 = vmatpush2.bf16.msra.mxu0 0
        %1466 = vmatprep.mubr.bf16.mxu0 0
        %1467 = vmatmul.mubr.bf16.gmra.mxu0 %v1432
        %v1468 = vpop.f32.mrf.mxu0
        %v1469 = vadd.f32 0.0, %v1468
        %v1470 = vpop.f32.mrf.mxu0
        %v1471 = vadd.f32 0.0, %v1470
        %v1472 = vpop.f32.mrf.mxu0
        %v1473 = vadd.f32 0.0, %v1472
        %v1474 = vpop.f32.mrf.mxu0
        %v1475 = vadd.f32 0.0, %v1474
        %1476 = vdwg.mxu0
        %v1477 = vadd.f32 %v1402, %v1469
        %v1478 = vadd.f32 %v1403, %v1471
        %v1479 = vadd.f32 %v1404, %v1473
        %v1480 = vadd.f32 %v1405, %v1475
        %1482 = vset.pattern.permute.xlu0 0
        %1483 = vperm.xlu0 %1482, %v574
        %v1484 = vpop.permute.xlu0 %1483
        %1487 = vset.pattern.permute.xlu0 0
        %1488 = vperm.xlu0 %1487, %v575
        %v1489 = vpop.permute.xlu0 %1488
        %v1491 = vadd.f32 %v1477, %v1484
        %v1492 = vadd.f32 %v1478, %v1484
        %v1493 = vadd.f32 %v1479, %v1489
        %v1494 = vadd.f32 %v1480, %v1489
        %v1495 = vadd.f32 %v1491, %v1492
        %v1496 = vadd.f32 %v1495, %v1493
        %v1497 = vadd.f32 %v1496, %v1494
        %1498 = vadd.xlane.f32.xlu0 %v1497
        %v1499 = vpop.xlane.xlu0 %1498
        %v1500 = vrot.slane %v1499, 4
        %v1501 = vadd.f32 %v1499, %v1500
        %v1502 = vrot.slane %v1501, 2
        %v1503 = vadd.f32 %v1501, %v1502
        %v1504 = vrot.slane %v1503, 1
        %v1505 = vadd.f32 %v1503, %v1504
        %s1506 = vtos %v1505
        %v1507 = vstv %s1506
        %v1508 = vmul.f32 %v1507, %v1040
        %v1509 = vmul.f32 %v1491, %v1491
        %v1510 = vmul.f32 %v1492, %v1492
        %v1511 = vmul.f32 %v1493, %v1493
        %v1512 = vmul.f32 %v1494, %v1494
        %v1513 = vadd.f32 %v1509, %v1510
        %v1514 = vadd.f32 %v1513, %v1511
        %v1515 = vadd.f32 %v1514, %v1512
        %1516 = vadd.xlane.f32.xlu0 %v1515
        %v1517 = vpop.xlane.xlu0 %1516
        %v1518 = vrot.slane %v1517, 4
        %v1519 = vadd.f32 %v1517, %v1518
        %v1520 = vrot.slane %v1519, 2
        %v1521 = vadd.f32 %v1519, %v1520
        %v1522 = vrot.slane %v1521, 1
        %v1523 = vadd.f32 %v1521, %v1522
        %s1524 = vtos %v1523
        %v1525 = vstv %s1524
        %v1526 = vmul.f32 %v1525, %v1040
        %v1527 = vmul.f32 %v1508, %v1508
        %v1528 = vsub.f32 %v1526, %v1527
        %v1529 = vsub.f32 %v1491, %v1508
        %v1530 = vsub.f32 %v1492, %v1508
        %v1531 = vsub.f32 %v1493, %v1508
        %v1532 = vsub.f32 %v1494, %v1508
        %v1533 = vadd.f32 %v1528, 1e-05
        %v1534 = vrsqrt.pop %v1533
        %v1535 = vmul.f32 %v1529, %v1534
        %v1536 = vmul.f32 %v1530, %v1534
        %v1537 = vmul.f32 %v1531, %v1534
        %v1538 = vmul.f32 %v1532, %v1534
        %v1539 = vmul.f32 %v1535, %v584
        %v1540 = vmul.f32 %v1536, %v585
        %v1541 = vmul.f32 %v1537, %v586
        %v1542 = vmul.f32 %v1538, %v587
        %v1543 = vadd.f32 %v1539, %v588
        %v1544 = vadd.f32 %v1540, %v589
        %v1545 = vadd.f32 %v1541, %v590
        %v1546 = vadd.f32 %v1542, %v591
        %v1547 = vadd.f32 %v1543, %v1544
        %1548 = vadd.xlane.f32.xlu0 %v1547
        %v1549 = vpop.xlane.xlu0 %1548
        %v1550 = vadd.f32 %v1545, %v1546
        %1551 = vadd.xlane.f32.xlu0 %v1550
        %v1552 = vpop.xlane.xlu0 %1551
        %v1553 = vrcp.pop 256.0
        %v1554 = vmul.f32 %v1549, %v1553
        %v1555 = vmul.f32 %v1552, %v1553
        %s1556 = scalar_lea.vmem %s459, 32 [#allocation2]
        %v1557 = vld [vmem:[%s1556] sm:$0xff]
        %v1558 = vld [vmem:[%s1556 + $0x8] sm:$0xff]
        %v1559 = vld [vmem:[%s1556 + $0x10] sm:$0xff]
        %v1560 = vld [vmem:[%s1556 + $0x18] sm:$0xff]
        %1563 = vrot.lane.b32.xlu0 %v1558, 16
        %v1564 = vpop.permute.xlu0 %1563
        %1565 = vrot.lane.b32.xlu0 %v1560, 16
        %v1566 = vpop.permute.xlu0 %1565
        %1571 = vrot.lane.b32.xlu0 %v1557, 16
        %v1572 = vpop.permute.xlu0 %1571
        %1573 = vrot.lane.b32.xlu0 %v1559, 16
        %v1574 = vpop.permute.xlu0 %1573
        %v1575 = vsel %vm616, %v1572, %v1564
        %v1576 = vsel %vm616, %v1574, %v1566
        %v1581 = vsel %vm616, %v1564, %v1572
        %v1582 = vsel %vm616, %v1566, %v1574
        %v1583 = vpack.c.bf16 %v1582, %v1581
        %v1584 = vpack.c.bf16 %v1576, %v1575
        %1585 = vrot.lane.b32.xlu0 %v1558, 1
        %v1586 = vpop.permute.xlu0 %1585
        %1587 = vrot.lane.b32.xlu0 %v1560, 1
        %v1588 = vpop.permute.xlu0 %1587
        %1591 = vrot.lane.b32.xlu0 %v1557, 1
        %v1592 = vpop.permute.xlu0 %1591
        %1593 = vrot.lane.b32.xlu0 %v1559, 1
        %v1594 = vpop.permute.xlu0 %1593
        %v1595 = vsel %vm637, %v1592, %v1586
        %v1596 = vsel %vm637, %v1594, %v1588
        %v1601 = vsel %vm637, %v1586, %v1592
        %v1602 = vsel %vm637, %v1588, %v1594
        %1603 = vrot.lane.b32.xlu0 %v1557, 113
        %v1604 = vpop.permute.xlu0 %1603
        %1605 = vrot.lane.b32.xlu0 %v1558, 113
        %v1606 = vpop.permute.xlu0 %1605
        %1607 = vrot.lane.b32.xlu0 %v1559, 113
        %v1608 = vpop.permute.xlu0 %1607
        %1609 = vrot.lane.b32.xlu0 %v1560, 113
        %v1610 = vpop.permute.xlu0 %1609
        %v1611 = vsel %vm654, %v1604, %v1606
        %v1612 = vsel %vm654, %v1608, %v1610
        %v1619 = vsel %vm654, %v1606, %v1604
        %v1620 = vsel %vm654, %v1610, %v1608
        %v1621 = vsel %vm667, %v1611, %v1601
        %v1622 = vsel %vm668, %v1619, %v1595
        %v1623 = vsel %vm667, %v1612, %v1602
        %v1624 = vsel %vm668, %v1620, %v1596
        %v1625 = vpack.c.bf16 %v1623, %v1621
        %v1626 = vpack.c.bf16 %v1624, %v1622
        %1627 = vmatprep.subr.bf16.mxu0 0
        %1628 = vmatpush1.bf16.msra.mxu0 0
        %1629 = vmatprep.subr.bf16.mxu0 0
        %1630 = vmatpush1.bf16.msra.mxu0 0
        %1631 = vmatprep.subr.bf16.mxu0 0
        %1632 = vmatpush1.bf16.msra.mxu0 0
        %1633 = vmatprep.subr.bf16.mxu0 0
        %1634 = vmatpush1.bf16.msra.mxu0 0
        %1635 = vmatprep.subr.bf16.mxu0 0
        %1636 = vmatpush1.bf16.msra.mxu0 0
        %1637 = vmatprep.subr.bf16.mxu0 0
        %1638 = vmatpush1.bf16.msra.mxu0 0
        %1639 = vmatprep.subr.bf16.mxu0 0
        %1640 = vmatpush1.bf16.msra.mxu0 0
        %1641 = vmatprep.subr.bf16.mxu0 %v1626
        %1642 = vmatpush1.bf16.msra.mxu0 %v1625
        %1643 = vmatprep.subr.bf16.mxu0 0
        %1644 = vmatpush2.bf16.msra.mxu0 0
        %1645 = vmatprep.subr.bf16.mxu0 0
        %1646 = vmatpush2.bf16.msra.mxu0 0
        %1647 = vmatprep.subr.bf16.mxu0 0
        %1648 = vmatpush2.bf16.msra.mxu0 0
        %1649 = vmatprep.subr.bf16.mxu0 0
        %1650 = vmatpush2.bf16.msra.mxu0 0
        %1651 = vmatprep.subr.bf16.mxu0 0
        %1652 = vmatpush2.bf16.msra.mxu0 0
        %1653 = vmatprep.subr.bf16.mxu0 0
        %1654 = vmatpush2.bf16.msra.mxu0 0
        %1655 = vmatprep.subr.bf16.mxu0 0
        %1656 = vmatpush2.bf16.msra.mxu0 0
        %1657 = vmatprep.subr.bf16.mxu0 0
        %1658 = vmatpush2.bf16.msra.mxu0 0
        %1659 = vmatprep.mubr.bf16.mxu0 0
        %1660 = vmatmul.mubr.bf16.gmra.mxu0 %v681
        %v1661 = vpop.f32.mrf.mxu0
        %v1662 = vadd.f32 0.0, %v1661
        %v1663 = vpop.f32.mrf.mxu0
        %v1664 = vadd.f32 0.0, %v1663
        %v1665 = vpop.f32.mrf.mxu0
        %v1666 = vadd.f32 0.0, %v1665
        %v1667 = vpop.f32.mrf.mxu0
        %v1668 = vadd.f32 0.0, %v1667
        %1669 = vdwg.mxu0
        %1670 = vmatprep.subr.bf16.mxu0 0
        %1671 = vmatpush1.bf16.msra.mxu0 0
        %1672 = vmatprep.subr.bf16.mxu0 0
        %1673 = vmatpush1.bf16.msra.mxu0 0
        %1674 = vmatprep.subr.bf16.mxu0 0
        %1675 = vmatpush1.bf16.msra.mxu0 0
        %1676 = vmatprep.subr.bf16.mxu0 0
        %1677 = vmatpush1.bf16.msra.mxu0 0
        %1678 = vmatprep.subr.bf16.mxu0 0
        %1679 = vmatpush1.bf16.msra.mxu0 0
        %1680 = vmatprep.subr.bf16.mxu0 0
        %1681 = vmatpush1.bf16.msra.mxu0 0
        %1682 = vmatprep.subr.bf16.mxu0 0
        %1683 = vmatpush1.bf16.msra.mxu0 0
        %1684 = vmatprep.subr.bf16.mxu0 %v1584
        %1685 = vmatpush1.bf16.msra.mxu0 %v1583
        %1686 = vmatprep.subr.bf16.mxu0 0
        %1687 = vmatpush2.bf16.msra.mxu0 0
        %1688 = vmatprep.subr.bf16.mxu0 0
        %1689 = vmatpush2.bf16.msra.mxu0 0
        %1690 = vmatprep.subr.bf16.mxu0 0
        %1691 = vmatpush2.bf16.msra.mxu0 0
        %1692 = vmatprep.subr.bf16.mxu0 0
        %1693 = vmatpush2.bf16.msra.mxu0 0
        %1694 = vmatprep.subr.bf16.mxu0 0
        %1695 = vmatpush2.bf16.msra.mxu0 0
        %1696 = vmatprep.subr.bf16.mxu0 0
        %1697 = vmatpush2.bf16.msra.mxu0 0
        %1698 = vmatprep.subr.bf16.mxu0 0
        %1699 = vmatpush2.bf16.msra.mxu0 0
        %1700 = vmatprep.subr.bf16.mxu0 0
        %1701 = vmatpush2.bf16.msra.mxu0 0
        %1702 = vmatprep.mubr.bf16.mxu0 0
        %1703 = vmatmul.mubr.bf16.gmra.mxu0 %v732
        %v1704 = vpop.f32.mrf.mxu0
        %v1705 = vadd.f32 %v1662, %v1704
        %v1706 = vpop.f32.mrf.mxu0
        %v1707 = vadd.f32 %v1664, %v1706
        %v1708 = vpop.f32.mrf.mxu0
        %v1709 = vadd.f32 %v1666, %v1708
        %v1710 = vpop.f32.mrf.mxu0
        %v1711 = vadd.f32 %v1668, %v1710
        %1712 = vdwg.mxu0
        %v1713 = vpack.c.bf16 %v1559, %v1557
        %v1714 = vpack.c.bf16 %v1560, %v1558
        %1715 = vmatprep.subr.bf16.mxu0 0
        %1716 = vmatpush1.bf16.msra.mxu0 0
        %1717 = vmatprep.subr.bf16.mxu0 0
        %1718 = vmatpush1.bf16.msra.mxu0 0
        %1719 = vmatprep.subr.bf16.mxu0 0
        %1720 = vmatpush1.bf16.msra.mxu0 0
        %1721 = vmatprep.subr.bf16.mxu0 0
        %1722 = vmatpush1.bf16.msra.mxu0 0
        %1723 = vmatprep.subr.bf16.mxu0 0
        %1724 = vmatpush1.bf16.msra.mxu0 0
        %1725 = vmatprep.subr.bf16.mxu0 0
        %1726 = vmatpush1.bf16.msra.mxu0 0
        %1727 = vmatprep.subr.bf16.mxu0 0
        %1728 = vmatpush1.bf16.msra.mxu0 0
        %1729 = vmatprep.subr.bf16.mxu0 %v1714
        %1730 = vmatpush1.bf16.msra.mxu0 %v1713
        %1731 = vmatprep.subr.bf16.mxu0 0
        %1732 = vmatpush2.bf16.msra.mxu0 0
        %1733 = vmatprep.subr.bf16.mxu0 0
        %1734 = vmatpush2.bf16.msra.mxu0 0
        %1735 = vmatprep.subr.bf16.mxu0 0
        %1736 = vmatpush2.bf16.msra.mxu0 0
        %1737 = vmatprep.subr.bf16.mxu0 0
        %1738 = vmatpush2.bf16.msra.mxu0 0
        %1739 = vmatprep.subr.bf16.mxu0 0
        %1740 = vmatpush2.bf16.msra.mxu0 0
        %1741 = vmatprep.subr.bf16.mxu0 0
        %1742 = vmatpush2.bf16.msra.mxu0 0
        %1743 = vmatprep.subr.bf16.mxu0 0
        %1744 = vmatpush2.bf16.msra.mxu0 0
        %1745 = vmatprep.subr.bf16.mxu0 0
        %1746 = vmatpush2.bf16.msra.mxu0 0
        %1747 = vmatprep.mubr.bf16.mxu0 0
        %1748 = vmatmul.mubr.bf16.gmra.mxu0 %v785
        %v1749 = vpop.f32.mrf.mxu0
        %v1750 = vadd.f32 0.0, %v1749
        %v1751 = vpop.f32.mrf.mxu0
        %v1752 = vadd.f32 0.0, %v1751
        %v1753 = vpop.f32.mrf.mxu0
        %v1754 = vadd.f32 0.0, %v1753
        %v1755 = vpop.f32.mrf.mxu0
        %v1756 = vadd.f32 0.0, %v1755
        %1757 = vdwg.mxu0
        %v1758 = vadd.f32 %v1705, %v1750
        %v1759 = vadd.f32 %v1707, %v1752
        %v1760 = vadd.f32 %v1709, %v1754
        %v1761 = vadd.f32 %v1711, %v1756
        %1762 = vrot.lane.b32.xlu0 %v1557, 127
        %v1763 = vpop.permute.xlu0 %1762
        %1764 = vrot.lane.b32.xlu0 %v1558, 127
        %v1765 = vpop.permute.xlu0 %1764
        %1766 = vrot.lane.b32.xlu0 %v1559, 127
        %v1767 = vpop.permute.xlu0 %1766
        %1768 = vrot.lane.b32.xlu0 %v1560, 127
        %v1769 = vpop.permute.xlu0 %1768
        %v1770 = vsel %vm842, %v1763, %v1765
        %v1771 = vsel %vm842, %v1767, %v1769
        %v1778 = vsel %vm842, %v1765, %v1763
        %v1779 = vsel %vm842, %v1769, %v1767
        %1780 = vrot.lane.b32.xlu0 %v1558, 15
        %v1781 = vpop.permute.xlu0 %1780
        %1782 = vrot.lane.b32.xlu0 %v1560, 15
        %v1783 = vpop.permute.xlu0 %1782
        %1786 = vrot.lane.b32.xlu0 %v1557, 15
        %v1787 = vpop.permute.xlu0 %1786
        %1788 = vrot.lane.b32.xlu0 %v1559, 15
        %v1789 = vpop.permute.xlu0 %1788
        %v1790 = vsel %vm863, %v1787, %v1781
        %v1791 = vsel %vm863, %v1789, %v1783
        %v1796 = vsel %vm863, %v1781, %v1787
        %v1797 = vsel %vm863, %v1783, %v1789
        %v1798 = vsel %vm874, %v1796, %v1770
        %v1799 = vsel %vm875, %v1790, %v1778
        %v1800 = vsel %vm874, %v1797, %v1771
        %v1801 = vsel %vm875, %v1791, %v1779
        %v1802 = vpack.c.bf16 %v1800, %v1798
        %v1803 = vpack.c.bf16 %v1801, %v1799
        %1804 = vmatprep.subr.bf16.mxu0 0
        %1805 = vmatpush1.bf16.msra.mxu0 0
        %1806 = vmatprep.subr.bf16.mxu0 0
        %1807 = vmatpush1.bf16.msra.mxu0 0
        %1808 = vmatprep.subr.bf16.mxu0 0
        %1809 = vmatpush1.bf16.msra.mxu0 0
        %1810 = vmatprep.subr.bf16.mxu0 0
        %1811 = vmatpush1.bf16.msra.mxu0 0
        %1812 = vmatprep.subr.bf16.mxu0 0
        %1813 = vmatpush1.bf16.msra.mxu0 0
        %1814 = vmatprep.subr.bf16.mxu0 0
        %1815 = vmatpush1.bf16.msra.mxu0 0
        %1816 = vmatprep.subr.bf16.mxu0 0
        %1817 = vmatpush1.bf16.msra.mxu0 0
        %1818 = vmatprep.subr.bf16.mxu0 %v1803
        %1819 = vmatpush1.bf16.msra.mxu0 %v1802
        %1820 = vmatprep.subr.bf16.mxu0 0
        %1821 = vmatpush2.bf16.msra.mxu0 0
        %1822 = vmatprep.subr.bf16.mxu0 0
        %1823 = vmatpush2.bf16.msra.mxu0 0
        %1824 = vmatprep.subr.bf16.mxu0 0
        %1825 = vmatpush2.bf16.msra.mxu0 0
        %1826 = vmatprep.subr.bf16.mxu0 0
        %1827 = vmatpush2.bf16.msra.mxu0 0
        %1828 = vmatprep.subr.bf16.mxu0 0
        %1829 = vmatpush2.bf16.msra.mxu0 0
        %1830 = vmatprep.subr.bf16.mxu0 0
        %1831 = vmatpush2.bf16.msra.mxu0 0
        %1832 = vmatprep.subr.bf16.mxu0 0
        %1833 = vmatpush2.bf16.msra.mxu0 0
        %1834 = vmatprep.subr.bf16.mxu0 0
        %1835 = vmatpush2.bf16.msra.mxu0 0
        %1836 = vmatprep.mubr.bf16.mxu0 0
        %1837 = vmatmul.mubr.bf16.gmra.mxu0 %v888
        %v1838 = vpop.f32.mrf.mxu0
        %v1839 = vadd.f32 0.0, %v1838
        %v1840 = vpop.f32.mrf.mxu0
        %v1841 = vadd.f32 0.0, %v1840
        %v1842 = vpop.f32.mrf.mxu0
        %v1843 = vadd.f32 0.0, %v1842
        %v1844 = vpop.f32.mrf.mxu0
        %v1845 = vadd.f32 0.0, %v1844
        %1846 = vdwg.mxu0
        %v1847 = vadd.f32 %v1758, %v1839
        %v1848 = vadd.f32 %v1759, %v1841
        %v1849 = vadd.f32 %v1760, %v1843
        %v1850 = vadd.f32 %v1761, %v1845
        %1851 = vrot.lane.b32.xlu0 %v1557, 112
        %v1852 = vpop.permute.xlu0 %1851
        %1853 = vrot.lane.b32.xlu0 %v1558, 112
        %v1854 = vpop.permute.xlu0 %1853
        %1855 = vrot.lane.b32.xlu0 %v1559, 112
        %v1856 = vpop.permute.xlu0 %1855
        %1857 = vrot.lane.b32.xlu0 %v1560, 112
        %v1858 = vpop.permute.xlu0 %1857
        %v1859 = vsel %vm945, %v1852, %v1854
        %v1860 = vsel %vm945, %v1856, %v1858
        %v1867 = vsel %vm945, %v1854, %v1852
        %v1868 = vsel %vm945, %v1858, %v1856
        %v1869 = vpack.c.bf16 %v1860, %v1859
        %v1870 = vpack.c.bf16 %v1868, %v1867
        %1871 = vmatprep.subr.bf16.mxu0 0
        %1872 = vmatpush1.bf16.msra.mxu0 0
        %1873 = vmatprep.subr.bf16.mxu0 0
        %1874 = vmatpush1.bf16.msra.mxu0 0
        %1875 = vmatprep.subr.bf16.mxu0 0
        %1876 = vmatpush1.bf16.msra.mxu0 0
        %1877 = vmatprep.subr.bf16.mxu0 0
        %1878 = vmatpush1.bf16.msra.mxu0 0
        %1879 = vmatprep.subr.bf16.mxu0 0
        %1880 = vmatpush1.bf16.msra.mxu0 0
        %1881 = vmatprep.subr.bf16.mxu0 0
        %1882 = vmatpush1.bf16.msra.mxu0 0
        %1883 = vmatprep.subr.bf16.mxu0 0
        %1884 = vmatpush1.bf16.msra.mxu0 0
        %1885 = vmatprep.subr.bf16.mxu0 %v1870
        %1886 = vmatpush1.bf16.msra.mxu0 %v1869
        %1887 = vmatprep.subr.bf16.mxu0 0
        %1888 = vmatpush2.bf16.msra.mxu0 0
        %1889 = vmatprep.subr.bf16.mxu0 0
        %1890 = vmatpush2.bf16.msra.mxu0 0
        %1891 = vmatprep.subr.bf16.mxu0 0
        %1892 = vmatpush2.bf16.msra.mxu0 0
        %1893 = vmatprep.subr.bf16.mxu0 0
        %1894 = vmatpush2.bf16.msra.mxu0 0
        %1895 = vmatprep.subr.bf16.mxu0 0
        %1896 = vmatpush2.bf16.msra.mxu0 0
        %1897 = vmatprep.subr.bf16.mxu0 0
        %1898 = vmatpush2.bf16.msra.mxu0 0
        %1899 = vmatprep.subr.bf16.mxu0 0
        %1900 = vmatpush2.bf16.msra.mxu0 0
        %1901 = vmatprep.subr.bf16.mxu0 0
        %1902 = vmatpush2.bf16.msra.mxu0 0
        %1903 = vmatprep.mubr.bf16.mxu0 0
        %1904 = vmatmul.mubr.bf16.gmra.mxu0 %v964
        %v1905 = vpop.f32.mrf.mxu0
        %v1906 = vadd.f32 0.0, %v1905
        %v1907 = vpop.f32.mrf.mxu0
        %v1908 = vadd.f32 0.0, %v1907
        %v1909 = vpop.f32.mrf.mxu0
        %v1910 = vadd.f32 0.0, %v1909
        %v1911 = vpop.f32.mrf.mxu0
        %v1912 = vadd.f32 0.0, %v1911
        %1913 = vdwg.mxu0
        %v1914 = vadd.f32 %v1847, %v1906
        %v1915 = vadd.f32 %v1848, %v1908
        %v1916 = vadd.f32 %v1849, %v1910
        %v1917 = vadd.f32 %v1850, %v1912
        %v1918 = vadd.f32 %v1914, %v1016
        %v1919 = vadd.f32 %v1915, %v1016
        %v1920 = vadd.f32 %v1916, %v1021
        %v1921 = vadd.f32 %v1917, %v1021
        %v1922 = vadd.f32 %v1918, %v1919
        %v1923 = vadd.f32 %v1922, %v1920
        %v1924 = vadd.f32 %v1923, %v1921
        %1925 = vadd.xlane.f32.xlu0 %v1924
        %v1926 = vpop.xlane.xlu0 %1925
        %v1927 = vrot.slane %v1926, 4
        %v1928 = vadd.f32 %v1926, %v1927
        %v1929 = vrot.slane %v1928, 2
        %v1930 = vadd.f32 %v1928, %v1929
        %v1931 = vrot.slane %v1930, 1
        %v1932 = vadd.f32 %v1930, %v1931
        %s1933 = vtos %v1932
        %v1934 = vstv %s1933
        %v1935 = vmul.f32 %v1934, %v1040
        %v1936 = vmul.f32 %v1918, %v1918
        %v1937 = vmul.f32 %v1919, %v1919
        %v1938 = vmul.f32 %v1920, %v1920
        %v1939 = vmul.f32 %v1921, %v1921
        %v1940 = vadd.f32 %v1936, %v1937
        %v1941 = vadd.f32 %v1940, %v1938
        %v1942 = vadd.f32 %v1941, %v1939
        %1943 = vadd.xlane.f32.xlu0 %v1942
        %v1944 = vpop.xlane.xlu0 %1943
        %v1945 = vrot.slane %v1944, 4
        %v1946 = vadd.f32 %v1944, %v1945
        %v1947 = vrot.slane %v1946, 2
        %v1948 = vadd.f32 %v1946, %v1947
        %v1949 = vrot.slane %v1948, 1
        %v1950 = vadd.f32 %v1948, %v1949
        %s1951 = vtos %v1950
        %v1952 = vstv %s1951
        %v1953 = vmul.f32 %v1952, %v1040
        %v1954 = vmul.f32 %v1935, %v1935
        %v1955 = vsub.f32 %v1953, %v1954
        %v1956 = vsub.f32 %v1918, %v1935
        %v1957 = vsub.f32 %v1919, %v1935
        %v1958 = vsub.f32 %v1920, %v1935
        %v1959 = vsub.f32 %v1921, %v1935
        %v1960 = vadd.f32 %v1955, 1e-05
        %v1961 = vrsqrt.pop %v1960
        %v1962 = vmul.f32 %v1956, %v1961
        %v1963 = vmul.f32 %v1957, %v1961
        %v1964 = vmul.f32 %v1958, %v1961
        %v1965 = vmul.f32 %v1959, %v1961
        %v1966 = vmul.f32 %v1962, %v576
        %v1967 = vmul.f32 %v1963, %v577
        %v1968 = vmul.f32 %v1964, %v578
        %v1969 = vmul.f32 %v1965, %v579
        %v1970 = vadd.f32 %v1966, %v580
        %v1971 = vadd.f32 %v1967, %v581
        %v1972 = vadd.f32 %v1968, %v582
        %v1973 = vadd.f32 %v1969, %v583
        %v1974 = vmax.f32 %v1970, 0.0
        %v1975 = vmax.f32 %v1971, 0.0
        %v1976 = vmax.f32 %v1972, 0.0
        %v1977 = vmax.f32 %v1973, 0.0
        %1980 = vrot.lane.b32.xlu0 %v1975, 16
        %v1981 = vpop.permute.xlu0 %1980
        %1982 = vrot.lane.b32.xlu0 %v1977, 16
        %v1983 = vpop.permute.xlu0 %1982
        %1988 = vrot.lane.b32.xlu0 %v1974, 16
        %v1989 = vpop.permute.xlu0 %1988
        %1990 = vrot.lane.b32.xlu0 %v1976, 16
        %v1991 = vpop.permute.xlu0 %1990
        %v1992 = vsel %vm616, %v1989, %v1981
        %v1993 = vsel %vm616, %v1991, %v1983
        %v1998 = vsel %vm616, %v1981, %v1989
        %v1999 = vsel %vm616, %v1983, %v1991
        %v2000 = vpack.c.bf16 %v1999, %v1998
        %v2001 = vpack.c.bf16 %v1993, %v1992
        %2002 = vrot.lane.b32.xlu0 %v1975, 1
        %v2003 = vpop.permute.xlu0 %2002
        %2004 = vrot.lane.b32.xlu0 %v1977, 1
        %v2005 = vpop.permute.xlu0 %2004
        %2008 = vrot.lane.b32.xlu0 %v1974, 1
        %v2009 = vpop.permute.xlu0 %2008
        %2010 = vrot.lane.b32.xlu0 %v1976, 1
        %v2011 = vpop.permute.xlu0 %2010
        %v2012 = vsel %vm637, %v2009, %v2003
        %v2013 = vsel %vm637, %v2011, %v2005
        %v2018 = vsel %vm637, %v2003, %v2009
        %v2019 = vsel %vm637, %v2005, %v2011
        %2020 = vrot.lane.b32.xlu0 %v1974, 113
        %v2021 = vpop.permute.xlu0 %2020
        %2022 = vrot.lane.b32.xlu0 %v1975, 113
        %v2023 = vpop.permute.xlu0 %2022
        %2024 = vrot.lane.b32.xlu0 %v1976, 113
        %v2025 = vpop.permute.xlu0 %2024
        %2026 = vrot.lane.b32.xlu0 %v1977, 113
        %v2027 = vpop.permute.xlu0 %2026
        %v2028 = vsel %vm654, %v2021, %v2023
        %v2029 = vsel %vm654, %v2025, %v2027
        %v2036 = vsel %vm654, %v2023, %v2021
        %v2037 = vsel %vm654, %v2027, %v2025
        %v2038 = vsel %vm667, %v2028, %v2018
        %v2039 = vsel %vm668, %v2036, %v2012
        %v2040 = vsel %vm667, %v2029, %v2019
        %v2041 = vsel %vm668, %v2037, %v2013
        %v2042 = vpack.c.bf16 %v2040, %v2038
        %v2043 = vpack.c.bf16 %v2041, %v2039
        %2044 = vmatprep.subr.bf16.mxu0 0
        %2045 = vmatpush1.bf16.msra.mxu0 0
        %2046 = vmatprep.subr.bf16.mxu0 0
        %2047 = vmatpush1.bf16.msra.mxu0 0
        %2048 = vmatprep.subr.bf16.mxu0 0
        %2049 = vmatpush1.bf16.msra.mxu0 0
        %2050 = vmatprep.subr.bf16.mxu0 0
        %2051 = vmatpush1.bf16.msra.mxu0 0
        %2052 = vmatprep.subr.bf16.mxu0 0
        %2053 = vmatpush1.bf16.msra.mxu0 0
        %2054 = vmatprep.subr.bf16.mxu0 0
        %2055 = vmatpush1.bf16.msra.mxu0 0
        %2056 = vmatprep.subr.bf16.mxu0 0
        %2057 = vmatpush1.bf16.msra.mxu0 0
        %2058 = vmatprep.subr.bf16.mxu0 %v2043
        %2059 = vmatpush1.bf16.msra.mxu0 %v2042
        %2060 = vmatprep.subr.bf16.mxu0 0
        %2061 = vmatpush2.bf16.msra.mxu0 0
        %2062 = vmatprep.subr.bf16.mxu0 0
        %2063 = vmatpush2.bf16.msra.mxu0 0
        %2064 = vmatprep.subr.bf16.mxu0 0
        %2065 = vmatpush2.bf16.msra.mxu0 0
        %2066 = vmatprep.subr.bf16.mxu0 0
        %2067 = vmatpush2.bf16.msra.mxu0 0
        %2068 = vmatprep.subr.bf16.mxu0 0
        %2069 = vmatpush2.bf16.msra.mxu0 0
        %2070 = vmatprep.subr.bf16.mxu0 0
        %2071 = vmatpush2.bf16.msra.mxu0 0
        %2072 = vmatprep.subr.bf16.mxu0 0
        %2073 = vmatpush2.bf16.msra.mxu0 0
        %2074 = vmatprep.subr.bf16.mxu0 0
        %2075 = vmatpush2.bf16.msra.mxu0 0
        %2076 = vmatprep.mubr.bf16.mxu0 0
        %2077 = vmatmul.mubr.bf16.gmra.mxu0 %v1156
        %v2078 = vpop.f32.mrf.mxu0
        %v2079 = vadd.f32 0.0, %v2078
        %v2080 = vpop.f32.mrf.mxu0
        %v2081 = vadd.f32 0.0, %v2080
        %v2082 = vpop.f32.mrf.mxu0
        %v2083 = vadd.f32 0.0, %v2082
        %v2084 = vpop.f32.mrf.mxu0
        %v2085 = vadd.f32 0.0, %v2084
        %2086 = vdwg.mxu0
        %2087 = vmatprep.subr.bf16.mxu0 0
        %2088 = vmatpush1.bf16.msra.mxu0 0
        %2089 = vmatprep.subr.bf16.mxu0 0
        %2090 = vmatpush1.bf16.msra.mxu0 0
        %2091 = vmatprep.subr.bf16.mxu0 0
        %2092 = vmatpush1.bf16.msra.mxu0 0
        %2093 = vmatprep.subr.bf16.mxu0 0
        %2094 = vmatpush1.bf16.msra.mxu0 0
        %2095 = vmatprep.subr.bf16.mxu0 0
        %2096 = vmatpush1.bf16.msra.mxu0 0
        %2097 = vmatprep.subr.bf16.mxu0 0
        %2098 = vmatpush1.bf16.msra.mxu0 0
        %2099 = vmatprep.subr.bf16.mxu0 0
        %2100 = vmatpush1.bf16.msra.mxu0 0
        %2101 = vmatprep.subr.bf16.mxu0 %v2001
        %2102 = vmatpush1.bf16.msra.mxu0 %v2000
        %2103 = vmatprep.subr.bf16.mxu0 0
        %2104 = vmatpush2.bf16.msra.mxu0 0
        %2105 = vmatprep.subr.bf16.mxu0 0
        %2106 = vmatpush2.bf16.msra.mxu0 0
        %2107 = vmatprep.subr.bf16.mxu0 0
        %2108 = vmatpush2.bf16.msra.mxu0 0
        %2109 = vmatprep.subr.bf16.mxu0 0
        %2110 = vmatpush2.bf16.msra.mxu0 0
        %2111 = vmatprep.subr.bf16.mxu0 0
        %2112 = vmatpush2.bf16.msra.mxu0 0
        %2113 = vmatprep.subr.bf16.mxu0 0
        %2114 = vmatpush2.bf16.msra.mxu0 0
        %2115 = vmatprep.subr.bf16.mxu0 0
        %2116 = vmatpush2.bf16.msra.mxu0 0
        %2117 = vmatprep.subr.bf16.mxu0 0
        %2118 = vmatpush2.bf16.msra.mxu0 0
        %2119 = vmatprep.mubr.bf16.mxu0 0
        %2120 = vmatmul.mubr.bf16.gmra.mxu0 %v1207
        %v2121 = vpop.f32.mrf.mxu0
        %v2122 = vadd.f32 %v2079, %v2121
        %v2123 = vpop.f32.mrf.mxu0
        %v2124 = vadd.f32 %v2081, %v2123
        %v2125 = vpop.f32.mrf.mxu0
        %v2126 = vadd.f32 %v2083, %v2125
        %v2127 = vpop.f32.mrf.mxu0
        %v2128 = vadd.f32 %v2085, %v2127
        %2129 = vdwg.mxu0
        %v2130 = vpack.c.bf16 %v1976, %v1974
        %v2131 = vpack.c.bf16 %v1977, %v1975
        %2132 = vmatprep.subr.bf16.mxu0 0
        %2133 = vmatpush1.bf16.msra.mxu0 0
        %2134 = vmatprep.subr.bf16.mxu0 0
        %2135 = vmatpush1.bf16.msra.mxu0 0
        %2136 = vmatprep.subr.bf16.mxu0 0
        %2137 = vmatpush1.bf16.msra.mxu0 0
        %2138 = vmatprep.subr.bf16.mxu0 0
        %2139 = vmatpush1.bf16.msra.mxu0 0
        %2140 = vmatprep.subr.bf16.mxu0 0
        %2141 = vmatpush1.bf16.msra.mxu0 0
        %2142 = vmatprep.subr.bf16.mxu0 0
        %2143 = vmatpush1.bf16.msra.mxu0 0
        %2144 = vmatprep.subr.bf16.mxu0 0
        %2145 = vmatpush1.bf16.msra.mxu0 0
        %2146 = vmatprep.subr.bf16.mxu0 %v2131
        %2147 = vmatpush1.bf16.msra.mxu0 %v2130
        %2148 = vmatprep.subr.bf16.mxu0 0
        %2149 = vmatpush2.bf16.msra.mxu0 0
        %2150 = vmatprep.subr.bf16.mxu0 0
        %2151 = vmatpush2.bf16.msra.mxu0 0
        %2152 = vmatprep.subr.bf16.mxu0 0
        %2153 = vmatpush2.bf16.msra.mxu0 0
        %2154 = vmatprep.subr.bf16.mxu0 0
        %2155 = vmatpush2.bf16.msra.mxu0 0
        %2156 = vmatprep.subr.bf16.mxu0 0
        %2157 = vmatpush2.bf16.msra.mxu0 0
        %2158 = vmatprep.subr.bf16.mxu0 0
        %2159 = vmatpush2.bf16.msra.mxu0 0
        %2160 = vmatprep.subr.bf16.mxu0 0
        %2161 = vmatpush2.bf16.msra.mxu0 0
        %2162 = vmatprep.subr.bf16.mxu0 0
        %2163 = vmatpush2.bf16.msra.mxu0 0
        %2164 = vmatprep.mubr.bf16.mxu0 0
        %2165 = vmatmul.mubr.bf16.gmra.mxu0 %v1260
        %v2166 = vpop.f32.mrf.mxu0
        %v2167 = vadd.f32 0.0, %v2166
        %v2168 = vpop.f32.mrf.mxu0
        %v2169 = vadd.f32 0.0, %v2168
        %v2170 = vpop.f32.mrf.mxu0
        %v2171 = vadd.f32 0.0, %v2170
        %v2172 = vpop.f32.mrf.mxu0
        %v2173 = vadd.f32 0.0, %v2172
        %2174 = vdwg.mxu0
        %v2175 = vadd.f32 %v2122, %v2167
        %v2176 = vadd.f32 %v2124, %v2169
        %v2177 = vadd.f32 %v2126, %v2171
        %v2178 = vadd.f32 %v2128, %v2173
        %2179 = vrot.lane.b32.xlu0 %v1974, 127
        %v2180 = vpop.permute.xlu0 %2179
        %2181 = vrot.lane.b32.xlu0 %v1975, 127
        %v2182 = vpop.permute.xlu0 %2181
        %2183 = vrot.lane.b32.xlu0 %v1976, 127
        %v2184 = vpop.permute.xlu0 %2183
        %2185 = vrot.lane.b32.xlu0 %v1977, 127
        %v2186 = vpop.permute.xlu0 %2185
        %v2187 = vsel %vm842, %v2180, %v2182
        %v2188 = vsel %vm842, %v2184, %v2186
        %v2195 = vsel %vm842, %v2182, %v2180
        %v2196 = vsel %vm842, %v2186, %v2184
        %2197 = vrot.lane.b32.xlu0 %v1975, 15
        %v2198 = vpop.permute.xlu0 %2197
        %2199 = vrot.lane.b32.xlu0 %v1977, 15
        %v2200 = vpop.permute.xlu0 %2199
        %2203 = vrot.lane.b32.xlu0 %v1974, 15
        %v2204 = vpop.permute.xlu0 %2203
        %2205 = vrot.lane.b32.xlu0 %v1976, 15
        %v2206 = vpop.permute.xlu0 %2205
        %v2207 = vsel %vm863, %v2204, %v2198
        %v2208 = vsel %vm863, %v2206, %v2200
        %v2213 = vsel %vm863, %v2198, %v2204
        %v2214 = vsel %vm863, %v2200, %v2206
        %v2215 = vsel %vm874, %v2213, %v2187
        %v2216 = vsel %vm875, %v2207, %v2195
        %v2217 = vsel %vm874, %v2214, %v2188
        %v2218 = vsel %vm875, %v2208, %v2196
        %v2219 = vpack.c.bf16 %v2217, %v2215
        %v2220 = vpack.c.bf16 %v2218, %v2216
        %2221 = vmatprep.subr.bf16.mxu0 0
        %2222 = vmatpush1.bf16.msra.mxu0 0
        %2223 = vmatprep.subr.bf16.mxu0 0
        %2224 = vmatpush1.bf16.msra.mxu0 0
        %2225 = vmatprep.subr.bf16.mxu0 0
        %2226 = vmatpush1.bf16.msra.mxu0 0
        %2227 = vmatprep.subr.bf16.mxu0 0
        %2228 = vmatpush1.bf16.msra.mxu0 0
        %2229 = vmatprep.subr.bf16.mxu0 0
        %2230 = vmatpush1.bf16.msra.mxu0 0
        %2231 = vmatprep.subr.bf16.mxu0 0
        %2232 = vmatpush1.bf16.msra.mxu0 0
        %2233 = vmatprep.subr.bf16.mxu0 0
        %2234 = vmatpush1.bf16.msra.mxu0 0
        %2235 = vmatprep.subr.bf16.mxu0 %v2220
        %2236 = vmatpush1.bf16.msra.mxu0 %v2219
        %2237 = vmatprep.subr.bf16.mxu0 0
        %2238 = vmatpush2.bf16.msra.mxu0 0
        %2239 = vmatprep.subr.bf16.mxu0 0
        %2240 = vmatpush2.bf16.msra.mxu0 0
        %2241 = vmatprep.subr.bf16.mxu0 0
        %2242 = vmatpush2.bf16.msra.mxu0 0
        %2243 = vmatprep.subr.bf16.mxu0 0
        %2244 = vmatpush2.bf16.msra.mxu0 0
        %2245 = vmatprep.subr.bf16.mxu0 0
        %2246 = vmatpush2.bf16.msra.mxu0 0
        %2247 = vmatprep.subr.bf16.mxu0 0
        %2248 = vmatpush2.bf16.msra.mxu0 0
        %2249 = vmatprep.subr.bf16.mxu0 0
        %2250 = vmatpush2.bf16.msra.mxu0 0
        %2251 = vmatprep.subr.bf16.mxu0 0
        %2252 = vmatpush2.bf16.msra.mxu0 0
        %2253 = vmatprep.mubr.bf16.mxu0 0
        %2254 = vmatmul.mubr.bf16.gmra.mxu0 %v1357
        %v2255 = vpop.f32.mrf.mxu0
        %v2256 = vadd.f32 0.0, %v2255
        %v2257 = vpop.f32.mrf.mxu0
        %v2258 = vadd.f32 0.0, %v2257
        %v2259 = vpop.f32.mrf.mxu0
        %v2260 = vadd.f32 0.0, %v2259
        %v2261 = vpop.f32.mrf.mxu0
        %v2262 = vadd.f32 0.0, %v2261
        %2263 = vdwg.mxu0
        %v2264 = vadd.f32 %v2175, %v2256
        %v2265 = vadd.f32 %v2176, %v2258
        %v2266 = vadd.f32 %v2177, %v2260
        %v2267 = vadd.f32 %v2178, %v2262
        %2268 = vrot.lane.b32.xlu0 %v1974, 112
        %v2269 = vpop.permute.xlu0 %2268
        %2270 = vrot.lane.b32.xlu0 %v1975, 112
        %v2271 = vpop.permute.xlu0 %2270
        %2272 = vrot.lane.b32.xlu0 %v1976, 112
        %v2273 = vpop.permute.xlu0 %2272
        %2274 = vrot.lane.b32.xlu0 %v1977, 112
        %v2275 = vpop.permute.xlu0 %2274
        %v2276 = vsel %vm945, %v2269, %v2271
        %v2277 = vsel %vm945, %v2273, %v2275
        %v2284 = vsel %vm945, %v2271, %v2269
        %v2285 = vsel %vm945, %v2275, %v2273
        %v2286 = vpack.c.bf16 %v2277, %v2276
        %v2287 = vpack.c.bf16 %v2285, %v2284
        %2288 = vmatprep.subr.bf16.mxu0 0
        %2289 = vmatpush1.bf16.msra.mxu0 0
        %2290 = vmatprep.subr.bf16.mxu0 0
        %2291 = vmatpush1.bf16.msra.mxu0 0
        %2292 = vmatprep.subr.bf16.mxu0 0
        %2293 = vmatpush1.bf16.msra.mxu0 0
        %2294 = vmatprep.subr.bf16.mxu0 0
        %2295 = vmatpush1.bf16.msra.mxu0 0
        %2296 = vmatprep.subr.bf16.mxu0 0
        %2297 = vmatpush1.bf16.msra.mxu0 0
        %2298 = vmatprep.subr.bf16.mxu0 0
        %2299 = vmatpush1.bf16.msra.mxu0 0
        %2300 = vmatprep.subr.bf16.mxu0 0
        %2301 = vmatpush1.bf16.msra.mxu0 0
        %2302 = vmatprep.subr.bf16.mxu0 %v2287
        %2303 = vmatpush1.bf16.msra.mxu0 %v2286
        %2304 = vmatprep.subr.bf16.mxu0 0
        %2305 = vmatpush2.bf16.msra.mxu0 0
        %2306 = vmatprep.subr.bf16.mxu0 0
        %2307 = vmatpush2.bf16.msra.mxu0 0
        %2308 = vmatprep.subr.bf16.mxu0 0
        %2309 = vmatpush2.bf16.msra.mxu0 0
        %2310 = vmatprep.subr.bf16.mxu0 0
        %2311 = vmatpush2.bf16.msra.mxu0 0
        %2312 = vmatprep.subr.bf16.mxu0 0
        %2313 = vmatpush2.bf16.msra.mxu0 0
        %2314 = vmatprep.subr.bf16.mxu0 0
        %2315 = vmatpush2.bf16.msra.mxu0 0
        %2316 = vmatprep.subr.bf16.mxu0 0
        %2317 = vmatpush2.bf16.msra.mxu0 0
        %2318 = vmatprep.subr.bf16.mxu0 0
        %2319 = vmatpush2.bf16.msra.mxu0 0
        %2320 = vmatprep.mubr.bf16.mxu0 0
        %2321 = vmatmul.mubr.bf16.gmra.mxu0 %v1432
        %v2322 = vpop.f32.mrf.mxu0
        %v2323 = vadd.f32 0.0, %v2322
        %v2324 = vpop.f32.mrf.mxu0
        %v2325 = vadd.f32 0.0, %v2324
        %v2326 = vpop.f32.mrf.mxu0
        %v2327 = vadd.f32 0.0, %v2326
        %v2328 = vpop.f32.mrf.mxu0
        %v2329 = vadd.f32 0.0, %v2328
        %2330 = vdwg.mxu0
        %v2331 = vadd.f32 %v2264, %v2323
        %v2332 = vadd.f32 %v2265, %v2325
        %v2333 = vadd.f32 %v2266, %v2327
        %v2334 = vadd.f32 %v2267, %v2329
        %v2335 = vadd.f32 %v2331, %v1484
        %v2336 = vadd.f32 %v2332, %v1484
        %v2337 = vadd.f32 %v2333, %v1489
        %v2338 = vadd.f32 %v2334, %v1489
        %v2339 = vadd.f32 %v2335, %v2336
        %v2340 = vadd.f32 %v2339, %v2337
        %v2341 = vadd.f32 %v2340, %v2338
        %2342 = vadd.xlane.f32.xlu0 %v2341
        %v2343 = vpop.xlane.xlu0 %2342
        %v2344 = vrot.slane %v2343, 4
        %v2345 = vadd.f32 %v2343, %v2344
        %v2346 = vrot.slane %v2345, 2
        %v2347 = vadd.f32 %v2345, %v2346
        %v2348 = vrot.slane %v2347, 1
        %v2349 = vadd.f32 %v2347, %v2348
        %s2350 = vtos %v2349
        %v2351 = vstv %s2350
        %v2352 = vmul.f32 %v2351, %v1040
        %v2353 = vmul.f32 %v2335, %v2335
        %v2354 = vmul.f32 %v2336, %v2336
        %v2355 = vmul.f32 %v2337, %v2337
        %v2356 = vmul.f32 %v2338, %v2338
        %v2357 = vadd.f32 %v2353, %v2354
        %v2358 = vadd.f32 %v2357, %v2355
        %v2359 = vadd.f32 %v2358, %v2356
        %2360 = vadd.xlane.f32.xlu0 %v2359
        %v2361 = vpop.xlane.xlu0 %2360
        %v2362 = vrot.slane %v2361, 4
        %v2363 = vadd.f32 %v2361, %v2362
        %v2364 = vrot.slane %v2363, 2
        %v2365 = vadd.f32 %v2363, %v2364
        %v2366 = vrot.slane %v2365, 1
        %v2367 = vadd.f32 %v2365, %v2366
        %s2368 = vtos %v2367
        %v2369 = vstv %s2368
        %v2370 = vmul.f32 %v2369, %v1040
        %v2371 = vmul.f32 %v2352, %v2352
        %v2372 = vsub.f32 %v2370, %v2371
        %v2373 = vsub.f32 %v2335, %v2352
        %v2374 = vsub.f32 %v2336, %v2352
        %v2375 = vsub.f32 %v2337, %v2352
        %v2376 = vsub.f32 %v2338, %v2352
        %v2377 = vadd.f32 %v2372, 1e-05
        %v2378 = vrsqrt.pop %v2377
        %v2379 = vmul.f32 %v2373, %v2378
        %v2380 = vmul.f32 %v2374, %v2378
        %v2381 = vmul.f32 %v2375, %v2378
        %v2382 = vmul.f32 %v2376, %v2378
        %v2383 = vmul.f32 %v2379, %v584
        %v2384 = vmul.f32 %v2380, %v585
        %v2385 = vmul.f32 %v2381, %v586
        %v2386 = vmul.f32 %v2382, %v587
        %v2387 = vadd.f32 %v2383, %v588
        %v2388 = vadd.f32 %v2384, %v589
        %v2389 = vadd.f32 %v2385, %v590
        %v2390 = vadd.f32 %v2386, %v591
        %v2391 = vadd.f32 %v2387, %v2388
        %2392 = vadd.xlane.f32.xlu0 %v2391
        %v2393 = vpop.xlane.xlu0 %2392
        %v2394 = vadd.f32 %v2389, %v2390
        %2395 = vadd.xlane.f32.xlu0 %v2394
        %v2396 = vpop.xlane.xlu0 %2395
        %v2397 = vmul.f32 %v2393, %v1553
        %v2398 = vmul.f32 %v2396, %v1553
        %s2399 = scalar_lea.vmem %s459, 64 [#allocation2]
        %v2400 = vld [vmem:[%s2399] sm:$0xff]
        %v2401 = vld [vmem:[%s2399 + $0x8] sm:$0xff]
        %v2402 = vld [vmem:[%s2399 + $0x10] sm:$0xff]
        %v2403 = vld [vmem:[%s2399 + $0x18] sm:$0xff]
        %2406 = vrot.lane.b32.xlu0 %v2401, 16
        %v2407 = vpop.permute.xlu0 %2406
        %2408 = vrot.lane.b32.xlu0 %v2403, 16
        %v2409 = vpop.permute.xlu0 %2408
        %2414 = vrot.lane.b32.xlu0 %v2400, 16
        %v2415 = vpop.permute.xlu0 %2414
        %2416 = vrot.lane.b32.xlu0 %v2402, 16
        %v2417 = vpop.permute.xlu0 %2416
        %v2418 = vsel %vm616, %v2415, %v2407
        %v2419 = vsel %vm616, %v2417, %v2409
        %v2424 = vsel %vm616, %v2407, %v2415
        %v2425 = vsel %vm616, %v2409, %v2417
        %v2426 = vpack.c.bf16 %v2425, %v2424
        %v2427 = vpack.c.bf16 %v2419, %v2418
        %2428 = vrot.lane.b32.xlu0 %v2401, 1
        %v2429 = vpop.permute.xlu0 %2428
        %2430 = vrot.lane.b32.xlu0 %v2403, 1
        %v2431 = vpop.permute.xlu0 %2430
        %2434 = vrot.lane.b32.xlu0 %v2400, 1
        %v2435 = vpop.permute.xlu0 %2434
        %2436 = vrot.lane.b32.xlu0 %v2402, 1
        %v2437 = vpop.permute.xlu0 %2436
        %v2438 = vsel %vm637, %v2435, %v2429
        %v2439 = vsel %vm637, %v2437, %v2431
        %v2444 = vsel %vm637, %v2429, %v2435
        %v2445 = vsel %vm637, %v2431, %v2437
        %2446 = vrot.lane.b32.xlu0 %v2400, 113
        %v2447 = vpop.permute.xlu0 %2446
        %2448 = vrot.lane.b32.xlu0 %v2401, 113
        %v2449 = vpop.permute.xlu0 %2448
        %2450 = vrot.lane.b32.xlu0 %v2402, 113
        %v2451 = vpop.permute.xlu0 %2450
        %2452 = vrot.lane.b32.xlu0 %v2403, 113
        %v2453 = vpop.permute.xlu0 %2452
        %v2454 = vsel %vm654, %v2447, %v2449
        %v2455 = vsel %vm654, %v2451, %v2453
        %v2462 = vsel %vm654, %v2449, %v2447
        %v2463 = vsel %vm654, %v2453, %v2451
        %v2464 = vsel %vm667, %v2454, %v2444
        %v2465 = vsel %vm668, %v2462, %v2438
        %v2466 = vsel %vm667, %v2455, %v2445
        %v2467 = vsel %vm668, %v2463, %v2439
        %v2468 = vpack.c.bf16 %v2466, %v2464
        %v2469 = vpack.c.bf16 %v2467, %v2465
        %2470 = vmatprep.subr.bf16.mxu0 0
        %2471 = vmatpush1.bf16.msra.mxu0 0
        %2472 = vmatprep.subr.bf16.mxu0 0
        %2473 = vmatpush1.bf16.msra.mxu0 0
        %2474 = vmatprep.subr.bf16.mxu0 0
        %2475 = vmatpush1.bf16.msra.mxu0 0
        %2476 = vmatprep.subr.bf16.mxu0 0
        %2477 = vmatpush1.bf16.msra.mxu0 0
        %2478 = vmatprep.subr.bf16.mxu0 0
        %2479 = vmatpush1.bf16.msra.mxu0 0
        %2480 = vmatprep.subr.bf16.mxu0 0
        %2481 = vmatpush1.bf16.msra.mxu0 0
        %2482 = vmatprep.subr.bf16.mxu0 0
        %2483 = vmatpush1.bf16.msra.mxu0 0
        %2484 = vmatprep.subr.bf16.mxu0 %v2469
        %2485 = vmatpush1.bf16.msra.mxu0 %v2468
        %2486 = vmatprep.subr.bf16.mxu0 0
        %2487 = vmatpush2.bf16.msra.mxu0 0
        %2488 = vmatprep.subr.bf16.mxu0 0
        %2489 = vmatpush2.bf16.msra.mxu0 0
        %2490 = vmatprep.subr.bf16.mxu0 0
        %2491 = vmatpush2.bf16.msra.mxu0 0
        %2492 = vmatprep.subr.bf16.mxu0 0
        %2493 = vmatpush2.bf16.msra.mxu0 0
        %2494 = vmatprep.subr.bf16.mxu0 0
        %2495 = vmatpush2.bf16.msra.mxu0 0
        %2496 = vmatprep.subr.bf16.mxu0 0
        %2497 = vmatpush2.bf16.msra.mxu0 0
        %2498 = vmatprep.subr.bf16.mxu0 0
        %2499 = vmatpush2.bf16.msra.mxu0 0
        %2500 = vmatprep.subr.bf16.mxu0 0
        %2501 = vmatpush2.bf16.msra.mxu0 0
        %2502 = vmatprep.mubr.bf16.mxu0 0
        %2503 = vmatmul.mubr.bf16.gmra.mxu0 %v681
        %v2504 = vpop.f32.mrf.mxu0
        %v2505 = vadd.f32 0.0, %v2504
        %v2506 = vpop.f32.mrf.mxu0
        %v2507 = vadd.f32 0.0, %v2506
        %v2508 = vpop.f32.mrf.mxu0
        %v2509 = vadd.f32 0.0, %v2508
        %v2510 = vpop.f32.mrf.mxu0
        %v2511 = vadd.f32 0.0, %v2510
        %2512 = vdwg.mxu0
        %2513 = vmatprep.subr.bf16.mxu0 0
        %2514 = vmatpush1.bf16.msra.mxu0 0
        %2515 = vmatprep.subr.bf16.mxu0 0
        %2516 = vmatpush1.bf16.msra.mxu0 0
        %2517 = vmatprep.subr.bf16.mxu0 0
        %2518 = vmatpush1.bf16.msra.mxu0 0
        %2519 = vmatprep.subr.bf16.mxu0 0
        %2520 = vmatpush1.bf16.msra.mxu0 0
        %2521 = vmatprep.subr.bf16.mxu0 0
        %2522 = vmatpush1.bf16.msra.mxu0 0
        %2523 = vmatprep.subr.bf16.mxu0 0
        %2524 = vmatpush1.bf16.msra.mxu0 0
        %2525 = vmatprep.subr.bf16.mxu0 0
        %2526 = vmatpush1.bf16.msra.mxu0 0
        %2527 = vmatprep.subr.bf16.mxu0 %v2427
        %2528 = vmatpush1.bf16.msra.mxu0 %v2426
        %2529 = vmatprep.subr.bf16.mxu0 0
        %2530 = vmatpush2.bf16.msra.mxu0 0
        %2531 = vmatprep.subr.bf16.mxu0 0
        %2532 = vmatpush2.bf16.msra.mxu0 0
        %2533 = vmatprep.subr.bf16.mxu0 0
        %2534 = vmatpush2.bf16.msra.mxu0 0
        %2535 = vmatprep.subr.bf16.mxu0 0
        %2536 = vmatpush2.bf16.msra.mxu0 0
        %2537 = vmatprep.subr.bf16.mxu0 0
        %2538 = vmatpush2.bf16.msra.mxu0 0
        %2539 = vmatprep.subr.bf16.mxu0 0
        %2540 = vmatpush2.bf16.msra.mxu0 0
        %2541 = vmatprep.subr.bf16.mxu0 0
        %2542 = vmatpush2.bf16.msra.mxu0 0
        %2543 = vmatprep.subr.bf16.mxu0 0
        %2544 = vmatpush2.bf16.msra.mxu0 0
        %2545 = vmatprep.mubr.bf16.mxu0 0
        %2546 = vmatmul.mubr.bf16.gmra.mxu0 %v732
        %v2547 = vpop.f32.mrf.mxu0
        %v2548 = vadd.f32 %v2505, %v2547
        %v2549 = vpop.f32.mrf.mxu0
        %v2550 = vadd.f32 %v2507, %v2549
        %v2551 = vpop.f32.mrf.mxu0
        %v2552 = vadd.f32 %v2509, %v2551
        %v2553 = vpop.f32.mrf.mxu0
        %v2554 = vadd.f32 %v2511, %v2553
        %2555 = vdwg.mxu0
        %v2556 = vpack.c.bf16 %v2402, %v2400
        %v2557 = vpack.c.bf16 %v2403, %v2401
        %2558 = vmatprep.subr.bf16.mxu0 0
        %2559 = vmatpush1.bf16.msra.mxu0 0
        %2560 = vmatprep.subr.bf16.mxu0 0
        %2561 = vmatpush1.bf16.msra.mxu0 0
        %2562 = vmatprep.subr.bf16.mxu0 0
        %2563 = vmatpush1.bf16.msra.mxu0 0
        %2564 = vmatprep.subr.bf16.mxu0 0
        %2565 = vmatpush1.bf16.msra.mxu0 0
        %2566 = vmatprep.subr.bf16.mxu0 0
        %2567 = vmatpush1.bf16.msra.mxu0 0
        %2568 = vmatprep.subr.bf16.mxu0 0
        %2569 = vmatpush1.bf16.msra.mxu0 0
        %2570 = vmatprep.subr.bf16.mxu0 0
        %2571 = vmatpush1.bf16.msra.mxu0 0
        %2572 = vmatprep.subr.bf16.mxu0 %v2557
        %2573 = vmatpush1.bf16.msra.mxu0 %v2556
        %2574 = vmatprep.subr.bf16.mxu0 0
        %2575 = vmatpush2.bf16.msra.mxu0 0
        %2576 = vmatprep.subr.bf16.mxu0 0
        %2577 = vmatpush2.bf16.msra.mxu0 0
        %2578 = vmatprep.subr.bf16.mxu0 0
        %2579 = vmatpush2.bf16.msra.mxu0 0
        %2580 = vmatprep.subr.bf16.mxu0 0
        %2581 = vmatpush2.bf16.msra.mxu0 0
        %2582 = vmatprep.subr.bf16.mxu0 0
        %2583 = vmatpush2.bf16.msra.mxu0 0
        %2584 = vmatprep.subr.bf16.mxu0 0
        %2585 = vmatpush2.bf16.msra.mxu0 0
        %2586 = vmatprep.subr.bf16.mxu0 0
        %2587 = vmatpush2.bf16.msra.mxu0 0
        %2588 = vmatprep.subr.bf16.mxu0 0
        %2589 = vmatpush2.bf16.msra.mxu0 0
        %2590 = vmatprep.mubr.bf16.mxu0 0
        %2591 = vmatmul.mubr.bf16.gmra.mxu0 %v785
        %v2592 = vpop.f32.mrf.mxu0
        %v2593 = vadd.f32 0.0, %v2592
        %v2594 = vpop.f32.mrf.mxu0
        %v2595 = vadd.f32 0.0, %v2594
        %v2596 = vpop.f32.mrf.mxu0
        %v2597 = vadd.f32 0.0, %v2596
        %v2598 = vpop.f32.mrf.mxu0
        %v2599 = vadd.f32 0.0, %v2598
        %2600 = vdwg.mxu0
        %v2601 = vadd.f32 %v2548, %v2593
        %v2602 = vadd.f32 %v2550, %v2595
        %v2603 = vadd.f32 %v2552, %v2597
        %v2604 = vadd.f32 %v2554, %v2599
        %2605 = vrot.lane.b32.xlu0 %v2400, 127
        %v2606 = vpop.permute.xlu0 %2605
        %2607 = vrot.lane.b32.xlu0 %v2401, 127
        %v2608 = vpop.permute.xlu0 %2607
        %2609 = vrot.lane.b32.xlu0 %v2402, 127
        %v2610 = vpop.permute.xlu0 %2609
        %2611 = vrot.lane.b32.xlu0 %v2403, 127
        %v2612 = vpop.permute.xlu0 %2611
        %v2613 = vsel %vm842, %v2606, %v2608
        %v2614 = vsel %vm842, %v2610, %v2612
        %v2621 = vsel %vm842, %v2608, %v2606
        %v2622 = vsel %vm842, %v2612, %v2610
        %2623 = vrot.lane.b32.xlu0 %v2401, 15
        %v2624 = vpop.permute.xlu0 %2623
        %2625 = vrot.lane.b32.xlu0 %v2403, 15
        %v2626 = vpop.permute.xlu0 %2625
        %2629 = vrot.lane.b32.xlu0 %v2400, 15
        %v2630 = vpop.permute.xlu0 %2629
        %2631 = vrot.lane.b32.xlu0 %v2402, 15
        %v2632 = vpop.permute.xlu0 %2631
        %v2633 = vsel %vm863, %v2630, %v2624
        %v2634 = vsel %vm863, %v2632, %v2626
        %v2639 = vsel %vm863, %v2624, %v2630
        %v2640 = vsel %vm863, %v2626, %v2632
        %v2641 = vsel %vm874, %v2639, %v2613
        %v2642 = vsel %vm875, %v2633, %v2621
        %v2643 = vsel %vm874, %v2640, %v2614
        %v2644 = vsel %vm875, %v2634, %v2622
        %v2645 = vpack.c.bf16 %v2643, %v2641
        %v2646 = vpack.c.bf16 %v2644, %v2642
        %2647 = vmatprep.subr.bf16.mxu0 0
        %2648 = vmatpush1.bf16.msra.mxu0 0
        %2649 = vmatprep.subr.bf16.mxu0 0
        %2650 = vmatpush1.bf16.msra.mxu0 0
        %2651 = vmatprep.subr.bf16.mxu0 0
        %2652 = vmatpush1.bf16.msra.mxu0 0
        %2653 = vmatprep.subr.bf16.mxu0 0
        %2654 = vmatpush1.bf16.msra.mxu0 0
        %2655 = vmatprep.subr.bf16.mxu0 0
        %2656 = vmatpush1.bf16.msra.mxu0 0
        %2657 = vmatprep.subr.bf16.mxu0 0
        %2658 = vmatpush1.bf16.msra.mxu0 0
        %2659 = vmatprep.subr.bf16.mxu0 0
        %2660 = vmatpush1.bf16.msra.mxu0 0
        %2661 = vmatprep.subr.bf16.mxu0 %v2646
        %2662 = vmatpush1.bf16.msra.mxu0 %v2645
        %2663 = vmatprep.subr.bf16.mxu0 0
        %2664 = vmatpush2.bf16.msra.mxu0 0
        %2665 = vmatprep.subr.bf16.mxu0 0
        %2666 = vmatpush2.bf16.msra.mxu0 0
        %2667 = vmatprep.subr.bf16.mxu0 0
        %2668 = vmatpush2.bf16.msra.mxu0 0
        %2669 = vmatprep.subr.bf16.mxu0 0
        %2670 = vmatpush2.bf16.msra.mxu0 0
        %2671 = vmatprep.subr.bf16.mxu0 0
        %2672 = vmatpush2.bf16.msra.mxu0 0
        %2673 = vmatprep.subr.bf16.mxu0 0
        %2674 = vmatpush2.bf16.msra.mxu0 0
        %2675 = vmatprep.subr.bf16.mxu0 0
        %2676 = vmatpush2.bf16.msra.mxu0 0
        %2677 = vmatprep.subr.bf16.mxu0 0
        %2678 = vmatpush2.bf16.msra.mxu0 0
        %2679 = vmatprep.mubr.bf16.mxu0 0
        %2680 = vmatmul.mubr.bf16.gmra.mxu0 %v888
        %v2681 = vpop.f32.mrf.mxu0
        %v2682 = vadd.f32 0.0, %v2681
        %v2683 = vpop.f32.mrf.mxu0
        %v2684 = vadd.f32 0.0, %v2683
        %v2685 = vpop.f32.mrf.mxu0
        %v2686 = vadd.f32 0.0, %v2685
        %v2687 = vpop.f32.mrf.mxu0
        %v2688 = vadd.f32 0.0, %v2687
        %2689 = vdwg.mxu0
        %v2690 = vadd.f32 %v2601, %v2682
        %v2691 = vadd.f32 %v2602, %v2684
        %v2692 = vadd.f32 %v2603, %v2686
        %v2693 = vadd.f32 %v2604, %v2688
        %2694 = vrot.lane.b32.xlu0 %v2400, 112
        %v2695 = vpop.permute.xlu0 %2694
        %2696 = vrot.lane.b32.xlu0 %v2401, 112
        %v2697 = vpop.permute.xlu0 %2696
        %2698 = vrot.lane.b32.xlu0 %v2402, 112
        %v2699 = vpop.permute.xlu0 %2698
        %2700 = vrot.lane.b32.xlu0 %v2403, 112
        %v2701 = vpop.permute.xlu0 %2700
        %v2702 = vsel %vm945, %v2695, %v2697
        %v2703 = vsel %vm945, %v2699, %v2701
        %v2710 = vsel %vm945, %v2697, %v2695
        %v2711 = vsel %vm945, %v2701, %v2699
        %v2712 = vpack.c.bf16 %v2703, %v2702
        %v2713 = vpack.c.bf16 %v2711, %v2710
        %2714 = vmatprep.subr.bf16.mxu0 0
        %2715 = vmatpush1.bf16.msra.mxu0 0
        %2716 = vmatprep.subr.bf16.mxu0 0
        %2717 = vmatpush1.bf16.msra.mxu0 0
        %2718 = vmatprep.subr.bf16.mxu0 0
        %2719 = vmatpush1.bf16.msra.mxu0 0
        %2720 = vmatprep.subr.bf16.mxu0 0
        %2721 = vmatpush1.bf16.msra.mxu0 0
        %2722 = vmatprep.subr.bf16.mxu0 0
        %2723 = vmatpush1.bf16.msra.mxu0 0
        %2724 = vmatprep.subr.bf16.mxu0 0
        %2725 = vmatpush1.bf16.msra.mxu0 0
        %2726 = vmatprep.subr.bf16.mxu0 0
        %2727 = vmatpush1.bf16.msra.mxu0 0
        %2728 = vmatprep.subr.bf16.mxu0 %v2713
        %2729 = vmatpush1.bf16.msra.mxu0 %v2712
        %2730 = vmatprep.subr.bf16.mxu0 0
        %2731 = vmatpush2.bf16.msra.mxu0 0
        %2732 = vmatprep.subr.bf16.mxu0 0
        %2733 = vmatpush2.bf16.msra.mxu0 0
        %2734 = vmatprep.subr.bf16.mxu0 0
        %2735 = vmatpush2.bf16.msra.mxu0 0
        %2736 = vmatprep.subr.bf16.mxu0 0
        %2737 = vmatpush2.bf16.msra.mxu0 0
        %2738 = vmatprep.subr.bf16.mxu0 0
        %2739 = vmatpush2.bf16.msra.mxu0 0
        %2740 = vmatprep.subr.bf16.mxu0 0
        %2741 = vmatpush2.bf16.msra.mxu0 0
        %2742 = vmatprep.subr.bf16.mxu0 0
        %2743 = vmatpush2.bf16.msra.mxu0 0
        %2744 = vmatprep.subr.bf16.mxu0 0
        %2745 = vmatpush2.bf16.msra.mxu0 0
        %2746 = vmatprep.mubr.bf16.mxu0 0
        %2747 = vmatmul.mubr.bf16.gmra.mxu0 %v964
        %v2748 = vpop.f32.mrf.mxu0
        %v2749 = vadd.f32 0.0, %v2748
        %v2750 = vpop.f32.mrf.mxu0
        %v2751 = vadd.f32 0.0, %v2750
        %v2752 = vpop.f32.mrf.mxu0
        %v2753 = vadd.f32 0.0, %v2752
        %v2754 = vpop.f32.mrf.mxu0
        %v2755 = vadd.f32 0.0, %v2754
        %2756 = vdwg.mxu0
        %v2757 = vadd.f32 %v2690, %v2749
        %v2758 = vadd.f32 %v2691, %v2751
        %v2759 = vadd.f32 %v2692, %v2753
        %v2760 = vadd.f32 %v2693, %v2755
        %v2761 = vadd.f32 %v2757, %v1016
        %v2762 = vadd.f32 %v2758, %v1016
        %v2763 = vadd.f32 %v2759, %v1021
        %v2764 = vadd.f32 %v2760, %v1021
        %v2765 = vadd.f32 %v2761, %v2762
        %v2766 = vadd.f32 %v2765, %v2763
        %v2767 = vadd.f32 %v2766, %v2764
        %2768 = vadd.xlane.f32.xlu0 %v2767
        %v2769 = vpop.xlane.xlu0 %2768
        %v2770 = vrot.slane %v2769, 4
        %v2771 = vadd.f32 %v2769, %v2770
        %v2772 = vrot.slane %v2771, 2
        %v2773 = vadd.f32 %v2771, %v2772
        %v2774 = vrot.slane %v2773, 1
        %v2775 = vadd.f32 %v2773, %v2774
        %s2776 = vtos %v2775
        %v2777 = vstv %s2776
        %v2778 = vmul.f32 %v2777, %v1040
        %v2779 = vmul.f32 %v2761, %v2761
        %v2780 = vmul.f32 %v2762, %v2762
        %v2781 = vmul.f32 %v2763, %v2763
        %v2782 = vmul.f32 %v2764, %v2764
        %v2783 = vadd.f32 %v2779, %v2780
        %v2784 = vadd.f32 %v2783, %v2781
        %v2785 = vadd.f32 %v2784, %v2782
        %2786 = vadd.xlane.f32.xlu0 %v2785
        %v2787 = vpop.xlane.xlu0 %2786
        %v2788 = vrot.slane %v2787, 4
        %v2789 = vadd.f32 %v2787, %v2788
        %v2790 = vrot.slane %v2789, 2
        %v2791 = vadd.f32 %v2789, %v2790
        %v2792 = vrot.slane %v2791, 1
        %v2793 = vadd.f32 %v2791, %v2792
        %s2794 = vtos %v2793
        %v2795 = vstv %s2794
        %v2796 = vmul.f32 %v2795, %v1040
        %v2797 = vmul.f32 %v2778, %v2778
        %v2798 = vsub.f32 %v2796, %v2797
        %v2799 = vsub.f32 %v2761, %v2778
        %v2800 = vsub.f32 %v2762, %v2778
        %v2801 = vsub.f32 %v2763, %v2778
        %v2802 = vsub.f32 %v2764, %v2778
        %v2803 = vadd.f32 %v2798, 1e-05
        %v2804 = vrsqrt.pop %v2803
        %v2805 = vmul.f32 %v2799, %v2804
        %v2806 = vmul.f32 %v2800, %v2804
        %v2807 = vmul.f32 %v2801, %v2804
        %v2808 = vmul.f32 %v2802, %v2804
        %v2809 = vmul.f32 %v2805, %v576
        %v2810 = vmul.f32 %v2806, %v577
        %v2811 = vmul.f32 %v2807, %v578
        %v2812 = vmul.f32 %v2808, %v579
        %v2813 = vadd.f32 %v2809, %v580
        %v2814 = vadd.f32 %v2810, %v581
        %v2815 = vadd.f32 %v2811, %v582
        %v2816 = vadd.f32 %v2812, %v583
        %v2817 = vmax.f32 %v2813, 0.0
        %v2818 = vmax.f32 %v2814, 0.0
        %v2819 = vmax.f32 %v2815, 0.0
        %v2820 = vmax.f32 %v2816, 0.0
        %2823 = vrot.lane.b32.xlu0 %v2818, 16
        %v2824 = vpop.permute.xlu0 %2823
        %2825 = vrot.lane.b32.xlu0 %v2820, 16
        %v2826 = vpop.permute.xlu0 %2825
        %2831 = vrot.lane.b32.xlu0 %v2817, 16
        %v2832 = vpop.permute.xlu0 %2831
        %2833 = vrot.lane.b32.xlu0 %v2819, 16
        %v2834 = vpop.permute.xlu0 %2833
        %v2835 = vsel %vm616, %v2832, %v2824
        %v2836 = vsel %vm616, %v2834, %v2826
        %v2841 = vsel %vm616, %v2824, %v2832
        %v2842 = vsel %vm616, %v2826, %v2834
        %v2843 = vpack.c.bf16 %v2842, %v2841
        %v2844 = vpack.c.bf16 %v2836, %v2835
        %2845 = vrot.lane.b32.xlu0 %v2818, 1
        %v2846 = vpop.permute.xlu0 %2845
        %2847 = vrot.lane.b32.xlu0 %v2820, 1
        %v2848 = vpop.permute.xlu0 %2847
        %2851 = vrot.lane.b32.xlu0 %v2817, 1
        %v2852 = vpop.permute.xlu0 %2851
        %2853 = vrot.lane.b32.xlu0 %v2819, 1
        %v2854 = vpop.permute.xlu0 %2853
        %v2855 = vsel %vm637, %v2852, %v2846
        %v2856 = vsel %vm637, %v2854, %v2848
        %v2861 = vsel %vm637, %v2846, %v2852
        %v2862 = vsel %vm637, %v2848, %v2854
        %2863 = vrot.lane.b32.xlu0 %v2817, 113
        %v2864 = vpop.permute.xlu0 %2863
        %2865 = vrot.lane.b32.xlu0 %v2818, 113
        %v2866 = vpop.permute.xlu0 %2865
        %2867 = vrot.lane.b32.xlu0 %v2819, 113
        %v2868 = vpop.permute.xlu0 %2867
        %2869 = vrot.lane.b32.xlu0 %v2820, 113
        %v2870 = vpop.permute.xlu0 %2869
        %v2871 = vsel %vm654, %v2864, %v2866
        %v2872 = vsel %vm654, %v2868, %v2870
        %v2879 = vsel %vm654, %v2866, %v2864
        %v2880 = vsel %vm654, %v2870, %v2868
        %v2881 = vsel %vm667, %v2871, %v2861
        %v2882 = vsel %vm668, %v2879, %v2855
        %v2883 = vsel %vm667, %v2872, %v2862
        %v2884 = vsel %vm668, %v2880, %v2856
        %v2885 = vpack.c.bf16 %v2883, %v2881
        %v2886 = vpack.c.bf16 %v2884, %v2882
        %2887 = vmatprep.subr.bf16.mxu0 0
        %2888 = vmatpush1.bf16.msra.mxu0 0
        %2889 = vmatprep.subr.bf16.mxu0 0
        %2890 = vmatpush1.bf16.msra.mxu0 0
        %2891 = vmatprep.subr.bf16.mxu0 0
        %2892 = vmatpush1.bf16.msra.mxu0 0
        %2893 = vmatprep.subr.bf16.mxu0 0
        %2894 = vmatpush1.bf16.msra.mxu0 0
        %2895 = vmatprep.subr.bf16.mxu0 0
        %2896 = vmatpush1.bf16.msra.mxu0 0
        %2897 = vmatprep.subr.bf16.mxu0 0
        %2898 = vmatpush1.bf16.msra.mxu0 0
        %2899 = vmatprep.subr.bf16.mxu0 0
        %2900 = vmatpush1.bf16.msra.mxu0 0
        %2901 = vmatprep.subr.bf16.mxu0 %v2886
        %2902 = vmatpush1.bf16.msra.mxu0 %v2885
        %2903 = vmatprep.subr.bf16.mxu0 0
        %2904 = vmatpush2.bf16.msra.mxu0 0
        %2905 = vmatprep.subr.bf16.mxu0 0
        %2906 = vmatpush2.bf16.msra.mxu0 0
        %2907 = vmatprep.subr.bf16.mxu0 0
        %2908 = vmatpush2.bf16.msra.mxu0 0
        %2909 = vmatprep.subr.bf16.mxu0 0
        %2910 = vmatpush2.bf16.msra.mxu0 0
        %2911 = vmatprep.subr.bf16.mxu0 0
        %2912 = vmatpush2.bf16.msra.mxu0 0
        %2913 = vmatprep.subr.bf16.mxu0 0
        %2914 = vmatpush2.bf16.msra.mxu0 0
        %2915 = vmatprep.subr.bf16.mxu0 0
        %2916 = vmatpush2.bf16.msra.mxu0 0
        %2917 = vmatprep.subr.bf16.mxu0 0
        %2918 = vmatpush2.bf16.msra.mxu0 0
        %2919 = vmatprep.mubr.bf16.mxu0 0
        %2920 = vmatmul.mubr.bf16.gmra.mxu0 %v1156
        %v2921 = vpop.f32.mrf.mxu0
        %v2922 = vadd.f32 0.0, %v2921
        %v2923 = vpop.f32.mrf.mxu0
        %v2924 = vadd.f32 0.0, %v2923
        %v2925 = vpop.f32.mrf.mxu0
        %v2926 = vadd.f32 0.0, %v2925
        %v2927 = vpop.f32.mrf.mxu0
        %v2928 = vadd.f32 0.0, %v2927
        %2929 = vdwg.mxu0
        %2930 = vmatprep.subr.bf16.mxu0 0
        %2931 = vmatpush1.bf16.msra.mxu0 0
        %2932 = vmatprep.subr.bf16.mxu0 0
        %2933 = vmatpush1.bf16.msra.mxu0 0
        %2934 = vmatprep.subr.bf16.mxu0 0
        %2935 = vmatpush1.bf16.msra.mxu0 0
        %2936 = vmatprep.subr.bf16.mxu0 0
        %2937 = vmatpush1.bf16.msra.mxu0 0
        %2938 = vmatprep.subr.bf16.mxu0 0
        %2939 = vmatpush1.bf16.msra.mxu0 0
        %2940 = vmatprep.subr.bf16.mxu0 0
        %2941 = vmatpush1.bf16.msra.mxu0 0
        %2942 = vmatprep.subr.bf16.mxu0 0
        %2943 = vmatpush1.bf16.msra.mxu0 0
        %2944 = vmatprep.subr.bf16.mxu0 %v2844
        %2945 = vmatpush1.bf16.msra.mxu0 %v2843
        %2946 = vmatprep.subr.bf16.mxu0 0
        %2947 = vmatpush2.bf16.msra.mxu0 0
        %2948 = vmatprep.subr.bf16.mxu0 0
        %2949 = vmatpush2.bf16.msra.mxu0 0
        %2950 = vmatprep.subr.bf16.mxu0 0
        %2951 = vmatpush2.bf16.msra.mxu0 0
        %2952 = vmatprep.subr.bf16.mxu0 0
        %2953 = vmatpush2.bf16.msra.mxu0 0
        %2954 = vmatprep.subr.bf16.mxu0 0
        %2955 = vmatpush2.bf16.msra.mxu0 0
        %2956 = vmatprep.subr.bf16.mxu0 0
        %2957 = vmatpush2.bf16.msra.mxu0 0
        %2958 = vmatprep.subr.bf16.mxu0 0
        %2959 = vmatpush2.bf16.msra.mxu0 0
        %2960 = vmatprep.subr.bf16.mxu0 0
        %2961 = vmatpush2.bf16.msra.mxu0 0
        %2962 = vmatprep.mubr.bf16.mxu0 0
        %2963 = vmatmul.mubr.bf16.gmra.mxu0 %v1207
        %v2964 = vpop.f32.mrf.mxu0
        %v2965 = vadd.f32 %v2922, %v2964
        %v2966 = vpop.f32.mrf.mxu0
        %v2967 = vadd.f32 %v2924, %v2966
        %v2968 = vpop.f32.mrf.mxu0
        %v2969 = vadd.f32 %v2926, %v2968
        %v2970 = vpop.f32.mrf.mxu0
        %v2971 = vadd.f32 %v2928, %v2970
        %2972 = vdwg.mxu0
        %v2973 = vpack.c.bf16 %v2819, %v2817
        %v2974 = vpack.c.bf16 %v2820, %v2818
        %2975 = vmatprep.subr.bf16.mxu0 0
        %2976 = vmatpush1.bf16.msra.mxu0 0
        %2977 = vmatprep.subr.bf16.mxu0 0
        %2978 = vmatpush1.bf16.msra.mxu0 0
        %2979 = vmatprep.subr.bf16.mxu0 0
        %2980 = vmatpush1.bf16.msra.mxu0 0
        %2981 = vmatprep.subr.bf16.mxu0 0
        %2982 = vmatpush1.bf16.msra.mxu0 0
        %2983 = vmatprep.subr.bf16.mxu0 0
        %2984 = vmatpush1.bf16.msra.mxu0 0
        %2985 = vmatprep.subr.bf16.mxu0 0
        %2986 = vmatpush1.bf16.msra.mxu0 0
        %2987 = vmatprep.subr.bf16.mxu0 0
        %2988 = vmatpush1.bf16.msra.mxu0 0
        %2989 = vmatprep.subr.bf16.mxu0 %v2974
        %2990 = vmatpush1.bf16.msra.mxu0 %v2973
        %2991 = vmatprep.subr.bf16.mxu0 0
        %2992 = vmatpush2.bf16.msra.mxu0 0
        %2993 = vmatprep.subr.bf16.mxu0 0
        %2994 = vmatpush2.bf16.msra.mxu0 0
        %2995 = vmatprep.subr.bf16.mxu0 0
        %2996 = vmatpush2.bf16.msra.mxu0 0
        %2997 = vmatprep.subr.bf16.mxu0 0
        %2998 = vmatpush2.bf16.msra.mxu0 0
        %2999 = vmatprep.subr.bf16.mxu0 0
        %3000 = vmatpush2.bf16.msra.mxu0 0
        %3001 = vmatprep.subr.bf16.mxu0 0
        %3002 = vmatpush2.bf16.msra.mxu0 0
        %3003 = vmatprep.subr.bf16.mxu0 0
        %3004 = vmatpush2.bf16.msra.mxu0 0
        %3005 = vmatprep.subr.bf16.mxu0 0
        %3006 = vmatpush2.bf16.msra.mxu0 0
        %3007 = vmatprep.mubr.bf16.mxu0 0
        %3008 = vmatmul.mubr.bf16.gmra.mxu0 %v1260
        %v3009 = vpop.f32.mrf.mxu0
        %v3010 = vadd.f32 0.0, %v3009
        %v3011 = vpop.f32.mrf.mxu0
        %v3012 = vadd.f32 0.0, %v3011
        %v3013 = vpop.f32.mrf.mxu0
        %v3014 = vadd.f32 0.0, %v3013
        %v3015 = vpop.f32.mrf.mxu0
        %v3016 = vadd.f32 0.0, %v3015
        %3017 = vdwg.mxu0
        %v3018 = vadd.f32 %v2965, %v3010
        %v3019 = vadd.f32 %v2967, %v3012
        %v3020 = vadd.f32 %v2969, %v3014
        %v3021 = vadd.f32 %v2971, %v3016
        %3022 = vrot.lane.b32.xlu0 %v2817, 127
        %v3023 = vpop.permute.xlu0 %3022
        %3024 = vrot.lane.b32.xlu0 %v2818, 127
        %v3025 = vpop.permute.xlu0 %3024
        %3026 = vrot.lane.b32.xlu0 %v2819, 127
        %v3027 = vpop.permute.xlu0 %3026
        %3028 = vrot.lane.b32.xlu0 %v2820, 127
        %v3029 = vpop.permute.xlu0 %3028
        %v3030 = vsel %vm842, %v3023, %v3025
        %v3031 = vsel %vm842, %v3027, %v3029
        %v3038 = vsel %vm842, %v3025, %v3023
        %v3039 = vsel %vm842, %v3029, %v3027
        %3040 = vrot.lane.b32.xlu0 %v2818, 15
        %v3041 = vpop.permute.xlu0 %3040
        %3042 = vrot.lane.b32.xlu0 %v2820, 15
        %v3043 = vpop.permute.xlu0 %3042
        %3046 = vrot.lane.b32.xlu0 %v2817, 15
        %v3047 = vpop.permute.xlu0 %3046
        %3048 = vrot.lane.b32.xlu0 %v2819, 15
        %v3049 = vpop.permute.xlu0 %3048
        %v3050 = vsel %vm863, %v3047, %v3041
        %v3051 = vsel %vm863, %v3049, %v3043
        %v3056 = vsel %vm863, %v3041, %v3047
        %v3057 = vsel %vm863, %v3043, %v3049
        %v3058 = vsel %vm874, %v3056, %v3030
        %v3059 = vsel %vm875, %v3050, %v3038
        %v3060 = vsel %vm874, %v3057, %v3031
        %v3061 = vsel %vm875, %v3051, %v3039
        %v3062 = vpack.c.bf16 %v3060, %v3058
        %v3063 = vpack.c.bf16 %v3061, %v3059
        %3064 = vmatprep.subr.bf16.mxu0 0
        %3065 = vmatpush1.bf16.msra.mxu0 0
        %3066 = vmatprep.subr.bf16.mxu0 0
        %3067 = vmatpush1.bf16.msra.mxu0 0
        %3068 = vmatprep.subr.bf16.mxu0 0
        %3069 = vmatpush1.bf16.msra.mxu0 0
        %3070 = vmatprep.subr.bf16.mxu0 0
        %3071 = vmatpush1.bf16.msra.mxu0 0
        %3072 = vmatprep.subr.bf16.mxu0 0
        %3073 = vmatpush1.bf16.msra.mxu0 0
        %3074 = vmatprep.subr.bf16.mxu0 0
        %3075 = vmatpush1.bf16.msra.mxu0 0
        %3076 = vmatprep.subr.bf16.mxu0 0
        %3077 = vmatpush1.bf16.msra.mxu0 0
        %3078 = vmatprep.subr.bf16.mxu0 %v3063
        %3079 = vmatpush1.bf16.msra.mxu0 %v3062
        %3080 = vmatprep.subr.bf16.mxu0 0
        %3081 = vmatpush2.bf16.msra.mxu0 0
        %3082 = vmatprep.subr.bf16.mxu0 0
        %3083 = vmatpush2.bf16.msra.mxu0 0
        %3084 = vmatprep.subr.bf16.mxu0 0
        %3085 = vmatpush2.bf16.msra.mxu0 0
        %3086 = vmatprep.subr.bf16.mxu0 0
        %3087 = vmatpush2.bf16.msra.mxu0 0
        %3088 = vmatprep.subr.bf16.mxu0 0
        %3089 = vmatpush2.bf16.msra.mxu0 0
        %3090 = vmatprep.subr.bf16.mxu0 0
        %3091 = vmatpush2.bf16.msra.mxu0 0
        %3092 = vmatprep.subr.bf16.mxu0 0
        %3093 = vmatpush2.bf16.msra.mxu0 0
        %3094 = vmatprep.subr.bf16.mxu0 0
        %3095 = vmatpush2.bf16.msra.mxu0 0
        %3096 = vmatprep.mubr.bf16.mxu0 0
        %3097 = vmatmul.mubr.bf16.gmra.mxu0 %v1357
        %v3098 = vpop.f32.mrf.mxu0
        %v3099 = vadd.f32 0.0, %v3098
        %v3100 = vpop.f32.mrf.mxu0
        %v3101 = vadd.f32 0.0, %v3100
        %v3102 = vpop.f32.mrf.mxu0
        %v3103 = vadd.f32 0.0, %v3102
        %v3104 = vpop.f32.mrf.mxu0
        %v3105 = vadd.f32 0.0, %v3104
        %3106 = vdwg.mxu0
        %v3107 = vadd.f32 %v3018, %v3099
        %v3108 = vadd.f32 %v3019, %v3101
        %v3109 = vadd.f32 %v3020, %v3103
        %v3110 = vadd.f32 %v3021, %v3105
        %3111 = vrot.lane.b32.xlu0 %v2817, 112
        %v3112 = vpop.permute.xlu0 %3111
        %3113 = vrot.lane.b32.xlu0 %v2818, 112
        %v3114 = vpop.permute.xlu0 %3113
        %3115 = vrot.lane.b32.xlu0 %v2819, 112
        %v3116 = vpop.permute.xlu0 %3115
        %3117 = vrot.lane.b32.xlu0 %v2820, 112
        %v3118 = vpop.permute.xlu0 %3117
        %v3119 = vsel %vm945, %v3112, %v3114
        %v3120 = vsel %vm945, %v3116, %v3118
        %v3127 = vsel %vm945, %v3114, %v3112
        %v3128 = vsel %vm945, %v3118, %v3116
        %v3129 = vpack.c.bf16 %v3120, %v3119
        %v3130 = vpack.c.bf16 %v3128, %v3127
        %3131 = vmatprep.subr.bf16.mxu0 0
        %3132 = vmatpush1.bf16.msra.mxu0 0
        %3133 = vmatprep.subr.bf16.mxu0 0
        %3134 = vmatpush1.bf16.msra.mxu0 0
        %3135 = vmatprep.subr.bf16.mxu0 0
        %3136 = vmatpush1.bf16.msra.mxu0 0
        %3137 = vmatprep.subr.bf16.mxu0 0
        %3138 = vmatpush1.bf16.msra.mxu0 0
        %3139 = vmatprep.subr.bf16.mxu0 0
        %3140 = vmatpush1.bf16.msra.mxu0 0
        %3141 = vmatprep.subr.bf16.mxu0 0
        %3142 = vmatpush1.bf16.msra.mxu0 0
        %3143 = vmatprep.subr.bf16.mxu0 0
        %3144 = vmatpush1.bf16.msra.mxu0 0
        %3145 = vmatprep.subr.bf16.mxu0 %v3130
        %3146 = vmatpush1.bf16.msra.mxu0 %v3129
        %3147 = vmatprep.subr.bf16.mxu0 0
        %3148 = vmatpush2.bf16.msra.mxu0 0
        %3149 = vmatprep.subr.bf16.mxu0 0
        %3150 = vmatpush2.bf16.msra.mxu0 0
        %3151 = vmatprep.subr.bf16.mxu0 0
        %3152 = vmatpush2.bf16.msra.mxu0 0
        %3153 = vmatprep.subr.bf16.mxu0 0
        %3154 = vmatpush2.bf16.msra.mxu0 0
        %3155 = vmatprep.subr.bf16.mxu0 0
        %3156 = vmatpush2.bf16.msra.mxu0 0
        %3157 = vmatprep.subr.bf16.mxu0 0
        %3158 = vmatpush2.bf16.msra.mxu0 0
        %3159 = vmatprep.subr.bf16.mxu0 0
        %3160 = vmatpush2.bf16.msra.mxu0 0
        %3161 = vmatprep.subr.bf16.mxu0 0
        %3162 = vmatpush2.bf16.msra.mxu0 0
        %3163 = vmatprep.mubr.bf16.mxu0 0
        %3164 = vmatmul.mubr.bf16.gmra.mxu0 %v1432
        %v3165 = vpop.f32.mrf.mxu0
        %v3166 = vadd.f32 0.0, %v3165
        %v3167 = vpop.f32.mrf.mxu0
        %v3168 = vadd.f32 0.0, %v3167
        %v3169 = vpop.f32.mrf.mxu0
        %v3170 = vadd.f32 0.0, %v3169
        %v3171 = vpop.f32.mrf.mxu0
        %v3172 = vadd.f32 0.0, %v3171
        %3173 = vdwg.mxu0
        %v3174 = vadd.f32 %v3107, %v3166
        %v3175 = vadd.f32 %v3108, %v3168
        %v3176 = vadd.f32 %v3109, %v3170
        %v3177 = vadd.f32 %v3110, %v3172
        %v3178 = vadd.f32 %v3174, %v1484
        %v3179 = vadd.f32 %v3175, %v1484
        %v3180 = vadd.f32 %v3176, %v1489
        %v3181 = vadd.f32 %v3177, %v1489
        %v3182 = vadd.f32 %v3178, %v3179
        %v3183 = vadd.f32 %v3182, %v3180
        %v3184 = vadd.f32 %v3183, %v3181
        %3185 = vadd.xlane.f32.xlu0 %v3184
        %v3186 = vpop.xlane.xlu0 %3185
        %v3187 = vrot.slane %v3186, 4
        %v3188 = vadd.f32 %v3186, %v3187
        %v3189 = vrot.slane %v3188, 2
        %v3190 = vadd.f32 %v3188, %v3189
        %v3191 = vrot.slane %v3190, 1
        %v3192 = vadd.f32 %v3190, %v3191
        %s3193 = vtos %v3192
        %v3194 = vstv %s3193
        %v3195 = vmul.f32 %v3194, %v1040
        %v3196 = vmul.f32 %v3178, %v3178
        %v3197 = vmul.f32 %v3179, %v3179
        %v3198 = vmul.f32 %v3180, %v3180
        %v3199 = vmul.f32 %v3181, %v3181
        %v3200 = vadd.f32 %v3196, %v3197
        %v3201 = vadd.f32 %v3200, %v3198
        %v3202 = vadd.f32 %v3201, %v3199
        %3203 = vadd.xlane.f32.xlu0 %v3202
        %v3204 = vpop.xlane.xlu0 %3203
        %v3205 = vrot.slane %v3204, 4
        %v3206 = vadd.f32 %v3204, %v3205
        %v3207 = vrot.slane %v3206, 2
        %v3208 = vadd.f32 %v3206, %v3207
        %v3209 = vrot.slane %v3208, 1
        %v3210 = vadd.f32 %v3208, %v3209
        %s3211 = vtos %v3210
        %v3212 = vstv %s3211
        %v3213 = vmul.f32 %v3212, %v1040
        %v3214 = vmul.f32 %v3195, %v3195
        %v3215 = vsub.f32 %v3213, %v3214
        %v3216 = vsub.f32 %v3178, %v3195
        %v3217 = vsub.f32 %v3179, %v3195
        %v3218 = vsub.f32 %v3180, %v3195
        %v3219 = vsub.f32 %v3181, %v3195
        %v3220 = vadd.f32 %v3215, 1e-05
        %v3221 = vrsqrt.pop %v3220
        %v3222 = vmul.f32 %v3216, %v3221
        %v3223 = vmul.f32 %v3217, %v3221
        %v3224 = vmul.f32 %v3218, %v3221
        %v3225 = vmul.f32 %v3219, %v3221
        %v3226 = vmul.f32 %v3222, %v584
        %v3227 = vmul.f32 %v3223, %v585
        %v3228 = vmul.f32 %v3224, %v586
        %v3229 = vmul.f32 %v3225, %v587
        %v3230 = vadd.f32 %v3226, %v588
        %v3231 = vadd.f32 %v3227, %v589
        %v3232 = vadd.f32 %v3228, %v590
        %v3233 = vadd.f32 %v3229, %v591
        %v3234 = vadd.f32 %v3230, %v3231
        %3235 = vadd.xlane.f32.xlu0 %v3234
        %v3236 = vpop.xlane.xlu0 %3235
        %v3237 = vadd.f32 %v3232, %v3233
        %3238 = vadd.xlane.f32.xlu0 %v3237
        %v3239 = vpop.xlane.xlu0 %3238
        %v3240 = vmul.f32 %v3236, %v1553
        %v3241 = vmul.f32 %v3239, %v1553
        %s3242 = scalar_lea.vmem %s459, 96 [#allocation2]
        %v3243 = vld [vmem:[%s3242] sm:$0xff]
        %v3244 = vld [vmem:[%s3242 + $0x8] sm:$0xff]
        %v3245 = vld [vmem:[%s3242 + $0x10] sm:$0xff]
        %v3246 = vld [vmem:[%s3242 + $0x18] sm:$0xff]
        %3249 = vrot.lane.b32.xlu0 %v3244, 16
        %v3250 = vpop.permute.xlu0 %3249
        %3251 = vrot.lane.b32.xlu0 %v3246, 16
        %v3252 = vpop.permute.xlu0 %3251
        %3257 = vrot.lane.b32.xlu0 %v3243, 16
        %v3258 = vpop.permute.xlu0 %3257
        %3259 = vrot.lane.b32.xlu0 %v3245, 16
        %v3260 = vpop.permute.xlu0 %3259
        %v3261 = vsel %vm616, %v3258, %v3250
        %v3262 = vsel %vm616, %v3260, %v3252
        %v3267 = vsel %vm616, %v3250, %v3258
        %v3268 = vsel %vm616, %v3252, %v3260
        %v3269 = vpack.c.bf16 %v3268, %v3267
        %v3270 = vpack.c.bf16 %v3262, %v3261
        %3271 = vrot.lane.b32.xlu0 %v3244, 1
        %v3272 = vpop.permute.xlu0 %3271
        %3273 = vrot.lane.b32.xlu0 %v3246, 1
        %v3274 = vpop.permute.xlu0 %3273
        %3277 = vrot.lane.b32.xlu0 %v3243, 1
        %v3278 = vpop.permute.xlu0 %3277
        %3279 = vrot.lane.b32.xlu0 %v3245, 1
        %v3280 = vpop.permute.xlu0 %3279
        %v3281 = vsel %vm637, %v3278, %v3272
        %v3282 = vsel %vm637, %v3280, %v3274
        %v3287 = vsel %vm637, %v3272, %v3278
        %v3288 = vsel %vm637, %v3274, %v3280
        %3289 = vrot.lane.b32.xlu0 %v3243, 113
        %v3290 = vpop.permute.xlu0 %3289
        %3291 = vrot.lane.b32.xlu0 %v3244, 113
        %v3292 = vpop.permute.xlu0 %3291
        %3293 = vrot.lane.b32.xlu0 %v3245, 113
        %v3294 = vpop.permute.xlu0 %3293
        %3295 = vrot.lane.b32.xlu0 %v3246, 113
        %v3296 = vpop.permute.xlu0 %3295
        %v3297 = vsel %vm654, %v3290, %v3292
        %v3298 = vsel %vm654, %v3294, %v3296
        %v3305 = vsel %vm654, %v3292, %v3290
        %v3306 = vsel %vm654, %v3296, %v3294
        %v3307 = vsel %vm667, %v3297, %v3287
        %v3308 = vsel %vm668, %v3305, %v3281
        %v3309 = vsel %vm667, %v3298, %v3288
        %v3310 = vsel %vm668, %v3306, %v3282
        %v3311 = vpack.c.bf16 %v3309, %v3307
        %v3312 = vpack.c.bf16 %v3310, %v3308
        %3313 = vmatprep.subr.bf16.mxu0 0
        %3314 = vmatpush1.bf16.msra.mxu0 0
        %3315 = vmatprep.subr.bf16.mxu0 0
        %3316 = vmatpush1.bf16.msra.mxu0 0
        %3317 = vmatprep.subr.bf16.mxu0 0
        %3318 = vmatpush1.bf16.msra.mxu0 0
        %3319 = vmatprep.subr.bf16.mxu0 0
        %3320 = vmatpush1.bf16.msra.mxu0 0
        %3321 = vmatprep.subr.bf16.mxu0 0
        %3322 = vmatpush1.bf16.msra.mxu0 0
        %3323 = vmatprep.subr.bf16.mxu0 0
        %3324 = vmatpush1.bf16.msra.mxu0 0
        %3325 = vmatprep.subr.bf16.mxu0 0
        %3326 = vmatpush1.bf16.msra.mxu0 0
        %3327 = vmatprep.subr.bf16.mxu0 %v3312
        %3328 = vmatpush1.bf16.msra.mxu0 %v3311
        %3329 = vmatprep.subr.bf16.mxu0 0
        %3330 = vmatpush2.bf16.msra.mxu0 0
        %3331 = vmatprep.subr.bf16.mxu0 0
        %3332 = vmatpush2.bf16.msra.mxu0 0
        %3333 = vmatprep.subr.bf16.mxu0 0
        %3334 = vmatpush2.bf16.msra.mxu0 0
        %3335 = vmatprep.subr.bf16.mxu0 0
        %3336 = vmatpush2.bf16.msra.mxu0 0
        %3337 = vmatprep.subr.bf16.mxu0 0
        %3338 = vmatpush2.bf16.msra.mxu0 0
        %3339 = vmatprep.subr.bf16.mxu0 0
        %3340 = vmatpush2.bf16.msra.mxu0 0
        %3341 = vmatprep.subr.bf16.mxu0 0
        %3342 = vmatpush2.bf16.msra.mxu0 0
        %3343 = vmatprep.subr.bf16.mxu0 0
        %3344 = vmatpush2.bf16.msra.mxu0 0
        %3345 = vmatprep.mubr.bf16.mxu0 0
        %3346 = vmatmul.mubr.bf16.gmra.mxu0 %v681
        %v3347 = vpop.f32.mrf.mxu0
        %v3348 = vadd.f32 0.0, %v3347
        %v3349 = vpop.f32.mrf.mxu0
        %v3350 = vadd.f32 0.0, %v3349
        %v3351 = vpop.f32.mrf.mxu0
        %v3352 = vadd.f32 0.0, %v3351
        %v3353 = vpop.f32.mrf.mxu0
        %v3354 = vadd.f32 0.0, %v3353
        %3355 = vdwg.mxu0
        %3356 = vmatprep.subr.bf16.mxu0 0
        %3357 = vmatpush1.bf16.msra.mxu0 0
        %3358 = vmatprep.subr.bf16.mxu0 0
        %3359 = vmatpush1.bf16.msra.mxu0 0
        %3360 = vmatprep.subr.bf16.mxu0 0
        %3361 = vmatpush1.bf16.msra.mxu0 0
        %3362 = vmatprep.subr.bf16.mxu0 0
        %3363 = vmatpush1.bf16.msra.mxu0 0
        %3364 = vmatprep.subr.bf16.mxu0 0
        %3365 = vmatpush1.bf16.msra.mxu0 0
        %3366 = vmatprep.subr.bf16.mxu0 0
        %3367 = vmatpush1.bf16.msra.mxu0 0
        %3368 = vmatprep.subr.bf16.mxu0 0
        %3369 = vmatpush1.bf16.msra.mxu0 0
        %3370 = vmatprep.subr.bf16.mxu0 %v3270
        %3371 = vmatpush1.bf16.msra.mxu0 %v3269
        %3372 = vmatprep.subr.bf16.mxu0 0
        %3373 = vmatpush2.bf16.msra.mxu0 0
        %3374 = vmatprep.subr.bf16.mxu0 0
        %3375 = vmatpush2.bf16.msra.mxu0 0
        %3376 = vmatprep.subr.bf16.mxu0 0
        %3377 = vmatpush2.bf16.msra.mxu0 0
        %3378 = vmatprep.subr.bf16.mxu0 0
        %3379 = vmatpush2.bf16.msra.mxu0 0
        %3380 = vmatprep.subr.bf16.mxu0 0
        %3381 = vmatpush2.bf16.msra.mxu0 0
        %3382 = vmatprep.subr.bf16.mxu0 0
        %3383 = vmatpush2.bf16.msra.mxu0 0
        %3384 = vmatprep.subr.bf16.mxu0 0
        %3385 = vmatpush2.bf16.msra.mxu0 0
        %3386 = vmatprep.subr.bf16.mxu0 0
        %3387 = vmatpush2.bf16.msra.mxu0 0
        %3388 = vmatprep.mubr.bf16.mxu0 0
        %3389 = vmatmul.mubr.bf16.gmra.mxu0 %v732
        %v3390 = vpop.f32.mrf.mxu0
        %v3391 = vadd.f32 %v3348, %v3390
        %v3392 = vpop.f32.mrf.mxu0
        %v3393 = vadd.f32 %v3350, %v3392
        %v3394 = vpop.f32.mrf.mxu0
        %v3395 = vadd.f32 %v3352, %v3394
        %v3396 = vpop.f32.mrf.mxu0
        %v3397 = vadd.f32 %v3354, %v3396
        %3398 = vdwg.mxu0
        %v3399 = vpack.c.bf16 %v3245, %v3243
        %v3400 = vpack.c.bf16 %v3246, %v3244
        %3401 = vmatprep.subr.bf16.mxu0 0
        %3402 = vmatpush1.bf16.msra.mxu0 0
        %3403 = vmatprep.subr.bf16.mxu0 0
        %3404 = vmatpush1.bf16.msra.mxu0 0
        %3405 = vmatprep.subr.bf16.mxu0 0
        %3406 = vmatpush1.bf16.msra.mxu0 0
        %3407 = vmatprep.subr.bf16.mxu0 0
        %3408 = vmatpush1.bf16.msra.mxu0 0
        %3409 = vmatprep.subr.bf16.mxu0 0
        %3410 = vmatpush1.bf16.msra.mxu0 0
        %3411 = vmatprep.subr.bf16.mxu0 0
        %3412 = vmatpush1.bf16.msra.mxu0 0
        %3413 = vmatprep.subr.bf16.mxu0 0
        %3414 = vmatpush1.bf16.msra.mxu0 0
        %3415 = vmatprep.subr.bf16.mxu0 %v3400
        %3416 = vmatpush1.bf16.msra.mxu0 %v3399
        %3417 = vmatprep.subr.bf16.mxu0 0
        %3418 = vmatpush2.bf16.msra.mxu0 0
        %3419 = vmatprep.subr.bf16.mxu0 0
        %3420 = vmatpush2.bf16.msra.mxu0 0
        %3421 = vmatprep.subr.bf16.mxu0 0
        %3422 = vmatpush2.bf16.msra.mxu0 0
        %3423 = vmatprep.subr.bf16.mxu0 0
        %3424 = vmatpush2.bf16.msra.mxu0 0
        %3425 = vmatprep.subr.bf16.mxu0 0
        %3426 = vmatpush2.bf16.msra.mxu0 0
        %3427 = vmatprep.subr.bf16.mxu0 0
        %3428 = vmatpush2.bf16.msra.mxu0 0
        %3429 = vmatprep.subr.bf16.mxu0 0
        %3430 = vmatpush2.bf16.msra.mxu0 0
        %3431 = vmatprep.subr.bf16.mxu0 0
        %3432 = vmatpush2.bf16.msra.mxu0 0
        %3433 = vmatprep.mubr.bf16.mxu0 0
        %3434 = vmatmul.mubr.bf16.gmra.mxu0 %v785
        %v3435 = vpop.f32.mrf.mxu0
        %v3436 = vadd.f32 0.0, %v3435
        %v3437 = vpop.f32.mrf.mxu0
        %v3438 = vadd.f32 0.0, %v3437
        %v3439 = vpop.f32.mrf.mxu0
        %v3440 = vadd.f32 0.0, %v3439
        %v3441 = vpop.f32.mrf.mxu0
        %v3442 = vadd.f32 0.0, %v3441
        %3443 = vdwg.mxu0
        %v3444 = vadd.f32 %v3391, %v3436
        %v3445 = vadd.f32 %v3393, %v3438
        %v3446 = vadd.f32 %v3395, %v3440
        %v3447 = vadd.f32 %v3397, %v3442
        %3448 = vrot.lane.b32.xlu0 %v3243, 127
        %v3449 = vpop.permute.xlu0 %3448
        %3450 = vrot.lane.b32.xlu0 %v3244, 127
        %v3451 = vpop.permute.xlu0 %3450
        %3452 = vrot.lane.b32.xlu0 %v3245, 127
        %v3453 = vpop.permute.xlu0 %3452
        %3454 = vrot.lane.b32.xlu0 %v3246, 127
        %v3455 = vpop.permute.xlu0 %3454
        %v3456 = vsel %vm842, %v3449, %v3451
        %v3457 = vsel %vm842, %v3453, %v3455
        %v3464 = vsel %vm842, %v3451, %v3449
        %v3465 = vsel %vm842, %v3455, %v3453
        %3466 = vrot.lane.b32.xlu0 %v3244, 15
        %v3467 = vpop.permute.xlu0 %3466
        %3468 = vrot.lane.b32.xlu0 %v3246, 15
        %v3469 = vpop.permute.xlu0 %3468
        %3472 = vrot.lane.b32.xlu0 %v3243, 15
        %v3473 = vpop.permute.xlu0 %3472
        %3474 = vrot.lane.b32.xlu0 %v3245, 15
        %v3475 = vpop.permute.xlu0 %3474
        %v3476 = vsel %vm863, %v3473, %v3467
        %v3477 = vsel %vm863, %v3475, %v3469
        %v3482 = vsel %vm863, %v3467, %v3473
        %v3483 = vsel %vm863, %v3469, %v3475
        %v3484 = vsel %vm874, %v3482, %v3456
        %v3485 = vsel %vm875, %v3476, %v3464
        %v3486 = vsel %vm874, %v3483, %v3457
        %v3487 = vsel %vm875, %v3477, %v3465
        %v3488 = vpack.c.bf16 %v3486, %v3484
        %v3489 = vpack.c.bf16 %v3487, %v3485
        %3490 = vmatprep.subr.bf16.mxu0 0
        %3491 = vmatpush1.bf16.msra.mxu0 0
        %3492 = vmatprep.subr.bf16.mxu0 0
        %3493 = vmatpush1.bf16.msra.mxu0 0
        %3494 = vmatprep.subr.bf16.mxu0 0
        %3495 = vmatpush1.bf16.msra.mxu0 0
        %3496 = vmatprep.subr.bf16.mxu0 0
        %3497 = vmatpush1.bf16.msra.mxu0 0
        %3498 = vmatprep.subr.bf16.mxu0 0
        %3499 = vmatpush1.bf16.msra.mxu0 0
        %3500 = vmatprep.subr.bf16.mxu0 0
        %3501 = vmatpush1.bf16.msra.mxu0 0
        %3502 = vmatprep.subr.bf16.mxu0 0
        %3503 = vmatpush1.bf16.msra.mxu0 0
        %3504 = vmatprep.subr.bf16.mxu0 %v3489
        %3505 = vmatpush1.bf16.msra.mxu0 %v3488
        %3506 = vmatprep.subr.bf16.mxu0 0
        %3507 = vmatpush2.bf16.msra.mxu0 0
        %3508 = vmatprep.subr.bf16.mxu0 0
        %3509 = vmatpush2.bf16.msra.mxu0 0
        %3510 = vmatprep.subr.bf16.mxu0 0
        %3511 = vmatpush2.bf16.msra.mxu0 0
        %3512 = vmatprep.subr.bf16.mxu0 0
        %3513 = vmatpush2.bf16.msra.mxu0 0
        %3514 = vmatprep.subr.bf16.mxu0 0
        %3515 = vmatpush2.bf16.msra.mxu0 0
        %3516 = vmatprep.subr.bf16.mxu0 0
        %3517 = vmatpush2.bf16.msra.mxu0 0
        %3518 = vmatprep.subr.bf16.mxu0 0
        %3519 = vmatpush2.bf16.msra.mxu0 0
        %3520 = vmatprep.subr.bf16.mxu0 0
        %3521 = vmatpush2.bf16.msra.mxu0 0
        %3522 = vmatprep.mubr.bf16.mxu0 0
        %3523 = vmatmul.mubr.bf16.gmra.mxu0 %v888
        %v3524 = vpop.f32.mrf.mxu0
        %v3525 = vadd.f32 0.0, %v3524
        %v3526 = vpop.f32.mrf.mxu0
        %v3527 = vadd.f32 0.0, %v3526
        %v3528 = vpop.f32.mrf.mxu0
        %v3529 = vadd.f32 0.0, %v3528
        %v3530 = vpop.f32.mrf.mxu0
        %v3531 = vadd.f32 0.0, %v3530
        %3532 = vdwg.mxu0
        %v3533 = vadd.f32 %v3444, %v3525
        %v3534 = vadd.f32 %v3445, %v3527
        %v3535 = vadd.f32 %v3446, %v3529
        %v3536 = vadd.f32 %v3447, %v3531
        %3537 = vrot.lane.b32.xlu0 %v3243, 112
        %v3538 = vpop.permute.xlu0 %3537
        %3539 = vrot.lane.b32.xlu0 %v3244, 112
        %v3540 = vpop.permute.xlu0 %3539
        %3541 = vrot.lane.b32.xlu0 %v3245, 112
        %v3542 = vpop.permute.xlu0 %3541
        %3543 = vrot.lane.b32.xlu0 %v3246, 112
        %v3544 = vpop.permute.xlu0 %3543
        %v3545 = vsel %vm945, %v3538, %v3540
        %v3546 = vsel %vm945, %v3542, %v3544
        %v3553 = vsel %vm945, %v3540, %v3538
        %v3554 = vsel %vm945, %v3544, %v3542
        %v3555 = vpack.c.bf16 %v3546, %v3545
        %v3556 = vpack.c.bf16 %v3554, %v3553
        %3557 = vmatprep.subr.bf16.mxu0 0
        %3558 = vmatpush1.bf16.msra.mxu0 0
        %3559 = vmatprep.subr.bf16.mxu0 0
        %3560 = vmatpush1.bf16.msra.mxu0 0
        %3561 = vmatprep.subr.bf16.mxu0 0
        %3562 = vmatpush1.bf16.msra.mxu0 0
        %3563 = vmatprep.subr.bf16.mxu0 0
        %3564 = vmatpush1.bf16.msra.mxu0 0
        %3565 = vmatprep.subr.bf16.mxu0 0
        %3566 = vmatpush1.bf16.msra.mxu0 0
        %3567 = vmatprep.subr.bf16.mxu0 0
        %3568 = vmatpush1.bf16.msra.mxu0 0
        %3569 = vmatprep.subr.bf16.mxu0 0
        %3570 = vmatpush1.bf16.msra.mxu0 0
        %3571 = vmatprep.subr.bf16.mxu0 %v3556
        %3572 = vmatpush1.bf16.msra.mxu0 %v3555
        %3573 = vmatprep.subr.bf16.mxu0 0
        %3574 = vmatpush2.bf16.msra.mxu0 0
        %3575 = vmatprep.subr.bf16.mxu0 0
        %3576 = vmatpush2.bf16.msra.mxu0 0
        %3577 = vmatprep.subr.bf16.mxu0 0
        %3578 = vmatpush2.bf16.msra.mxu0 0
        %3579 = vmatprep.subr.bf16.mxu0 0
        %3580 = vmatpush2.bf16.msra.mxu0 0
        %3581 = vmatprep.subr.bf16.mxu0 0
        %3582 = vmatpush2.bf16.msra.mxu0 0
        %3583 = vmatprep.subr.bf16.mxu0 0
        %3584 = vmatpush2.bf16.msra.mxu0 0
        %3585 = vmatprep.subr.bf16.mxu0 0
        %3586 = vmatpush2.bf16.msra.mxu0 0
        %3587 = vmatprep.subr.bf16.mxu0 0
        %3588 = vmatpush2.bf16.msra.mxu0 0
        %3589 = vmatprep.mubr.bf16.mxu0 0
        %3590 = vmatmul.mubr.bf16.gmra.mxu0 %v964
        %v3591 = vpop.f32.mrf.mxu0
        %v3592 = vadd.f32 0.0, %v3591
        %v3593 = vpop.f32.mrf.mxu0
        %v3594 = vadd.f32 0.0, %v3593
        %v3595 = vpop.f32.mrf.mxu0
        %v3596 = vadd.f32 0.0, %v3595
        %v3597 = vpop.f32.mrf.mxu0
        %v3598 = vadd.f32 0.0, %v3597
        %3599 = vdwg.mxu0
        %v3600 = vadd.f32 %v3533, %v3592
        %v3601 = vadd.f32 %v3534, %v3594
        %v3602 = vadd.f32 %v3535, %v3596
        %v3603 = vadd.f32 %v3536, %v3598
        %v3604 = vadd.f32 %v3600, %v1016
        %v3605 = vadd.f32 %v3601, %v1016
        %v3606 = vadd.f32 %v3602, %v1021
        %v3607 = vadd.f32 %v3603, %v1021
        %v3608 = vadd.f32 %v3604, %v3605
        %v3609 = vadd.f32 %v3608, %v3606
        %v3610 = vadd.f32 %v3609, %v3607
        %3611 = vadd.xlane.f32.xlu0 %v3610
        %v3612 = vpop.xlane.xlu0 %3611
        %v3613 = vrot.slane %v3612, 4
        %v3614 = vadd.f32 %v3612, %v3613
        %v3615 = vrot.slane %v3614, 2
        %v3616 = vadd.f32 %v3614, %v3615
        %v3617 = vrot.slane %v3616, 1
        %v3618 = vadd.f32 %v3616, %v3617
        %s3619 = vtos %v3618
        %v3620 = vstv %s3619
        %v3621 = vmul.f32 %v3620, %v1040
        %v3622 = vmul.f32 %v3604, %v3604
        %v3623 = vmul.f32 %v3605, %v3605
        %v3624 = vmul.f32 %v3606, %v3606
        %v3625 = vmul.f32 %v3607, %v3607
        %v3626 = vadd.f32 %v3622, %v3623
        %v3627 = vadd.f32 %v3626, %v3624
        %v3628 = vadd.f32 %v3627, %v3625
        %3629 = vadd.xlane.f32.xlu0 %v3628
        %v3630 = vpop.xlane.xlu0 %3629
        %v3631 = vrot.slane %v3630, 4
        %v3632 = vadd.f32 %v3630, %v3631
        %v3633 = vrot.slane %v3632, 2
        %v3634 = vadd.f32 %v3632, %v3633
        %v3635 = vrot.slane %v3634, 1
        %v3636 = vadd.f32 %v3634, %v3635
        %s3637 = vtos %v3636
        %v3638 = vstv %s3637
        %v3639 = vmul.f32 %v3638, %v1040
        %v3640 = vmul.f32 %v3621, %v3621
        %v3641 = vsub.f32 %v3639, %v3640
        %v3642 = vsub.f32 %v3604, %v3621
        %v3643 = vsub.f32 %v3605, %v3621
        %v3644 = vsub.f32 %v3606, %v3621
        %v3645 = vsub.f32 %v3607, %v3621
        %v3646 = vadd.f32 %v3641, 1e-05
        %v3647 = vrsqrt.pop %v3646
        %v3648 = vmul.f32 %v3642, %v3647
        %v3649 = vmul.f32 %v3643, %v3647
        %v3650 = vmul.f32 %v3644, %v3647
        %v3651 = vmul.f32 %v3645, %v3647
        %v3652 = vmul.f32 %v3648, %v576
        %v3653 = vmul.f32 %v3649, %v577
        %v3654 = vmul.f32 %v3650, %v578
        %v3655 = vmul.f32 %v3651, %v579
        %v3656 = vadd.f32 %v3652, %v580
        %v3657 = vadd.f32 %v3653, %v581
        %v3658 = vadd.f32 %v3654, %v582
        %v3659 = vadd.f32 %v3655, %v583
        %v3660 = vmax.f32 %v3656, 0.0
        %v3661 = vmax.f32 %v3657, 0.0
        %v3662 = vmax.f32 %v3658, 0.0
        %v3663 = vmax.f32 %v3659, 0.0
        %3666 = vrot.lane.b32.xlu0 %v3661, 16
        %v3667 = vpop.permute.xlu0 %3666
        %3668 = vrot.lane.b32.xlu0 %v3663, 16
        %v3669 = vpop.permute.xlu0 %3668
        %3674 = vrot.lane.b32.xlu0 %v3660, 16
        %v3675 = vpop.permute.xlu0 %3674
        %3676 = vrot.lane.b32.xlu0 %v3662, 16
        %v3677 = vpop.permute.xlu0 %3676
        %v3678 = vsel %vm616, %v3675, %v3667
        %v3679 = vsel %vm616, %v3677, %v3669
        %v3684 = vsel %vm616, %v3667, %v3675
        %v3685 = vsel %vm616, %v3669, %v3677
        %v3686 = vpack.c.bf16 %v3685, %v3684
        %v3687 = vpack.c.bf16 %v3679, %v3678
        %3688 = vrot.lane.b32.xlu0 %v3661, 1
        %v3689 = vpop.permute.xlu0 %3688
        %3690 = vrot.lane.b32.xlu0 %v3663, 1
        %v3691 = vpop.permute.xlu0 %3690
        %3694 = vrot.lane.b32.xlu0 %v3660, 1
        %v3695 = vpop.permute.xlu0 %3694
        %3696 = vrot.lane.b32.xlu0 %v3662, 1
        %v3697 = vpop.permute.xlu0 %3696
        %v3698 = vsel %vm637, %v3695, %v3689
        %v3699 = vsel %vm637, %v3697, %v3691
        %v3704 = vsel %vm637, %v3689, %v3695
        %v3705 = vsel %vm637, %v3691, %v3697
        %3706 = vrot.lane.b32.xlu0 %v3660, 113
        %v3707 = vpop.permute.xlu0 %3706
        %3708 = vrot.lane.b32.xlu0 %v3661, 113
        %v3709 = vpop.permute.xlu0 %3708
        %3710 = vrot.lane.b32.xlu0 %v3662, 113
        %v3711 = vpop.permute.xlu0 %3710
        %3712 = vrot.lane.b32.xlu0 %v3663, 113
        %v3713 = vpop.permute.xlu0 %3712
        %v3714 = vsel %vm654, %v3707, %v3709
        %v3715 = vsel %vm654, %v3711, %v3713
        %v3722 = vsel %vm654, %v3709, %v3707
        %v3723 = vsel %vm654, %v3713, %v3711
        %v3724 = vsel %vm667, %v3714, %v3704
        %v3725 = vsel %vm668, %v3722, %v3698
        %v3726 = vsel %vm667, %v3715, %v3705
        %v3727 = vsel %vm668, %v3723, %v3699
        %v3728 = vpack.c.bf16 %v3726, %v3724
        %v3729 = vpack.c.bf16 %v3727, %v3725
        %3730 = vmatprep.subr.bf16.mxu0 0
        %3731 = vmatpush1.bf16.msra.mxu0 0
        %3732 = vmatprep.subr.bf16.mxu0 0
        %3733 = vmatpush1.bf16.msra.mxu0 0
        %3734 = vmatprep.subr.bf16.mxu0 0
        %3735 = vmatpush1.bf16.msra.mxu0 0
        %3736 = vmatprep.subr.bf16.mxu0 0
        %3737 = vmatpush1.bf16.msra.mxu0 0
        %3738 = vmatprep.subr.bf16.mxu0 0
        %3739 = vmatpush1.bf16.msra.mxu0 0
        %3740 = vmatprep.subr.bf16.mxu0 0
        %3741 = vmatpush1.bf16.msra.mxu0 0
        %3742 = vmatprep.subr.bf16.mxu0 0
        %3743 = vmatpush1.bf16.msra.mxu0 0
        %3744 = vmatprep.subr.bf16.mxu0 %v3729
        %3745 = vmatpush1.bf16.msra.mxu0 %v3728
        %3746 = vmatprep.subr.bf16.mxu0 0
        %3747 = vmatpush2.bf16.msra.mxu0 0
        %3748 = vmatprep.subr.bf16.mxu0 0
        %3749 = vmatpush2.bf16.msra.mxu0 0
        %3750 = vmatprep.subr.bf16.mxu0 0
        %3751 = vmatpush2.bf16.msra.mxu0 0
        %3752 = vmatprep.subr.bf16.mxu0 0
        %3753 = vmatpush2.bf16.msra.mxu0 0
        %3754 = vmatprep.subr.bf16.mxu0 0
        %3755 = vmatpush2.bf16.msra.mxu0 0
        %3756 = vmatprep.subr.bf16.mxu0 0
        %3757 = vmatpush2.bf16.msra.mxu0 0
        %3758 = vmatprep.subr.bf16.mxu0 0
        %3759 = vmatpush2.bf16.msra.mxu0 0
        %3760 = vmatprep.subr.bf16.mxu0 0
        %3761 = vmatpush2.bf16.msra.mxu0 0
        %3762 = vmatprep.mubr.bf16.mxu0 0
        %3763 = vmatmul.mubr.bf16.gmra.mxu0 %v1156
        %v3764 = vpop.f32.mrf.mxu0
        %v3765 = vadd.f32 0.0, %v3764
        %v3766 = vpop.f32.mrf.mxu0
        %v3767 = vadd.f32 0.0, %v3766
        %v3768 = vpop.f32.mrf.mxu0
        %v3769 = vadd.f32 0.0, %v3768
        %v3770 = vpop.f32.mrf.mxu0
        %v3771 = vadd.f32 0.0, %v3770
        %3772 = vdwg.mxu0
        %3773 = vmatprep.subr.bf16.mxu0 0
        %3774 = vmatpush1.bf16.msra.mxu0 0
        %3775 = vmatprep.subr.bf16.mxu0 0
        %3776 = vmatpush1.bf16.msra.mxu0 0
        %3777 = vmatprep.subr.bf16.mxu0 0
        %3778 = vmatpush1.bf16.msra.mxu0 0
        %3779 = vmatprep.subr.bf16.mxu0 0
        %3780 = vmatpush1.bf16.msra.mxu0 0
        %3781 = vmatprep.subr.bf16.mxu0 0
        %3782 = vmatpush1.bf16.msra.mxu0 0
        %3783 = vmatprep.subr.bf16.mxu0 0
        %3784 = vmatpush1.bf16.msra.mxu0 0
        %3785 = vmatprep.subr.bf16.mxu0 0
        %3786 = vmatpush1.bf16.msra.mxu0 0
        %3787 = vmatprep.subr.bf16.mxu0 %v3687
        %3788 = vmatpush1.bf16.msra.mxu0 %v3686
        %3789 = vmatprep.subr.bf16.mxu0 0
        %3790 = vmatpush2.bf16.msra.mxu0 0
        %3791 = vmatprep.subr.bf16.mxu0 0
        %3792 = vmatpush2.bf16.msra.mxu0 0
        %3793 = vmatprep.subr.bf16.mxu0 0
        %3794 = vmatpush2.bf16.msra.mxu0 0
        %3795 = vmatprep.subr.bf16.mxu0 0
        %3796 = vmatpush2.bf16.msra.mxu0 0
        %3797 = vmatprep.subr.bf16.mxu0 0
        %3798 = vmatpush2.bf16.msra.mxu0 0
        %3799 = vmatprep.subr.bf16.mxu0 0
        %3800 = vmatpush2.bf16.msra.mxu0 0
        %3801 = vmatprep.subr.bf16.mxu0 0
        %3802 = vmatpush2.bf16.msra.mxu0 0
        %3803 = vmatprep.subr.bf16.mxu0 0
        %3804 = vmatpush2.bf16.msra.mxu0 0
        %3805 = vmatprep.mubr.bf16.mxu0 0
        %3806 = vmatmul.mubr.bf16.gmra.mxu0 %v1207
        %v3807 = vpop.f32.mrf.mxu0
        %v3808 = vadd.f32 %v3765, %v3807
        %v3809 = vpop.f32.mrf.mxu0
        %v3810 = vadd.f32 %v3767, %v3809
        %v3811 = vpop.f32.mrf.mxu0
        %v3812 = vadd.f32 %v3769, %v3811
        %v3813 = vpop.f32.mrf.mxu0
        %v3814 = vadd.f32 %v3771, %v3813
        %3815 = vdwg.mxu0
        %v3816 = vpack.c.bf16 %v3662, %v3660
        %v3817 = vpack.c.bf16 %v3663, %v3661
        %3818 = vmatprep.subr.bf16.mxu0 0
        %3819 = vmatpush1.bf16.msra.mxu0 0
        %3820 = vmatprep.subr.bf16.mxu0 0
        %3821 = vmatpush1.bf16.msra.mxu0 0
        %3822 = vmatprep.subr.bf16.mxu0 0
        %3823 = vmatpush1.bf16.msra.mxu0 0
        %3824 = vmatprep.subr.bf16.mxu0 0
        %3825 = vmatpush1.bf16.msra.mxu0 0
        %3826 = vmatprep.subr.bf16.mxu0 0
        %3827 = vmatpush1.bf16.msra.mxu0 0
        %3828 = vmatprep.subr.bf16.mxu0 0
        %3829 = vmatpush1.bf16.msra.mxu0 0
        %3830 = vmatprep.subr.bf16.mxu0 0
        %3831 = vmatpush1.bf16.msra.mxu0 0
        %3832 = vmatprep.subr.bf16.mxu0 %v3817
        %3833 = vmatpush1.bf16.msra.mxu0 %v3816
        %3834 = vmatprep.subr.bf16.mxu0 0
        %3835 = vmatpush2.bf16.msra.mxu0 0
        %3836 = vmatprep.subr.bf16.mxu0 0
        %3837 = vmatpush2.bf16.msra.mxu0 0
        %3838 = vmatprep.subr.bf16.mxu0 0
        %3839 = vmatpush2.bf16.msra.mxu0 0
        %3840 = vmatprep.subr.bf16.mxu0 0
        %3841 = vmatpush2.bf16.msra.mxu0 0
        %3842 = vmatprep.subr.bf16.mxu0 0
        %3843 = vmatpush2.bf16.msra.mxu0 0
        %3844 = vmatprep.subr.bf16.mxu0 0
        %3845 = vmatpush2.bf16.msra.mxu0 0
        %3846 = vmatprep.subr.bf16.mxu0 0
        %3847 = vmatpush2.bf16.msra.mxu0 0
        %3848 = vmatprep.subr.bf16.mxu0 0
        %3849 = vmatpush2.bf16.msra.mxu0 0
        %3850 = vmatprep.mubr.bf16.mxu0 0
        %3851 = vmatmul.mubr.bf16.gmra.mxu0 %v1260
        %v3852 = vpop.f32.mrf.mxu0
        %v3853 = vadd.f32 0.0, %v3852
        %v3854 = vpop.f32.mrf.mxu0
        %v3855 = vadd.f32 0.0, %v3854
        %v3856 = vpop.f32.mrf.mxu0
        %v3857 = vadd.f32 0.0, %v3856
        %v3858 = vpop.f32.mrf.mxu0
        %v3859 = vadd.f32 0.0, %v3858
        %3860 = vdwg.mxu0
        %v3861 = vadd.f32 %v3808, %v3853
        %v3862 = vadd.f32 %v3810, %v3855
        %v3863 = vadd.f32 %v3812, %v3857
        %v3864 = vadd.f32 %v3814, %v3859
        %3865 = vrot.lane.b32.xlu0 %v3660, 127
        %v3866 = vpop.permute.xlu0 %3865
        %3867 = vrot.lane.b32.xlu0 %v3661, 127
        %v3868 = vpop.permute.xlu0 %3867
        %3869 = vrot.lane.b32.xlu0 %v3662, 127
        %v3870 = vpop.permute.xlu0 %3869
        %3871 = vrot.lane.b32.xlu0 %v3663, 127
        %v3872 = vpop.permute.xlu0 %3871
        %v3873 = vsel %vm842, %v3866, %v3868
        %v3874 = vsel %vm842, %v3870, %v3872
        %v3881 = vsel %vm842, %v3868, %v3866
        %v3882 = vsel %vm842, %v3872, %v3870
        %3883 = vrot.lane.b32.xlu0 %v3661, 15
        %v3884 = vpop.permute.xlu0 %3883
        %3885 = vrot.lane.b32.xlu0 %v3663, 15
        %v3886 = vpop.permute.xlu0 %3885
        %3889 = vrot.lane.b32.xlu0 %v3660, 15
        %v3890 = vpop.permute.xlu0 %3889
        %3891 = vrot.lane.b32.xlu0 %v3662, 15
        %v3892 = vpop.permute.xlu0 %3891
        %v3893 = vsel %vm863, %v3890, %v3884
        %v3894 = vsel %vm863, %v3892, %v3886
        %v3899 = vsel %vm863, %v3884, %v3890
        %v3900 = vsel %vm863, %v3886, %v3892
        %v3901 = vsel %vm874, %v3899, %v3873
        %v3902 = vsel %vm875, %v3893, %v3881
        %v3903 = vsel %vm874, %v3900, %v3874
        %v3904 = vsel %vm875, %v3894, %v3882
        %v3905 = vpack.c.bf16 %v3903, %v3901
        %v3906 = vpack.c.bf16 %v3904, %v3902
        %3907 = vmatprep.subr.bf16.mxu0 0
        %3908 = vmatpush1.bf16.msra.mxu0 0
        %3909 = vmatprep.subr.bf16.mxu0 0
        %3910 = vmatpush1.bf16.msra.mxu0 0
        %3911 = vmatprep.subr.bf16.mxu0 0
        %3912 = vmatpush1.bf16.msra.mxu0 0
        %3913 = vmatprep.subr.bf16.mxu0 0
        %3914 = vmatpush1.bf16.msra.mxu0 0
        %3915 = vmatprep.subr.bf16.mxu0 0
        %3916 = vmatpush1.bf16.msra.mxu0 0
        %3917 = vmatprep.subr.bf16.mxu0 0
        %3918 = vmatpush1.bf16.msra.mxu0 0
        %3919 = vmatprep.subr.bf16.mxu0 0
        %3920 = vmatpush1.bf16.msra.mxu0 0
        %3921 = vmatprep.subr.bf16.mxu0 %v3906
        %3922 = vmatpush1.bf16.msra.mxu0 %v3905
        %3923 = vmatprep.subr.bf16.mxu0 0
        %3924 = vmatpush2.bf16.msra.mxu0 0
        %3925 = vmatprep.subr.bf16.mxu0 0
        %3926 = vmatpush2.bf16.msra.mxu0 0
        %3927 = vmatprep.subr.bf16.mxu0 0
        %3928 = vmatpush2.bf16.msra.mxu0 0
        %3929 = vmatprep.subr.bf16.mxu0 0
        %3930 = vmatpush2.bf16.msra.mxu0 0
        %3931 = vmatprep.subr.bf16.mxu0 0
        %3932 = vmatpush2.bf16.msra.mxu0 0
        %3933 = vmatprep.subr.bf16.mxu0 0
        %3934 = vmatpush2.bf16.msra.mxu0 0
        %3935 = vmatprep.subr.bf16.mxu0 0
        %3936 = vmatpush2.bf16.msra.mxu0 0
        %3937 = vmatprep.subr.bf16.mxu0 0
        %3938 = vmatpush2.bf16.msra.mxu0 0
        %3939 = vmatprep.mubr.bf16.mxu0 0
        %3940 = vmatmul.mubr.bf16.gmra.mxu0 %v1357
        %v3941 = vpop.f32.mrf.mxu0
        %v3942 = vadd.f32 0.0, %v3941
        %v3943 = vpop.f32.mrf.mxu0
        %v3944 = vadd.f32 0.0, %v3943
        %v3945 = vpop.f32.mrf.mxu0
        %v3946 = vadd.f32 0.0, %v3945
        %v3947 = vpop.f32.mrf.mxu0
        %v3948 = vadd.f32 0.0, %v3947
        %3949 = vdwg.mxu0
        %v3950 = vadd.f32 %v3861, %v3942
        %v3951 = vadd.f32 %v3862, %v3944
        %v3952 = vadd.f32 %v3863, %v3946
        %v3953 = vadd.f32 %v3864, %v3948
        %3954 = vrot.lane.b32.xlu0 %v3660, 112
        %v3955 = vpop.permute.xlu0 %3954
        %3956 = vrot.lane.b32.xlu0 %v3661, 112
        %v3957 = vpop.permute.xlu0 %3956
        %3958 = vrot.lane.b32.xlu0 %v3662, 112
        %v3959 = vpop.permute.xlu0 %3958
        %3960 = vrot.lane.b32.xlu0 %v3663, 112
        %v3961 = vpop.permute.xlu0 %3960
        %v3962 = vsel %vm945, %v3955, %v3957
        %v3963 = vsel %vm945, %v3959, %v3961
        %v3970 = vsel %vm945, %v3957, %v3955
        %v3971 = vsel %vm945, %v3961, %v3959
        %v3972 = vpack.c.bf16 %v3963, %v3962
        %v3973 = vpack.c.bf16 %v3971, %v3970
        %3974 = vmatprep.subr.bf16.mxu0 0
        %3975 = vmatpush1.bf16.msra.mxu0 0
        %3976 = vmatprep.subr.bf16.mxu0 0
        %3977 = vmatpush1.bf16.msra.mxu0 0
        %3978 = vmatprep.subr.bf16.mxu0 0
        %3979 = vmatpush1.bf16.msra.mxu0 0
        %3980 = vmatprep.subr.bf16.mxu0 0
        %3981 = vmatpush1.bf16.msra.mxu0 0
        %3982 = vmatprep.subr.bf16.mxu0 0
        %3983 = vmatpush1.bf16.msra.mxu0 0
        %3984 = vmatprep.subr.bf16.mxu0 0
        %3985 = vmatpush1.bf16.msra.mxu0 0
        %3986 = vmatprep.subr.bf16.mxu0 0
        %3987 = vmatpush1.bf16.msra.mxu0 0
        %3988 = vmatprep.subr.bf16.mxu0 %v3973
        %3989 = vmatpush1.bf16.msra.mxu0 %v3972
        %3990 = vmatprep.subr.bf16.mxu0 0
        %3991 = vmatpush2.bf16.msra.mxu0 0
        %3992 = vmatprep.subr.bf16.mxu0 0
        %3993 = vmatpush2.bf16.msra.mxu0 0
        %3994 = vmatprep.subr.bf16.mxu0 0
        %3995 = vmatpush2.bf16.msra.mxu0 0
        %3996 = vmatprep.subr.bf16.mxu0 0
        %3997 = vmatpush2.bf16.msra.mxu0 0
        %3998 = vmatprep.subr.bf16.mxu0 0
        %3999 = vmatpush2.bf16.msra.mxu0 0
        %4000 = vmatprep.subr.bf16.mxu0 0
        %4001 = vmatpush2.bf16.msra.mxu0 0
        %4002 = vmatprep.subr.bf16.mxu0 0
        %4003 = vmatpush2.bf16.msra.mxu0 0
        %4004 = vmatprep.subr.bf16.mxu0 0
        %4005 = vmatpush2.bf16.msra.mxu0 0
        %4006 = vmatprep.mubr.bf16.mxu0 0
        %4007 = vmatmul.mubr.bf16.gmra.mxu0 %v1432
        %v4008 = vpop.f32.mrf.mxu0
        %v4009 = vadd.f32 0.0, %v4008
        %v4010 = vpop.f32.mrf.mxu0
        %v4011 = vadd.f32 0.0, %v4010
        %v4012 = vpop.f32.mrf.mxu0
        %v4013 = vadd.f32 0.0, %v4012
        %v4014 = vpop.f32.mrf.mxu0
        %v4015 = vadd.f32 0.0, %v4014
        %4016 = vdwg.mxu0
        %v4017 = vadd.f32 %v3950, %v4009
        %v4018 = vadd.f32 %v3951, %v4011
        %v4019 = vadd.f32 %v3952, %v4013
        %v4020 = vadd.f32 %v3953, %v4015
        %v4021 = vadd.f32 %v4017, %v1484
        %v4022 = vadd.f32 %v4018, %v1484
        %v4023 = vadd.f32 %v4019, %v1489
        %v4024 = vadd.f32 %v4020, %v1489
        %v4025 = vadd.f32 %v4021, %v4022
        %v4026 = vadd.f32 %v4025, %v4023
        %v4027 = vadd.f32 %v4026, %v4024
        %4028 = vadd.xlane.f32.xlu0 %v4027
        %v4029 = vpop.xlane.xlu0 %4028
        %v4030 = vrot.slane %v4029, 4
        %v4031 = vadd.f32 %v4029, %v4030
        %v4032 = vrot.slane %v4031, 2
        %v4033 = vadd.f32 %v4031, %v4032
        %v4034 = vrot.slane %v4033, 1
        %v4035 = vadd.f32 %v4033, %v4034
        %s4036 = vtos %v4035
        %v4037 = vstv %s4036
        %v4038 = vmul.f32 %v4037, %v1040
        %v4039 = vmul.f32 %v4021, %v4021
        %v4040 = vmul.f32 %v4022, %v4022
        %v4041 = vmul.f32 %v4023, %v4023
        %v4042 = vmul.f32 %v4024, %v4024
        %v4043 = vadd.f32 %v4039, %v4040
        %v4044 = vadd.f32 %v4043, %v4041
        %v4045 = vadd.f32 %v4044, %v4042
        %4046 = vadd.xlane.f32.xlu0 %v4045
        %v4047 = vpop.xlane.xlu0 %4046
        %v4048 = vrot.slane %v4047, 4
        %v4049 = vadd.f32 %v4047, %v4048
        %v4050 = vrot.slane %v4049, 2
        %v4051 = vadd.f32 %v4049, %v4050
        %v4052 = vrot.slane %v4051, 1
        %v4053 = vadd.f32 %v4051, %v4052
        %s4054 = vtos %v4053
        %v4055 = vstv %s4054
        %v4056 = vmul.f32 %v4055, %v1040
        %v4057 = vmul.f32 %v4038, %v4038
        %v4058 = vsub.f32 %v4056, %v4057
        %v4059 = vsub.f32 %v4021, %v4038
        %v4060 = vsub.f32 %v4022, %v4038
        %v4061 = vsub.f32 %v4023, %v4038
        %v4062 = vsub.f32 %v4024, %v4038
        %v4063 = vadd.f32 %v4058, 1e-05
        %v4064 = vrsqrt.pop %v4063
        %v4065 = vmul.f32 %v4059, %v4064
        %v4066 = vmul.f32 %v4060, %v4064
        %v4067 = vmul.f32 %v4061, %v4064
        %v4068 = vmul.f32 %v4062, %v4064
        %v4069 = vmul.f32 %v4065, %v584
        %v4070 = vmul.f32 %v4066, %v585
        %v4071 = vmul.f32 %v4067, %v586
        %v4072 = vmul.f32 %v4068, %v587
        %v4073 = vadd.f32 %v4069, %v588
        %v4074 = vadd.f32 %v4070, %v589
        %v4075 = vadd.f32 %v4071, %v590
        %v4076 = vadd.f32 %v4072, %v591
        %v4077 = vadd.f32 %v4073, %v4074
        %4078 = vadd.xlane.f32.xlu0 %v4077
        %v4079 = vpop.xlane.xlu0 %4078
        %v4080 = vadd.f32 %v4075, %v4076
        %4081 = vadd.xlane.f32.xlu0 %v4080
        %v4082 = vpop.xlane.xlu0 %4081
        %v4083 = vmul.f32 %v4079, %v1553
        %v4084 = vmul.f32 %v4082, %v1553
        %v4085 = vsel %vm637, %v1554, %v2397
        %v4086 = vsel %vm637, %v1555, %v2398
        %vm4087 = vcmask 15360
        %v4088 = vsel %vm4087, %v4085, %v3240
        %v4089 = vsel %vm4087, %v4086, %v3241
        %vm4090 = vcmask 23552
        %v4091 = vsel %vm4090, %v4088, %v4083
        %v4092 = vsel %vm4090, %v4089, %v4084
        %4094 = vset.pattern.permute.xlu0 0
        %4095 = vperm.xlu0 %4094, %v593
        %v4096 = vpop.permute.xlu0 %4095
        %v4099 = vsel %vm616, %v592, 0
        %4101 = vmatprep.subr.mxu0 0.0
        %4102 = vmatpush1.msra.mxu0 0.0
        %4103 = vmatprep.subr.mxu0 0.0
        %4104 = vmatpush1.msra.mxu0 0.0
        %4105 = vmatprep.subr.mxu0 0.0
        %4106 = vmatpush1.msra.mxu0 0.0
        %4107 = vmatprep.subr.mxu0 0.0
        %4108 = vmatpush1.msra.mxu0 0.0
        %4109 = vmatprep.subr.mxu0 0.0
        %4110 = vmatpush1.msra.mxu0 0.0
        %4111 = vmatprep.subr.mxu0 0.0
        %4112 = vmatpush1.msra.mxu0 0.0
        %4113 = vmatprep.subr.mxu0 0.0
        %4114 = vmatpush1.msra.mxu0 0.0
        %4115 = vmatprep.subr.mxu0 0.0
        %4116 = vmatpush1.msra.mxu0 0.0
        %4117 = vmatprep.subr.mxu0 0.0
        %4118 = vmatpush1.msra.mxu0 0.0
        %4119 = vmatprep.subr.mxu0 0.0
        %4120 = vmatpush1.msra.mxu0 0.0
        %4121 = vmatprep.subr.mxu0 0.0
        %4122 = vmatpush1.msra.mxu0 0.0
        %4123 = vmatprep.subr.mxu0 0.0
        %4124 = vmatpush1.msra.mxu0 0.0
        %4125 = vmatprep.subr.mxu0 0.0
        %4126 = vmatpush1.msra.mxu0 0.0
        %4127 = vmatprep.subr.mxu0 0.0
        %4128 = vmatpush1.msra.mxu0 0.0
        %4129 = vmatprep.subr.mxu0 0.0
        %4130 = vmatpush1.msra.mxu0 %v4092
        %4131 = vmatprep.subr.mxu0 0.0
        %4132 = vmatpush1.msra.mxu0 %v4091
        %4133 = vmatprep.subr.mxu0 0.0
        %4134 = vmatpush2.msra.mxu0 0.0
        %4135 = vmatprep.subr.mxu0 0.0
        %4136 = vmatpush2.msra.mxu0 0.0
        %4137 = vmatprep.subr.mxu0 0.0
        %4138 = vmatpush2.msra.mxu0 0.0
        %4139 = vmatprep.subr.mxu0 0.0
        %4140 = vmatpush2.msra.mxu0 0.0
        %4141 = vmatprep.subr.mxu0 0.0
        %4142 = vmatpush2.msra.mxu0 0.0
        %4143 = vmatprep.subr.mxu0 0.0
        %4144 = vmatpush2.msra.mxu0 0.0
        %4145 = vmatprep.subr.mxu0 0.0
        %4146 = vmatpush2.msra.mxu0 0.0
        %4147 = vmatprep.subr.mxu0 0.0
        %4148 = vmatpush2.msra.mxu0 0.0
        %4149 = vmatprep.subr.mxu0 0.0
        %4150 = vmatpush2.msra.mxu0 0.0
        %4151 = vmatprep.subr.mxu0 0.0
        %4152 = vmatpush2.msra.mxu0 0.0
        %4153 = vmatprep.subr.mxu0 0.0
        %4154 = vmatpush2.msra.mxu0 0.0
        %4155 = vmatprep.subr.mxu0 0.0
        %4156 = vmatpush2.msra.mxu0 0.0
        %4157 = vmatprep.subr.mxu0 0.0
        %4158 = vmatpush2.msra.mxu0 0.0
        %4159 = vmatprep.subr.mxu0 0.0
        %4160 = vmatpush2.msra.mxu0 0.0
        %4161 = vmatprep.subr.mxu0 0.0
        %4162 = vmatpush2.msra.mxu0 0.0
        %4163 = vmatprep.subr.mxu0 0.0
        %4164 = vmatpush2.msra.mxu0 0.0
        %4165 = vmatprep.mubr.f32.mxu0 0.0
        %4166 = vmatmul.mubr.f32.gmra.mxu0 %v4099
        %v4167 = vpop.f32.mrf.mxu0
        %v4168 = vadd.f32 %v4096, %v4167
        %v4169 = vpop.f32.mrf.mxu0
        %4170 = vdwg.mxu0
        %v4171 = vmax.f32 %v4168, 0.0
        %4173 = vset.pattern.permute.xlu0 0
        %4174 = vperm.xlu0 %4173, %v596
        %v4175 = vpop.permute.xlu0 %4174
        %4178 = vset.pattern.permute.xlu0 0
        %4179 = vperm.xlu0 %4178, %v597
        %v4180 = vpop.permute.xlu0 %4179
        %vm4182 = vcmask 64512
        %v4184 = vsel %vm4182, %v594, 0
        %v4187 = vsel %vm4182, %v595, 0
        %4189 = vmatprep.subr.mxu0 0.0
        %4190 = vmatpush1.msra.mxu0 0.0
        %4191 = vmatprep.subr.mxu0 0.0
        %4192 = vmatpush1.msra.mxu0 0.0
        %4193 = vmatprep.subr.mxu0 0.0
        %4194 = vmatpush1.msra.mxu0 0.0
        %4195 = vmatprep.subr.mxu0 0.0
        %4196 = vmatpush1.msra.mxu0 0.0
        %4197 = vmatprep.subr.mxu0 0.0
        %4198 = vmatpush1.msra.mxu0 0.0
        %4199 = vmatprep.subr.mxu0 0.0
        %4200 = vmatpush1.msra.mxu0 0.0
        %4201 = vmatprep.subr.mxu0 0.0
        %4202 = vmatpush1.msra.mxu0 0.0
        %4203 = vmatprep.subr.mxu0 0.0
        %4204 = vmatpush1.msra.mxu0 0.0
        %4205 = vmatprep.subr.mxu0 0.0
        %4206 = vmatpush1.msra.mxu0 0.0
        %4207 = vmatprep.subr.mxu0 0.0
        %4208 = vmatpush1.msra.mxu0 0.0
        %4209 = vmatprep.subr.mxu0 0.0
        %4210 = vmatpush1.msra.mxu0 0.0
        %4211 = vmatprep.subr.mxu0 0.0
        %4212 = vmatpush1.msra.mxu0 0.0
        %4213 = vmatprep.subr.mxu0 0.0
        %4214 = vmatpush1.msra.mxu0 0.0
        %4215 = vmatprep.subr.mxu0 0.0
        %4216 = vmatpush1.msra.mxu0 0.0
        %4217 = vmatprep.subr.mxu0 0.0
        %4218 = vmatpush1.msra.mxu0 0.0
        %4219 = vmatprep.subr.mxu0 0.0
        %4220 = vmatpush1.msra.mxu0 %v4171
        %4221 = vmatprep.subr.mxu0 0.0
        %4222 = vmatpush2.msra.mxu0 0.0
        %4223 = vmatprep.subr.mxu0 0.0
        %4224 = vmatpush2.msra.mxu0 0.0
        %4225 = vmatprep.subr.mxu0 0.0
        %4226 = vmatpush2.msra.mxu0 0.0
        %4227 = vmatprep.subr.mxu0 0.0
        %4228 = vmatpush2.msra.mxu0 0.0
        %4229 = vmatprep.subr.mxu0 0.0
        %4230 = vmatpush2.msra.mxu0 0.0
        %4231 = vmatprep.subr.mxu0 0.0
        %4232 = vmatpush2.msra.mxu0 0.0
        %4233 = vmatprep.subr.mxu0 0.0
        %4234 = vmatpush2.msra.mxu0 0.0
        %4235 = vmatprep.subr.mxu0 0.0
        %4236 = vmatpush2.msra.mxu0 0.0
        %4237 = vmatprep.subr.mxu0 0.0
        %4238 = vmatpush2.msra.mxu0 0.0
        %4239 = vmatprep.subr.mxu0 0.0
        %4240 = vmatpush2.msra.mxu0 0.0
        %4241 = vmatprep.subr.mxu0 0.0
        %4242 = vmatpush2.msra.mxu0 0.0
        %4243 = vmatprep.subr.mxu0 0.0
        %4244 = vmatpush2.msra.mxu0 0.0
        %4245 = vmatprep.subr.mxu0 0.0
        %4246 = vmatpush2.msra.mxu0 0.0
        %4247 = vmatprep.subr.mxu0 0.0
        %4248 = vmatpush2.msra.mxu0 0.0
        %4249 = vmatprep.subr.mxu0 0.0
        %4250 = vmatpush2.msra.mxu0 0.0
        %4251 = vmatprep.subr.mxu0 0.0
        %4252 = vmatpush2.msra.mxu0 0.0
        %4253 = vmatprep.mubr.f32.mxu0 0.0
        %4254 = vmatmul.mubr.f32.gmra.mxu0 %v4184
        %v4255 = vpop.f32.mrf.mxu0
        %v4256 = vadd.f32 %v4175, %v4255
        %v4257 = vpop.f32.mrf.mxu0
        %4258 = vmatprep.mubr.f32.mxu0 0.0
        %4259 = vmatmul.mubr.f32.gmra.mxu0 %v4187
        %v4260 = vpop.f32.mrf.mxu0
        %v4261 = vadd.f32 %v4180, %v4260
        %v4262 = vpop.f32.mrf.mxu0
        %4263 = vdwg.mxu0
        %v4264 = vmul.f32 %v4256, 0.5
        %v4265 = vmul.f32 %v4261, 0.5
        %v4266 = vtanh.pop %v4264
        %v4267 = vtanh.pop %v4265
        %v4268 = vadd.f32 %v4266, 1.0
        %v4269 = vadd.f32 %v4267, 1.0
        %v4270 = vmul.f32 %v4268, 0.5
        %v4271 = vmul.f32 %v4269, 0.5
        %4273 = vset.pattern.permute.xlu0 0
        %4274 = vperm.xlu0 %4273, %v4270
        %v4275 = vpop.permute.xlu0 %4274
        %4278 = vset.pattern.permute.xlu0 0
        %4279 = vperm.xlu0 %4278, %v4271
        %v4280 = vpop.permute.xlu0 %4279
        %v4282 = vmul.f32 %v1543, %v4275
        %v4283 = vmul.f32 %v1544, %v4275
        %v4284 = vmul.f32 %v1545, %v4280
        %v4285 = vmul.f32 %v1546, %v4280
        %v4286 = vadd.f32 %v4282, %v598
        %v4287 = vadd.f32 %v4283, %v599
        %v4288 = vadd.f32 %v4284, %v600
        %v4289 = vadd.f32 %v4285, %v601
        %v4290 = vmax.f32 %v4286, 0.0
        %v4291 = vmax.f32 %v4287, 0.0
        %v4292 = vmax.f32 %v4288, 0.0
        %v4293 = vmax.f32 %v4289, 0.0
        %4294 = vst [vmem:[%s517] sm:$0xff] %v4290
        %4295 = vst [vmem:[%s517 + $0x8] sm:$0xff] %v4291
        %4296 = vst [vmem:[%s517 + $0x10] sm:$0xff] %v4292
        %4297 = vst [vmem:[%s517 + $0x18] sm:$0xff] %v4293
        %4298 = vset.pattern.permute.xlu0 1
        %4299 = vperm.xlu0 %4298, %v4270
        %v4300 = vpop.permute.xlu0 %4299
        %4302 = vset.pattern.permute.xlu0 1
        %4303 = vperm.xlu0 %4302, %v4271
        %v4304 = vpop.permute.xlu0 %4303
        %v4306 = vmul.f32 %v2387, %v4300
        %v4307 = vmul.f32 %v2388, %v4300
        %v4308 = vmul.f32 %v2389, %v4304
        %v4309 = vmul.f32 %v2390, %v4304
        %v4310 = vadd.f32 %v4306, %v1557
        %v4311 = vadd.f32 %v4307, %v1558
        %v4312 = vadd.f32 %v4308, %v1559
        %v4313 = vadd.f32 %v4309, %v1560
        %v4314 = vmax.f32 %v4310, 0.0
        %v4315 = vmax.f32 %v4311, 0.0
        %v4316 = vmax.f32 %v4312, 0.0
        %v4317 = vmax.f32 %v4313, 0.0
        %s4318 = scalar_lea.vmem %s517, 32 [#allocation11]
        %4319 = vst [vmem:[%s4318] sm:$0xff] %v4314
        %4320 = vst [vmem:[%s4318 + $0x8] sm:$0xff] %v4315
        %4321 = vst [vmem:[%s4318 + $0x10] sm:$0xff] %v4316
        %4322 = vst [vmem:[%s4318 + $0x18] sm:$0xff] %v4317
        %4323 = vset.pattern.permute.xlu0 2
        %4324 = vperm.xlu0 %4323, %v4270
        %v4325 = vpop.permute.xlu0 %4324
        %4327 = vset.pattern.permute.xlu0 2
        %4328 = vperm.xlu0 %4327, %v4271
        %v4329 = vpop.permute.xlu0 %4328
        %v4331 = vmul.f32 %v3230, %v4325
        %v4332 = vmul.f32 %v3231, %v4325
        %v4333 = vmul.f32 %v3232, %v4329
        %v4334 = vmul.f32 %v3233, %v4329
        %v4335 = vadd.f32 %v4331, %v2400
        %v4336 = vadd.f32 %v4332, %v2401
        %v4337 = vadd.f32 %v4333, %v2402
        %v4338 = vadd.f32 %v4334, %v2403
        %v4339 = vmax.f32 %v4335, 0.0
        %v4340 = vmax.f32 %v4336, 0.0
        %v4341 = vmax.f32 %v4337, 0.0
        %v4342 = vmax.f32 %v4338, 0.0
        %s4343 = scalar_lea.vmem %s517, 64 [#allocation11]
        %4344 = vst [vmem:[%s4343] sm:$0xff] %v4339
        %4345 = vst [vmem:[%s4343 + $0x8] sm:$0xff] %v4340
        %4346 = vst [vmem:[%s4343 + $0x10] sm:$0xff] %v4341
        %4347 = vst [vmem:[%s4343 + $0x18] sm:$0xff] %v4342
        %4348 = vset.pattern.permute.xlu0 3
        %4349 = vperm.xlu0 %4348, %v4270
        %v4350 = vpop.permute.xlu0 %4349
        %4352 = vset.pattern.permute.xlu0 3
        %4353 = vperm.xlu0 %4352, %v4271
        %v4354 = vpop.permute.xlu0 %4353
        %v4356 = vmul.f32 %v4073, %v4350
        %v4357 = vmul.f32 %v4074, %v4350
        %v4358 = vmul.f32 %v4075, %v4354
        %v4359 = vmul.f32 %v4076, %v4354
        %v4360 = vadd.f32 %v4356, %v3243
        %v4361 = vadd.f32 %v4357, %v3244
        %v4362 = vadd.f32 %v4358, %v3245
        %v4363 = vadd.f32 %v4359, %v3246
        %v4364 = vmax.f32 %v4360, 0.0
        %v4365 = vmax.f32 %v4361, 0.0
        %v4366 = vmax.f32 %v4362, 0.0
        %v4367 = vmax.f32 %v4363, 0.0
        %s4368 = scalar_lea.vmem %s517, 96 [#allocation11]
        %4369 = vst [vmem:[%s4368] sm:$0xff] %v4364
        %4370 = vst [vmem:[%s4368 + $0x8] sm:$0xff] %v4365
        %4371 = vst [vmem:[%s4368 + $0x10] sm:$0xff] %v4366
        %4372 = vst [vmem:[%s4368 + $0x18] sm:$0xff] %v4367
        %s4373 = sand.u32 %s318, 1
        %s4374 = scalar_lea.sflag [#allocation4], %s4373
        %s4375 = sand.u32 %s318, 1
        %s4376 = smul.addr %s4375, 128
        %s4377 = scalar_lea.vmem [#allocation11], %s4376
        // Predicated region
        $region93: #{tpu_custom_call.1} parent=71 // pred_check
          %p4378 = pneg %p328
        $region94: #{tpu_custom_call.1} parent=71 // pred_check_branch
          %4380 = sbr.rel (%p4378) target = $region96
        $region95: #{tpu_custom_call.1} parent=71 // pred_region
          %s4381 = smul.u32 4, %s32
          %s4383 = ssub.s32 2048, 2048
          %4384 = vsyncadd %s4374, %s4383
          %s4385 = smul.addr %s4381, 4
          %s4386 = smul.addr %s4385, 128
          %s4387 = scalar_lea.hbm %s13, %s4386
          %s4388 = sshll.u32 %s4377, 4
          %s4389 = int_to_ptr.vmem [resolvable:$true] %s4388
          %4394 = dma.vmem_to_hbm [thread:$0]  %s4389, 2048, %s4387, %s4374, 256, 256, 16
        $region96: #{tpu_custom_call.1} parent=71 // pred_fallthru
          _
      $region72: #{tpu_custom_call.1} parent=5 // pred_fallthru
        _
      %p4395 = scmp.le.s32.totalorder 2, %s27
      // Predicated region
      $region97: #{tpu_custom_call.1} parent=5 // pred_check
        %p4396 = pneg %p4395
      $region98: #{tpu_custom_call.1} parent=5 // pred_check_branch
        %4398 = sbr.rel (%p4396) target = $region100
      $region99: #{tpu_custom_call.1} parent=5 // pred_region
        %s4399 = ssub.s32 %s27, 2
        // Predicated region
        $region101: #{tpu_custom_call.1} parent=99 // pred_check
          %p4400 = pneg %p334
        $region102: #{tpu_custom_call.1} parent=99 // pred_check_branch
          %4402 = sbr.rel (%p4400) target = $region104
        $region103: #{tpu_custom_call.1} parent=99 // pred_region
          %s4403 = sand.u32 %s319, 1
          %s4404 = scalar_lea.sflag [#allocation4], %s4403
          %s4405 = sand.u32 %s319, 1
          %s4406 = smul.addr %s4405, 128
          %s4407 = scalar_lea.vmem [#allocation11], %s4406
          %4408 = dma.done %s4404, 2048
        $region104: #{tpu_custom_call.1} parent=99 // pred_fallthru
          _
      $region100: #{tpu_custom_call.1} parent=5 // pred_fallthru
        _
    $region6: #{tpu_custom_call.1} parent=1 // loop_footer
      %s31 = sadd.s32 1, %s27
    $region7: #{tpu_custom_call.1} parent=1 // loop_footer_branch
      %26 = sbr.rel target = $region3
    $region8: #{tpu_custom_call.1} parent=1 // loop_exit
      _
    %4409 = vsyncpa [#allocation3], 1
    %s4410 = scalar_lea.sflag [#allocation3], 1
    %4411 = vsyncpa %s4410, 1
    %4412 = vsyncpa [#allocation6], 1
    %4413 = vsyncpa [#allocation9], 1
    %4414 = vsyncpa [#allocation4], 1
    %s4415 = scalar_lea.sflag [#allocation4], 1
    %4416 = vsyncpa %s4415, 1

</llo_original>
